<compile_context>
chip_gen: v6e
topology: v6e:2x2x1
jax: 0.10.0
libtpu: 0.0.40
codegen_flags: <defaults>
</compile_context>

<pallas_src>
import jax
import jax.numpy as jnp
from jax.experimental import pallas as pl
from jax.experimental.pallas import tpu as pltpu

# Logical layer sizes (PyTorch: nn.Linear(572,1024) ... nn.Linear(64,32))
DIMS = [572, 1024, 512, 256, 128, 64, 32]
# Padded (lane/sublane aligned) sizes actually used inside the kernel.
PDIMS = [640, 1024, 512, 256, 128, 128, 128]
N_LAYERS = len(DIMS) - 1
BIAS_PACK_WIDTH = 1024  # widest output dim; packed bias buffer is (6, 1024)


def _round_up(x, m):
    return ((x + m - 1) // m) * m


def team_block_kernel(x_ref, w1, w2, w3, w4, w5, w6, b_ref, out_ref):
    """x_ref: (TB, 640) f32, w_i: (PDIMS[i], PDIMS[i+1]) bf16,
    b_ref: (6, 1024) f32 packed biases, out_ref: (TB, 128) f32."""
    h = x_ref[...]  # f32 activations

    def layer(h, w_ref, row, width, relu):
        acc = jnp.dot(h.astype(jnp.bfloat16), w_ref[...],
                      preferred_element_type=jnp.float32)
        acc = acc + b_ref[row:row + 1, :width]
        if relu:
            acc = jnp.maximum(acc, 0.0)
        return acc

    h = layer(h, w1, 0, PDIMS[1], True)
    h = layer(h, w2, 1, PDIMS[2], True)
    h = layer(h, w3, 2, PDIMS[3], True)
    h = layer(h, w4, 3, PDIMS[4], True)
    h = layer(h, w5, 4, PDIMS[5], True)
    out_ref[...] = layer(h, w6, 5, PDIMS[6], False)


def init_params(key):
    """Deterministic init mimicking PyTorch Linear default:
    U(-1/sqrt(fan_in), 1/sqrt(fan_in)). Weights stored transposed: (in, out), f32."""
    params = []
    for i in range(N_LAYERS):
        fan_in, fan_out = DIMS[i], DIMS[i + 1]
        key, kw, kb = jax.random.split(key, 3)
        bound = 1.0 / jnp.sqrt(jnp.float32(fan_in))
        w = jax.random.uniform(kw, (fan_in, fan_out), jnp.float32, -bound, bound)
        b = jax.random.uniform(kb, (1, fan_out), jnp.float32, -bound, bound)
        params.append((w, b))
    return params


def prepare_params(params):
    """Zero-pad weights to PDIMS and cast to bf16; pack biases into one (6,1024) f32."""
    weights = []
    b_packed = jnp.zeros((N_LAYERS, BIAS_PACK_WIDTH), jnp.float32)
    for i, (w, b) in enumerate(params):
        pin, pout = PDIMS[i], PDIMS[i + 1]
        wp = jnp.zeros((pin, pout), jnp.float32)
        wp = wp.at[:w.shape[0], :w.shape[1]].set(w)
        weights.append(wp.astype(jnp.bfloat16))
        b_packed = b_packed.at[i, :b.shape[1]].set(b[0])
    return weights, b_packed


def team_block_forward(x, weights, b_packed, *, batch_tile=256):
    # PyTorch: x_1 = x.view(x.shape[0], -1)
    B = x.shape[0]
    x2d = x.reshape(B, -1).astype(jnp.float32)
    assert x2d.shape[1] == DIMS[0], \
        f"expected {DIMS[0]} flattened features, got {x2d.shape[1]}"

    # Zero-pad features 572 -> 640 (lane aligned); w1 rows already padded to match.
    x2d = jnp.pad(x2d, ((0, 0), (0, PDIMS[0] - DIMS[0])))

    # Batch tiling: small batches just pad to a sublane multiple; large batches tile.
    # (use batch_tile=128 on v5e — its MXU M-dim is 128.)
    tb = min(batch_tile, _round_up(B, 8))
    Bp = _round_up(B, tb)
    if Bp != B:
        x2d = jnp.pad(x2d, ((0, Bp - B), (0, 0)))
    grid = (Bp // tb,)

    in_specs = [pl.BlockSpec((tb, PDIMS[0]), lambda i: (i, 0))]
    for w in weights:
        in_specs.append(pl.BlockSpec(w.shape, lambda i: (0, 0)))  # VMEM-resident
    in_specs.append(pl.BlockSpec(b_packed.shape, lambda i: (0, 0)))
    out_specs = pl.BlockSpec((tb, PDIMS[-1]), lambda i: (i, 0))

    flops = 2 * Bp * sum(PDIMS[i] * PDIMS[i + 1] for i in range(N_LAYERS))
    bytes_accessed = (sum(int(w.size) * 2 for w in weights)       # bf16 weights
                      + int(b_packed.size) * 4                    # packed biases
                      + Bp * PDIMS[0] * 4 + Bp * PDIMS[-1] * 4)   # in / out

    out = pl.pallas_call(
        team_block_kernel,
        out_shape=jax.ShapeDtypeStruct((Bp, PDIMS[-1]), jnp.float32),
        grid=grid,
        in_specs=in_specs,
        out_specs=out_specs,
        compiler_params=pltpu.CompilerParams(
            dimension_semantics=("parallel",),
            vmem_limit_bytes=32 << 20,
        ),
        cost_estimate=pl.CostEstimate(
            flops=flops, transcendentals=0, bytes_accessed=bytes_accessed),
    )(x2d, *weights, b_packed)

    # Strip batch padding and the lane-padded output columns (128 -> 32).
    return out[:B, :DIMS[-1]]


def reference_forward(x, params):
    """Plain-JAX reference mirroring the kernel's precision (bf16 operands, f32 acc)."""
    h = x.reshape(x.shape[0], -1).astype(jnp.float32)
    for i, (w, b) in enumerate(params):
        h = jnp.dot(h.astype(jnp.bfloat16), w.astype(jnp.bfloat16),
                    preferred_element_type=jnp.float32) + b
        if i < N_LAYERS - 1:
            h = jnp.maximum(h, 0.0)
    return h


if __name__ == "__main__":
    key = jax.random.PRNGKey(0)
    key, kx = jax.random.split(key)

    # Input: (batch=2, 4, 143) -> flattened to (2, 572) inside forward.
    x = jax.random.normal(kx, (2, 4, 143), dtype=jnp.float32)

    params = init_params(jax.random.PRNGKey(0))
    weights, b_packed = prepare_params(params)

    out = team_block_forward(x, weights, b_packed)
    out = jax.block_until_ready(out)

    ref = reference_forward(x, params)
    assert out.shape == (2, 32), out.shape
    assert jnp.allclose(out, ref, atol=2e-2, rtol=2e-2), "mismatch vs reference"

    print("KERNEL_OK")
</pallas_src>

<mosaic_0001>
module attributes {stable_mosaic.version = 11 : i64} {
  func.func @team_block_kernel(%arg0: i32, %arg1: memref<8x640xf32, #tpu.memory_space<vmem>>, %arg2: memref<640x1024xbf16, #tpu.memory_space<vmem>>, %arg3: memref<1024x512xbf16, #tpu.memory_space<vmem>>, %arg4: memref<512x256xbf16, #tpu.memory_space<vmem>>, %arg5: memref<256x128xbf16, #tpu.memory_space<vmem>>, %arg6: memref<128x128xbf16, #tpu.memory_space<vmem>>, %arg7: memref<128x128xbf16, #tpu.memory_space<vmem>>, %arg8: memref<6x1024xf32, #tpu.memory_space<vmem>>, %arg9: memref<8x128xf32, #tpu.memory_space<vmem>>) attributes {dimension_semantics = [#tpu.dimension_semantics<parallel>], iteration_bounds = array<i64: 1>, scalar_prefetch = 0 : i64, scratch_operands = 0 : i64, tpu.core_type = #tpu.core_type<tc>, window_params = [{transform_indices = @transform_0, window_bounds = array<i64: 8, 640>}, {pipeline_mode = #tpu.pipeline_mode<synchronous>, transform_indices = @transform_1, window_bounds = array<i64: 640, 1024>}, {pipeline_mode = #tpu.pipeline_mode<synchronous>, transform_indices = @transform_2, window_bounds = array<i64: 1024, 512>}, {pipeline_mode = #tpu.pipeline_mode<synchronous>, transform_indices = @transform_3, window_bounds = array<i64: 512, 256>}, {pipeline_mode = #tpu.pipeline_mode<synchronous>, transform_indices = @transform_4, window_bounds = array<i64: 256, 128>}, {pipeline_mode = #tpu.pipeline_mode<synchronous>, transform_indices = @transform_5, window_bounds = array<i64: 128, 128>}, {pipeline_mode = #tpu.pipeline_mode<synchronous>, transform_indices = @transform_6, window_bounds = array<i64: 128, 128>}, {pipeline_mode = #tpu.pipeline_mode<synchronous>, transform_indices = @transform_7, window_bounds = array<i64: 6, 1024>}, {transform_indices = @transform_8, window_bounds = array<i64: 8, 128>}]} {
    %c0 = arith.constant 0 : index
    %c0_0 = arith.constant 0 : index
    %0 = vector.load %arg1[%c0, %c0_0] : memref<8x640xf32, #tpu.memory_space<vmem>>, vector<8x640xf32>
    %1 = arith.truncf %0 : vector<8x640xf32> to vector<8x640xbf16>
    %c0_1 = arith.constant 0 : index
    %c0_2 = arith.constant 0 : index
    %2 = vector.load %arg2[%c0_1, %c0_2] : memref<640x1024xbf16, #tpu.memory_space<vmem>>, vector<640x1024xbf16>
    %cst = arith.constant dense<0.000000e+00> : vector<8x1024xf32>
    %3 = tpu.matmul %1, %2, %cst {dimension_numbers = #tpu.dot_dimension_numbers<[1], [0], [0], [1], [0, 0, 1, 1], [], []>} : vector<8x640xbf16>, vector<640x1024xbf16>, vector<8x1024xf32> -> vector<8x1024xf32>
    %c0_3 = arith.constant 0 : index
    %c0_4 = arith.constant 0 : index
    %4 = vector.load %arg8[%c0_3, %c0_4] : memref<6x1024xf32, #tpu.memory_space<vmem>>, vector<1x1024xf32>
    %5 = vector.broadcast %4 : vector<1x1024xf32> to vector<8x1024xf32>
    %6 = arith.addf %3, %5 : vector<8x1024xf32>
    %cst_5 = arith.constant 0.000000e+00 : f32
    %7 = vector.broadcast %cst_5 : f32 to vector<8x1024xf32>
    %8 = arith.maximumf %6, %7 : vector<8x1024xf32>
    %9 = arith.truncf %8 : vector<8x1024xf32> to vector<8x1024xbf16>
    %c0_6 = arith.constant 0 : index
    %c0_7 = arith.constant 0 : index
    %10 = vector.load %arg3[%c0_6, %c0_7] : memref<1024x512xbf16, #tpu.memory_space<vmem>>, vector<1024x512xbf16>
    %cst_8 = arith.constant dense<0.000000e+00> : vector<8x512xf32>
    %11 = tpu.matmul %9, %10, %cst_8 {dimension_numbers = #tpu.dot_dimension_numbers<[1], [0], [0], [1], [0, 0, 1, 1], [], []>} : vector<8x1024xbf16>, vector<1024x512xbf16>, vector<8x512xf32> -> vector<8x512xf32>
    %c1 = arith.constant 1 : index
    %c0_9 = arith.constant 0 : index
    %12 = vector.load %arg8[%c1, %c0_9] : memref<6x1024xf32, #tpu.memory_space<vmem>>, vector<1x512xf32>
    %13 = vector.broadcast %12 : vector<1x512xf32> to vector<8x512xf32>
    %14 = arith.addf %11, %13 : vector<8x512xf32>
    %cst_10 = arith.constant 0.000000e+00 : f32
    %15 = vector.broadcast %cst_10 : f32 to vector<8x512xf32>
    %16 = arith.maximumf %14, %15 : vector<8x512xf32>
    %17 = arith.truncf %16 : vector<8x512xf32> to vector<8x512xbf16>
    %c0_11 = arith.constant 0 : index
    %c0_12 = arith.constant 0 : index
    %18 = vector.load %arg4[%c0_11, %c0_12] : memref<512x256xbf16, #tpu.memory_space<vmem>>, vector<512x256xbf16>
    %cst_13 = arith.constant dense<0.000000e+00> : vector<8x256xf32>
    %19 = tpu.matmul %17, %18, %cst_13 {dimension_numbers = #tpu.dot_dimension_numbers<[1], [0], [0], [1], [0, 0, 1, 1], [], []>} : vector<8x512xbf16>, vector<512x256xbf16>, vector<8x256xf32> -> vector<8x256xf32>
    %c2 = arith.constant 2 : index
    %c0_14 = arith.constant 0 : index
    %20 = vector.load %arg8[%c2, %c0_14] : memref<6x1024xf32, #tpu.memory_space<vmem>>, vector<1x256xf32>
    %21 = vector.broadcast %20 : vector<1x256xf32> to vector<8x256xf32>
    %22 = arith.addf %19, %21 : vector<8x256xf32>
    %cst_15 = arith.constant 0.000000e+00 : f32
    %23 = vector.broadcast %cst_15 : f32 to vector<8x256xf32>
    %24 = arith.maximumf %22, %23 : vector<8x256xf32>
    %25 = arith.truncf %24 : vector<8x256xf32> to vector<8x256xbf16>
    %c0_16 = arith.constant 0 : index
    %c0_17 = arith.constant 0 : index
    %26 = vector.load %arg5[%c0_16, %c0_17] : memref<256x128xbf16, #tpu.memory_space<vmem>>, vector<256x128xbf16>
    %cst_18 = arith.constant dense<0.000000e+00> : vector<8x128xf32>
    %27 = tpu.matmul %25, %26, %cst_18 {dimension_numbers = #tpu.dot_dimension_numbers<[1], [0], [0], [1], [0, 0, 1, 1], [], []>} : vector<8x256xbf16>, vector<256x128xbf16>, vector<8x128xf32> -> vector<8x128xf32>
    %c3 = arith.constant 3 : index
    %c0_19 = arith.constant 0 : index
    %28 = vector.load %arg8[%c3, %c0_19] : memref<6x1024xf32, #tpu.memory_space<vmem>>, vector<1x128xf32>
    %29 = vector.broadcast %28 : vector<1x128xf32> to vector<8x128xf32>
    %30 = arith.addf %27, %29 : vector<8x128xf32>
    %cst_20 = arith.constant 0.000000e+00 : f32
    %31 = vector.broadcast %cst_20 : f32 to vector<8x128xf32>
    %32 = arith.maximumf %30, %31 : vector<8x128xf32>
    %33 = arith.truncf %32 : vector<8x128xf32> to vector<8x128xbf16>
    %c0_21 = arith.constant 0 : index
    %c0_22 = arith.constant 0 : index
    %34 = vector.load %arg6[%c0_21, %c0_22] : memref<128x128xbf16, #tpu.memory_space<vmem>>, vector<128x128xbf16>
    %cst_23 = arith.constant dense<0.000000e+00> : vector<8x128xf32>
    %35 = tpu.matmul %33, %34, %cst_23 {dimension_numbers = #tpu.dot_dimension_numbers<[1], [0], [0], [1], [0, 0, 1, 1], [], []>} : vector<8x128xbf16>, vector<128x128xbf16>, vector<8x128xf32> -> vector<8x128xf32>
    %c4 = arith.constant 4 : index
    %c0_24 = arith.constant 0 : index
    %36 = vector.load %arg8[%c4, %c0_24] : memref<6x1024xf32, #tpu.memory_space<vmem>>, vector<1x128xf32>
    %37 = vector.broadcast %36 : vector<1x128xf32> to vector<8x128xf32>
    %38 = arith.addf %35, %37 : vector<8x128xf32>
    %cst_25 = arith.constant 0.000000e+00 : f32
    %39 = vector.broadcast %cst_25 : f32 to vector<8x128xf32>
    %40 = arith.maximumf %38, %39 : vector<8x128xf32>
    %41 = arith.truncf %40 : vector<8x128xf32> to vector<8x128xbf16>
    %c0_26 = arith.constant 0 : index
    %c0_27 = arith.constant 0 : index
    %42 = vector.load %arg7[%c0_26, %c0_27] : memref<128x128xbf16, #tpu.memory_space<vmem>>, vector<128x128xbf16>
    %cst_28 = arith.constant dense<0.000000e+00> : vector<8x128xf32>
    %43 = tpu.matmul %41, %42, %cst_28 {dimension_numbers = #tpu.dot_dimension_numbers<[1], [0], [0], [1], [0, 0, 1, 1], [], []>} : vector<8x128xbf16>, vector<128x128xbf16>, vector<8x128xf32> -> vector<8x128xf32>
    %c5 = arith.constant 5 : index
    %c0_29 = arith.constant 0 : index
    %44 = vector.load %arg8[%c5, %c0_29] : memref<6x1024xf32, #tpu.memory_space<vmem>>, vector<1x128xf32>
    %45 = vector.broadcast %44 : vector<1x128xf32> to vector<8x128xf32>
    %46 = arith.addf %43, %45 : vector<8x128xf32>
    %c0_30 = arith.constant 0 : index
    %c0_31 = arith.constant 0 : index
    %47 = vector.load %arg9[%c0_30, %c0_31] : memref<8x128xf32, #tpu.memory_space<vmem>>, vector<8x128xf32>
    tpu.vector_store %arg9[%c0_30, %c0_31], %46 {strides = array<i32>} : memref<8x128xf32, #tpu.memory_space<vmem>>, vector<8x128xf32>,
    return
  }
  func.func @transform_0(%arg0: i32) -> (i32, i32) {
    %c0_i32 = arith.constant 0 : i32
    %c0_i32_0 = arith.constant 0 : i32
    return %arg0, %c0_i32 : i32, i32
  }
  func.func @transform_1(%arg0: i32) -> (i32, i32) {
    %c0_i32 = arith.constant 0 : i32
    %c0_i32_0 = arith.constant 0 : i32
    %c0_i32_1 = arith.constant 0 : i32
    return %c0_i32, %c0_i32_0 : i32, i32
  }
  func.func @transform_2(%arg0: i32) -> (i32, i32) {
    %c0_i32 = arith.constant 0 : i32
    %c0_i32_0 = arith.constant 0 : i32
    %c0_i32_1 = arith.constant 0 : i32
    return %c0_i32, %c0_i32_0 : i32, i32
  }
  func.func @transform_3(%arg0: i32) -> (i32, i32) {
    %c0_i32 = arith.constant 0 : i32
    %c0_i32_0 = arith.constant 0 : i32
    %c0_i32_1 = arith.constant 0 : i32
    return %c0_i32, %c0_i32_0 : i32, i32
  }
  func.func @transform_4(%arg0: i32) -> (i32, i32) {
    %c0_i32 = arith.constant 0 : i32
    %c0_i32_0 = arith.constant 0 : i32
    %c0_i32_1 = arith.constant 0 : i32
    return %c0_i32, %c0_i32_0 : i32, i32
  }
  func.func @transform_5(%arg0: i32) -> (i32, i32) {
    %c0_i32 = arith.constant 0 : i32
    %c0_i32_0 = arith.constant 0 : i32
    %c0_i32_1 = arith.constant 0 : i32
    return %c0_i32, %c0_i32_0 : i32, i32
  }
  func.func @transform_6(%arg0: i32) -> (i32, i32) {
    %c0_i32 = arith.constant 0 : i32
    %c0_i32_0 = arith.constant 0 : i32
    %c0_i32_1 = arith.constant 0 : i32
    return %c0_i32, %c0_i32_0 : i32, i32
  }
  func.func @transform_7(%arg0: i32) -> (i32, i32) {
    %c0_i32 = arith.constant 0 : i32
    %c0_i32_0 = arith.constant 0 : i32
    %c0_i32_1 = arith.constant 0 : i32
    return %c0_i32, %c0_i32_0 : i32, i32
  }
  func.func @transform_8(%arg0: i32) -> (i32, i32) {
    %c0_i32 = arith.constant 0 : i32
    %c0_i32_0 = arith.constant 0 : i32
    return %arg0, %c0_i32 : i32, i32
  }
}

</mosaic_0001>

<llo_original>
// kernel: tpu_custom_call.1
$region0: #{tpu_custom_call.1}
  #allocation0 [shape = 'u32[]', space=smem, size = 0x4, offset = 0x4, fixed_abs, tag = 'smem constant byte address 0x4 - core index']
  #allocation1 [shape = 'u32[144,128]{1,0:T(1,128)}', space=vmem, size = 0x12000, scoped, tag = 'internal scratch']
  %s0 = inlined_call_operand.hbm [shape: f32[8,640], index: 0, kind: input, shape index: {}]
  %s1 = inlined_call_operand.hbm [shape: bf16[640,1024], index: 1, kind: input, shape index: {}]
  %s2 = inlined_call_operand.hbm [shape: bf16[1024,512], index: 2, kind: input, shape index: {}]
  %s3 = inlined_call_operand.hbm [shape: bf16[512,256], index: 3, kind: input, shape index: {}]
  %s4 = inlined_call_operand.hbm [shape: bf16[256,128], index: 4, kind: input, shape index: {}]
  %s5 = inlined_call_operand.hbm [shape: bf16[128,128], index: 5, kind: input, shape index: {}]
  %s6 = inlined_call_operand.hbm [shape: bf16[128,128], index: 6, kind: input, shape index: {}]
  %s7 = inlined_call_operand.hbm [shape: f32[6,1024], index: 7, kind: input, shape index: {}]
  %s8 = inlined_call_operand.hbm [shape: f32[8,128], index: 8, kind: output, shape index: {}]
  %s9 = sld [smem:[#allocation0]]
  $region74: #{tpu_custom_call.1} parent=0
    _
  %s11 = ssub.s32 1, %s9
  %s12 = scalar_select 0, %s11, %s9
  $region1: #{tpu_custom_call.1} parent=0
    #allocation2 [shape = 'u8[20480]{0}', space=vmem, size = 0x5000, scoped, tag = 'input window, operand 0, single buffered']
    #allocation3 [shape = 's32[1]{0}', space=sflag, size = 0x4, scoped, tag = 'scoped memory for tpu_custom_call.1']
    #allocation4 [shape = 's32[1]{0}', space=sflag, size = 0x4, scoped, tag = 'scoped memory for tpu_custom_call.1']
    #allocation5 [shape = 'u8[1310720]{0}', space=vmem, size = 0x140000, scoped, tag = 'input window, operand 1, single buffered']
    #allocation6 [shape = 's32[1]{0}', space=sflag, size = 0x4, scoped, tag = 'scoped memory for tpu_custom_call.1']
    #allocation7 [shape = 'u8[1048576]{0}', space=vmem, size = 0x100000, scoped, tag = 'input window, operand 2, single buffered']
    #allocation8 [shape = 'u8[262144]{0}', space=vmem, size = 0x40000, scoped, tag = 'input window, operand 3, single buffered']
    #allocation9 [shape = 's32[1]{0}', space=sflag, size = 0x4, scoped, tag = 'scoped memory for tpu_custom_call.1']
    #allocation10 [shape = 'u8[65536]{0}', space=vmem, size = 0x10000, scoped, tag = 'input window, operand 4, single buffered']
    #allocation11 [shape = 'u8[32768]{0}', space=vmem, size = 0x8000, scoped, tag = 'input window, operand 5, single buffered']
    #allocation12 [shape = 's32[1]{0}', space=sflag, size = 0x4, scoped, tag = 'scoped memory for tpu_custom_call.1']
    #allocation13 [shape = 'u8[32768]{0}', space=vmem, size = 0x8000, scoped, tag = 'input window, operand 6, single buffered']
    #allocation14 [shape = 'u8[32768]{0}', space=vmem, size = 0x8000, scoped, tag = 'input window, operand 7, single buffered']
    #allocation15 [shape = 's32[1]{0}', space=sflag, size = 0x4, scoped, tag = 'scoped memory for tpu_custom_call.1']
    #allocation16 [shape = 'u8[4096]{0}', space=vmem, size = 0x1000, scoped, tag = 'output window, operand 0, single buffered']
    %13 = vsyncpa [#allocation3], 0
    %14 = vsyncpa [#allocation6], 0
    %15 = vsyncpa [#allocation9], 0
    %16 = vsyncpa [#allocation12], 0
    %17 = vsyncpa [#allocation15], 0
    %18 = vsyncpa [#allocation4], 0
    // Predicated region
    $region2: #{tpu_custom_call.1} parent=1 // pred_check
      _
    $region3: #{tpu_custom_call.1} parent=1 // pred_check_branch
      %20 = sbr.rel (0) target = $region5
    $region4: #{tpu_custom_call.1} parent=1 // pred_region
      %s22 = ssub.s32 640, 640
      %23 = vsyncadd [#allocation3], %s22
      %s25 = sshll.u32 [#allocation2], 4
      %s26 = int_to_ptr.vmem [resolvable:$true] %s25
      %28 = dma.hbm_to_vmem [thread:$0]  %s0, 640, %s26, [#allocation3]
    $region5: #{tpu_custom_call.1} parent=1 // pred_fallthru
      _
    // Predicated region
    $region6: #{tpu_custom_call.1} parent=1 // pred_check
      _
    $region7: #{tpu_custom_call.1} parent=1 // pred_check_branch
      %30 = sbr.rel (0) target = $region9
    $region8: #{tpu_custom_call.1} parent=1 // pred_region
      %s32 = ssub.s32 40960, 40960
      %33 = vsyncadd [#allocation6], %s32
      %s34 = sshll.u32 [#allocation5], 4
      %s35 = int_to_ptr.vmem [resolvable:$true] %s34
      %40 = dma.hbm_to_vmem [thread:$0]  %s1, 40960, %s35, [#allocation6], 512, 512, 32
    $region9: #{tpu_custom_call.1} parent=1 // pred_fallthru
      _
    // Predicated region
    $region10: #{tpu_custom_call.1} parent=1 // pred_check
      _
    $region11: #{tpu_custom_call.1} parent=1 // pred_check_branch
      %42 = sbr.rel (0) target = $region13
    $region12: #{tpu_custom_call.1} parent=1 // pred_region
      %s44 = ssub.s32 32768, 32768
      %45 = vsyncadd [#allocation6], %s44
      %s46 = sshll.u32 [#allocation7], 4
      %s47 = int_to_ptr.vmem [resolvable:$true] %s46
      %52 = dma.hbm_to_vmem [thread:$0]  %s2, 32768, %s47, [#allocation6], 256, 256, 16
    $region13: #{tpu_custom_call.1} parent=1 // pred_fallthru
      _
    // Predicated region
    $region14: #{tpu_custom_call.1} parent=1 // pred_check
      _
    $region15: #{tpu_custom_call.1} parent=1 // pred_check_branch
      %54 = sbr.rel (0) target = $region17
    $region16: #{tpu_custom_call.1} parent=1 // pred_region
      %s56 = ssub.s32 8192, 8192
      %57 = vsyncadd [#allocation9], %s56
      %s58 = sshll.u32 [#allocation8], 4
      %s59 = int_to_ptr.vmem [resolvable:$true] %s58
      %64 = dma.hbm_to_vmem [thread:$0]  %s3, 8192, %s59, [#allocation9], 128, 128, 8
    $region17: #{tpu_custom_call.1} parent=1 // pred_fallthru
      _
    // Predicated region
    $region18: #{tpu_custom_call.1} parent=1 // pred_check
      _
    $region19: #{tpu_custom_call.1} parent=1 // pred_check_branch
      %66 = sbr.rel (0) target = $region21
    $region20: #{tpu_custom_call.1} parent=1 // pred_region
      %s68 = ssub.s32 2048, 2048
      %69 = vsyncadd [#allocation9], %s68
      %s70 = sshll.u32 [#allocation10], 4
      %s71 = int_to_ptr.vmem [resolvable:$true] %s70
      %76 = dma.hbm_to_vmem [thread:$0]  %s4, 2048, %s71, [#allocation9], 64, 64, 4
    $region21: #{tpu_custom_call.1} parent=1 // pred_fallthru
      _
    // Predicated region
    $region22: #{tpu_custom_call.1} parent=1 // pred_check
      _
    $region23: #{tpu_custom_call.1} parent=1 // pred_check_branch
      %78 = sbr.rel (0) target = $region25
    $region24: #{tpu_custom_call.1} parent=1 // pred_region
      %s80 = ssub.s32 1024, 1024
      %81 = vsyncadd [#allocation12], %s80
      %s82 = sshll.u32 [#allocation11], 4
      %s83 = int_to_ptr.vmem [resolvable:$true] %s82
      %88 = dma.hbm_to_vmem [thread:$0]  %s5, 1024, %s83, [#allocation12], 64, 64, 4
    $region25: #{tpu_custom_call.1} parent=1 // pred_fallthru
      _
    // Predicated region
    $region26: #{tpu_custom_call.1} parent=1 // pred_check
      _
    $region27: #{tpu_custom_call.1} parent=1 // pred_check_branch
      %90 = sbr.rel (0) target = $region29
    $region28: #{tpu_custom_call.1} parent=1 // pred_region
      %s92 = ssub.s32 1024, 1024
      %93 = vsyncadd [#allocation12], %s92
      %s94 = sshll.u32 [#allocation13], 4
      %s95 = int_to_ptr.vmem [resolvable:$true] %s94
      %100 = dma.hbm_to_vmem [thread:$0]  %s6, 1024, %s95, [#allocation12], 64, 64, 4
    $region29: #{tpu_custom_call.1} parent=1 // pred_fallthru
      _
    // Predicated region
    $region30: #{tpu_custom_call.1} parent=1 // pred_check
      _
    $region31: #{tpu_custom_call.1} parent=1 // pred_check_branch
      %102 = sbr.rel (0) target = $region33
    $region32: #{tpu_custom_call.1} parent=1 // pred_region
      %s104 = ssub.s32 1024, 1024
      %105 = vsyncadd [#allocation15], %s104
      %s107 = sshll.u32 [#allocation14], 4
      %s108 = int_to_ptr.vmem [resolvable:$true] %s107
      %110 = dma.hbm_to_vmem [thread:$0]  %s7, 1024, %s108, [#allocation15]
    $region33: #{tpu_custom_call.1} parent=1 // pred_fallthru
      _
    // Predicated region
    $region34: #{tpu_custom_call.1} parent=1 // pred_check
      _
    $region35: #{tpu_custom_call.1} parent=1 // pred_check_branch
      %112 = sbr.rel (0) target = $region37
    $region36: #{tpu_custom_call.1} parent=1 // pred_region
      %113 = dma.done [#allocation3], 640
    $region37: #{tpu_custom_call.1} parent=1 // pred_fallthru
      _
    // Predicated region
    $region38: #{tpu_custom_call.1} parent=1 // pred_check
      _
    $region39: #{tpu_custom_call.1} parent=1 // pred_check_branch
      %115 = sbr.rel (0) target = $region41
    $region40: #{tpu_custom_call.1} parent=1 // pred_region
      %116 = dma.done [#allocation6], 40960
    $region41: #{tpu_custom_call.1} parent=1 // pred_fallthru
      _
    // Predicated region
    $region42: #{tpu_custom_call.1} parent=1 // pred_check
      _
    $region43: #{tpu_custom_call.1} parent=1 // pred_check_branch
      %118 = sbr.rel (0) target = $region45
    $region44: #{tpu_custom_call.1} parent=1 // pred_region
      %119 = dma.done [#allocation6], 32768
    $region45: #{tpu_custom_call.1} parent=1 // pred_fallthru
      _
    // Predicated region
    $region46: #{tpu_custom_call.1} parent=1 // pred_check
      _
    $region47: #{tpu_custom_call.1} parent=1 // pred_check_branch
      %121 = sbr.rel (0) target = $region49
    $region48: #{tpu_custom_call.1} parent=1 // pred_region
      %122 = dma.done [#allocation9], 8192
    $region49: #{tpu_custom_call.1} parent=1 // pred_fallthru
      _
    // Predicated region
    $region50: #{tpu_custom_call.1} parent=1 // pred_check
      _
    $region51: #{tpu_custom_call.1} parent=1 // pred_check_branch
      %124 = sbr.rel (0) target = $region53
    $region52: #{tpu_custom_call.1} parent=1 // pred_region
      %125 = dma.done [#allocation9], 2048
    $region53: #{tpu_custom_call.1} parent=1 // pred_fallthru
      _
    // Predicated region
    $region54: #{tpu_custom_call.1} parent=1 // pred_check
      _
    $region55: #{tpu_custom_call.1} parent=1 // pred_check_branch
      %127 = sbr.rel (0) target = $region57
    $region56: #{tpu_custom_call.1} parent=1 // pred_region
      %128 = dma.done [#allocation12], 1024
    $region57: #{tpu_custom_call.1} parent=1 // pred_fallthru
      _
    // Predicated region
    $region58: #{tpu_custom_call.1} parent=1 // pred_check
      _
    $region59: #{tpu_custom_call.1} parent=1 // pred_check_branch
      %130 = sbr.rel (0) target = $region61
    $region60: #{tpu_custom_call.1} parent=1 // pred_region
      %131 = dma.done [#allocation12], 1024
    $region61: #{tpu_custom_call.1} parent=1 // pred_fallthru
      _
    // Predicated region
    $region62: #{tpu_custom_call.1} parent=1 // pred_check
      _
    $region63: #{tpu_custom_call.1} parent=1 // pred_check_branch
      %133 = sbr.rel (0) target = $region65
    $region64: #{tpu_custom_call.1} parent=1 // pred_region
      %134 = dma.done [#allocation15], 1024
    $region65: #{tpu_custom_call.1} parent=1 // pred_fallthru
      _
    %v136 = vld [vmem:[#allocation2] sm:$0xff]
    %v137 = vld [vmem:[#allocation2 + $0x8] sm:$0xff]
    %v138 = vld [vmem:[#allocation2 + $0x10] sm:$0xff]
    %v139 = vld [vmem:[#allocation2 + $0x18] sm:$0xff]
    %v140 = vld [vmem:[#allocation2 + $0x20] sm:$0xff]
    %v141 = vpack.c.bf16 %v136, %v136
    %v142 = vpack.c.bf16 %v137, %v137
    %v143 = vpack.c.bf16 %v138, %v138
    %v144 = vpack.c.bf16 %v139, %v139
    %v145 = vpack.c.bf16 %v140, %v140
    %v146 = vld [vmem:[#allocation5] sm:$0xff]
    %v147 = vld [vmem:[#allocation5 + $0x8] sm:$0xff]
    %v148 = vld [vmem:[#allocation5 + $0x10] sm:$0xff]
    %v149 = vld [vmem:[#allocation5 + $0x18] sm:$0xff]
    %v150 = vld [vmem:[#allocation5 + $0x20] sm:$0xff]
    %v151 = vld [vmem:[#allocation5 + $0x28] sm:$0xff]
    %v152 = vld [vmem:[#allocation5 + $0x30] sm:$0xff]
    %v153 = vld [vmem:[#allocation5 + $0x38] sm:$0xff]
    %v154 = vld [vmem:[#allocation5 + $0x40] sm:$0xff]
    %v155 = vld [vmem:[#allocation5 + $0x48] sm:$0xff]
    %v156 = vld [vmem:[#allocation5 + $0x50] sm:$0xff]
    %v157 = vld [vmem:[#allocation5 + $0x58] sm:$0xff]
    %v158 = vld [vmem:[#allocation5 + $0x60] sm:$0xff]
    %v159 = vld [vmem:[#allocation5 + $0x68] sm:$0xff]
    %v160 = vld [vmem:[#allocation5 + $0x70] sm:$0xff]
    %v161 = vld [vmem:[#allocation5 + $0x78] sm:$0xff]
    %v162 = vld [vmem:[#allocation5 + $0x80] sm:$0xff]
    %v163 = vld [vmem:[#allocation5 + $0x88] sm:$0xff]
    %v164 = vld [vmem:[#allocation5 + $0x90] sm:$0xff]
    %v165 = vld [vmem:[#allocation5 + $0x98] sm:$0xff]
    %v166 = vld [vmem:[#allocation5 + $0xa0] sm:$0xff]
    %v167 = vld [vmem:[#allocation5 + $0xa8] sm:$0xff]
    %v168 = vld [vmem:[#allocation5 + $0xb0] sm:$0xff]
    %v169 = vld [vmem:[#allocation5 + $0xb8] sm:$0xff]
    %v170 = vld [vmem:[#allocation5 + $0xc0] sm:$0xff]
    %v171 = vld [vmem:[#allocation5 + $0xc8] sm:$0xff]
    %v172 = vld [vmem:[#allocation5 + $0xd0] sm:$0xff]
    %v173 = vld [vmem:[#allocation5 + $0xd8] sm:$0xff]
    %v174 = vld [vmem:[#allocation5 + $0xe0] sm:$0xff]
    %v175 = vld [vmem:[#allocation5 + $0xe8] sm:$0xff]
    %v176 = vld [vmem:[#allocation5 + $0xf0] sm:$0xff]
    %v177 = vld [vmem:[#allocation5 + $0xf8] sm:$0xff]
    %v178 = vld [vmem:[#allocation5 + $0x100] sm:$0xff]
    %v179 = vld [vmem:[#allocation5 + $0x108] sm:$0xff]
    %v180 = vld [vmem:[#allocation5 + $0x110] sm:$0xff]
    %v181 = vld [vmem:[#allocation5 + $0x118] sm:$0xff]
    %v182 = vld [vmem:[#allocation5 + $0x120] sm:$0xff]
    %v183 = vld [vmem:[#allocation5 + $0x128] sm:$0xff]
    %v184 = vld [vmem:[#allocation5 + $0x130] sm:$0xff]
    %v185 = vld [vmem:[#allocation5 + $0x138] sm:$0xff]
    %v186 = vld [vmem:[#allocation5 + $0x140] sm:$0xff]
    %v187 = vld [vmem:[#allocation5 + $0x148] sm:$0xff]
    %v188 = vld [vmem:[#allocation5 + $0x150] sm:$0xff]
    %v189 = vld [vmem:[#allocation5 + $0x158] sm:$0xff]
    %v190 = vld [vmem:[#allocation5 + $0x160] sm:$0xff]
    %v191 = vld [vmem:[#allocation5 + $0x168] sm:$0xff]
    %v192 = vld [vmem:[#allocation5 + $0x170] sm:$0xff]
    %v193 = vld [vmem:[#allocation5 + $0x178] sm:$0xff]
    %v194 = vld [vmem:[#allocation5 + $0x180] sm:$0xff]
    %v195 = vld [vmem:[#allocation5 + $0x188] sm:$0xff]
    %v196 = vld [vmem:[#allocation5 + $0x190] sm:$0xff]
    %v197 = vld [vmem:[#allocation5 + $0x198] sm:$0xff]
    %v198 = vld [vmem:[#allocation5 + $0x1a0] sm:$0xff]
    %v199 = vld [vmem:[#allocation5 + $0x1a8] sm:$0xff]
    %v200 = vld [vmem:[#allocation5 + $0x1b0] sm:$0xff]
    %v201 = vld [vmem:[#allocation5 + $0x1b8] sm:$0xff]
    %v202 = vld [vmem:[#allocation5 + $0x1c0] sm:$0xff]
    %v203 = vld [vmem:[#allocation5 + $0x1c8] sm:$0xff]
    %v204 = vld [vmem:[#allocation5 + $0x1d0] sm:$0xff]
    %v205 = vld [vmem:[#allocation5 + $0x1d8] sm:$0xff]
    %v206 = vld [vmem:[#allocation5 + $0x1e0] sm:$0xff]
    %v207 = vld [vmem:[#allocation5 + $0x1e8] sm:$0xff]
    %v208 = vld [vmem:[#allocation5 + $0x1f0] sm:$0xff]
    %v209 = vld [vmem:[#allocation5 + $0x1f8] sm:$0xff]
    %v210 = vld [vmem:[#allocation5 + $0x200] sm:$0xff]
    %v211 = vld [vmem:[#allocation5 + $0x208] sm:$0xff]
    %v212 = vld [vmem:[#allocation5 + $0x210] sm:$0xff]
    %v213 = vld [vmem:[#allocation5 + $0x218] sm:$0xff]
    %v214 = vld [vmem:[#allocation5 + $0x220] sm:$0xff]
    %v215 = vld [vmem:[#allocation5 + $0x228] sm:$0xff]
    %v216 = vld [vmem:[#allocation5 + $0x230] sm:$0xff]
    %v217 = vld [vmem:[#allocation5 + $0x238] sm:$0xff]
    %v218 = vld [vmem:[#allocation5 + $0x240] sm:$0xff]
    %v219 = vld [vmem:[#allocation5 + $0x248] sm:$0xff]
    %v220 = vld [vmem:[#allocation5 + $0x250] sm:$0xff]
    %v221 = vld [vmem:[#allocation5 + $0x258] sm:$0xff]
    %v222 = vld [vmem:[#allocation5 + $0x260] sm:$0xff]
    %v223 = vld [vmem:[#allocation5 + $0x268] sm:$0xff]
    %v224 = vld [vmem:[#allocation5 + $0x270] sm:$0xff]
    %v225 = vld [vmem:[#allocation5 + $0x278] sm:$0xff]
    %v226 = vld [vmem:[#allocation5 + $0x280] sm:$0xff]
    %v227 = vld [vmem:[#allocation5 + $0x288] sm:$0xff]
    %v228 = vld [vmem:[#allocation5 + $0x290] sm:$0xff]
    %v229 = vld [vmem:[#allocation5 + $0x298] sm:$0xff]
    %v230 = vld [vmem:[#allocation5 + $0x2a0] sm:$0xff]
    %v231 = vld [vmem:[#allocation5 + $0x2a8] sm:$0xff]
    %v232 = vld [vmem:[#allocation5 + $0x2b0] sm:$0xff]
    %v233 = vld [vmem:[#allocation5 + $0x2b8] sm:$0xff]
    %v234 = vld [vmem:[#allocation5 + $0x2c0] sm:$0xff]
    %v235 = vld [vmem:[#allocation5 + $0x2c8] sm:$0xff]
    %v236 = vld [vmem:[#allocation5 + $0x2d0] sm:$0xff]
    %v237 = vld [vmem:[#allocation5 + $0x2d8] sm:$0xff]
    %v238 = vld [vmem:[#allocation5 + $0x2e0] sm:$0xff]
    %v239 = vld [vmem:[#allocation5 + $0x2e8] sm:$0xff]
    %v240 = vld [vmem:[#allocation5 + $0x2f0] sm:$0xff]
    %v241 = vld [vmem:[#allocation5 + $0x2f8] sm:$0xff]
    %v242 = vld [vmem:[#allocation5 + $0x300] sm:$0xff]
    %v243 = vld [vmem:[#allocation5 + $0x308] sm:$0xff]
    %v244 = vld [vmem:[#allocation5 + $0x310] sm:$0xff]
    %v245 = vld [vmem:[#allocation5 + $0x318] sm:$0xff]
    %v246 = vld [vmem:[#allocation5 + $0x320] sm:$0xff]
    %v247 = vld [vmem:[#allocation5 + $0x328] sm:$0xff]
    %v248 = vld [vmem:[#allocation5 + $0x330] sm:$0xff]
    %v249 = vld [vmem:[#allocation5 + $0x338] sm:$0xff]
    %v250 = vld [vmem:[#allocation5 + $0x340] sm:$0xff]
    %v251 = vld [vmem:[#allocation5 + $0x348] sm:$0xff]
    %v252 = vld [vmem:[#allocation5 + $0x350] sm:$0xff]
    %v253 = vld [vmem:[#allocation5 + $0x358] sm:$0xff]
    %v254 = vld [vmem:[#allocation5 + $0x360] sm:$0xff]
    %v255 = vld [vmem:[#allocation5 + $0x368] sm:$0xff]
    %v256 = vld [vmem:[#allocation5 + $0x370] sm:$0xff]
    %v257 = vld [vmem:[#allocation5 + $0x378] sm:$0xff]
    %v258 = vld [vmem:[#allocation5 + $0x380] sm:$0xff]
    %v259 = vld [vmem:[#allocation5 + $0x388] sm:$0xff]
    %v260 = vld [vmem:[#allocation5 + $0x390] sm:$0xff]
    %v261 = vld [vmem:[#allocation5 + $0x398] sm:$0xff]
    %v262 = vld [vmem:[#allocation5 + $0x3a0] sm:$0xff]
    %v263 = vld [vmem:[#allocation5 + $0x3a8] sm:$0xff]
    %v264 = vld [vmem:[#allocation5 + $0x3b0] sm:$0xff]
    %v265 = vld [vmem:[#allocation5 + $0x3b8] sm:$0xff]
    %v266 = vld [vmem:[#allocation5 + $0x3c0] sm:$0xff]
    %v267 = vld [vmem:[#allocation5 + $0x3c8] sm:$0xff]
    %v268 = vld [vmem:[#allocation5 + $0x3d0] sm:$0xff]
    %v269 = vld [vmem:[#allocation5 + $0x3d8] sm:$0xff]
    %v270 = vld [vmem:[#allocation5 + $0x3e0] sm:$0xff]
    %v271 = vld [vmem:[#allocation5 + $0x3e8] sm:$0xff]
    %v272 = vld [vmem:[#allocation5 + $0x3f0] sm:$0xff]
    %v273 = vld [vmem:[#allocation5 + $0x3f8] sm:$0xff]
    %v274 = vld [vmem:[#allocation5 + $0x400] sm:$0xff]
    %v275 = vld [vmem:[#allocation5 + $0x408] sm:$0xff]
    %v276 = vld [vmem:[#allocation5 + $0x410] sm:$0xff]
    %v277 = vld [vmem:[#allocation5 + $0x418] sm:$0xff]
    %v278 = vld [vmem:[#allocation5 + $0x420] sm:$0xff]
    %v279 = vld [vmem:[#allocation5 + $0x428] sm:$0xff]
    %v280 = vld [vmem:[#allocation5 + $0x430] sm:$0xff]
    %v281 = vld [vmem:[#allocation5 + $0x438] sm:$0xff]
    %v282 = vld [vmem:[#allocation5 + $0x440] sm:$0xff]
    %v283 = vld [vmem:[#allocation5 + $0x448] sm:$0xff]
    %v284 = vld [vmem:[#allocation5 + $0x450] sm:$0xff]
    %v285 = vld [vmem:[#allocation5 + $0x458] sm:$0xff]
    %v286 = vld [vmem:[#allocation5 + $0x460] sm:$0xff]
    %v287 = vld [vmem:[#allocation5 + $0x468] sm:$0xff]
    %v288 = vld [vmem:[#allocation5 + $0x470] sm:$0xff]
    %v289 = vld [vmem:[#allocation5 + $0x478] sm:$0xff]
    %v290 = vld [vmem:[#allocation5 + $0x480] sm:$0xff]
    %v291 = vld [vmem:[#allocation5 + $0x488] sm:$0xff]
    %v292 = vld [vmem:[#allocation5 + $0x490] sm:$0xff]
    %v293 = vld [vmem:[#allocation5 + $0x498] sm:$0xff]
    %v294 = vld [vmem:[#allocation5 + $0x4a0] sm:$0xff]
    %v295 = vld [vmem:[#allocation5 + $0x4a8] sm:$0xff]
    %v296 = vld [vmem:[#allocation5 + $0x4b0] sm:$0xff]
    %v297 = vld [vmem:[#allocation5 + $0x4b8] sm:$0xff]
    %v298 = vld [vmem:[#allocation5 + $0x4c0] sm:$0xff]
    %v299 = vld [vmem:[#allocation5 + $0x4c8] sm:$0xff]
    %v300 = vld [vmem:[#allocation5 + $0x4d0] sm:$0xff]
    %v301 = vld [vmem:[#allocation5 + $0x4d8] sm:$0xff]
    %v302 = vld [vmem:[#allocation5 + $0x4e0] sm:$0xff]
    %v303 = vld [vmem:[#allocation5 + $0x4e8] sm:$0xff]
    %v304 = vld [vmem:[#allocation5 + $0x4f0] sm:$0xff]
    %v305 = vld [vmem:[#allocation5 + $0x4f8] sm:$0xff]
    %v306 = vld [vmem:[#allocation5 + $0x500] sm:$0xff]
    %v307 = vld [vmem:[#allocation5 + $0x508] sm:$0xff]
    %v308 = vld [vmem:[#allocation5 + $0x510] sm:$0xff]
    %v309 = vld [vmem:[#allocation5 + $0x518] sm:$0xff]
    %v310 = vld [vmem:[#allocation5 + $0x520] sm:$0xff]
    %v311 = vld [vmem:[#allocation5 + $0x528] sm:$0xff]
    %v312 = vld [vmem:[#allocation5 + $0x530] sm:$0xff]
    %v313 = vld [vmem:[#allocation5 + $0x538] sm:$0xff]
    %v314 = vld [vmem:[#allocation5 + $0x540] sm:$0xff]
    %v315 = vld [vmem:[#allocation5 + $0x548] sm:$0xff]
    %v316 = vld [vmem:[#allocation5 + $0x550] sm:$0xff]
    %v317 = vld [vmem:[#allocation5 + $0x558] sm:$0xff]
    %v318 = vld [vmem:[#allocation5 + $0x560] sm:$0xff]
    %v319 = vld [vmem:[#allocation5 + $0x568] sm:$0xff]
    %v320 = vld [vmem:[#allocation5 + $0x570] sm:$0xff]
    %v321 = vld [vmem:[#allocation5 + $0x578] sm:$0xff]
    %v322 = vld [vmem:[#allocation5 + $0x580] sm:$0xff]
    %v323 = vld [vmem:[#allocation5 + $0x588] sm:$0xff]
    %v324 = vld [vmem:[#allocation5 + $0x590] sm:$0xff]
    %v325 = vld [vmem:[#allocation5 + $0x598] sm:$0xff]
    %v326 = vld [vmem:[#allocation5 + $0x5a0] sm:$0xff]
    %v327 = vld [vmem:[#allocation5 + $0x5a8] sm:$0xff]
    %v328 = vld [vmem:[#allocation5 + $0x5b0] sm:$0xff]
    %v329 = vld [vmem:[#allocation5 + $0x5b8] sm:$0xff]
    %v330 = vld [vmem:[#allocation5 + $0x5c0] sm:$0xff]
    %v331 = vld [vmem:[#allocation5 + $0x5c8] sm:$0xff]
    %v332 = vld [vmem:[#allocation5 + $0x5d0] sm:$0xff]
    %v333 = vld [vmem:[#allocation5 + $0x5d8] sm:$0xff]
    %v334 = vld [vmem:[#allocation5 + $0x5e0] sm:$0xff]
    %v335 = vld [vmem:[#allocation5 + $0x5e8] sm:$0xff]
    %v336 = vld [vmem:[#allocation5 + $0x5f0] sm:$0xff]
    %v337 = vld [vmem:[#allocation5 + $0x5f8] sm:$0xff]
    %v338 = vld [vmem:[#allocation5 + $0x600] sm:$0xff]
    %v339 = vld [vmem:[#allocation5 + $0x608] sm:$0xff]
    %v340 = vld [vmem:[#allocation5 + $0x610] sm:$0xff]
    %v341 = vld [vmem:[#allocation5 + $0x618] sm:$0xff]
    %v342 = vld [vmem:[#allocation5 + $0x620] sm:$0xff]
    %v343 = vld [vmem:[#allocation5 + $0x628] sm:$0xff]
    %v344 = vld [vmem:[#allocation5 + $0x630] sm:$0xff]
    %v345 = vld [vmem:[#allocation5 + $0x638] sm:$0xff]
    %v346 = vld [vmem:[#allocation5 + $0x640] sm:$0xff]
    %v347 = vld [vmem:[#allocation5 + $0x648] sm:$0xff]
    %v348 = vld [vmem:[#allocation5 + $0x650] sm:$0xff]
    %v349 = vld [vmem:[#allocation5 + $0x658] sm:$0xff]
    %v350 = vld [vmem:[#allocation5 + $0x660] sm:$0xff]
    %v351 = vld [vmem:[#allocation5 + $0x668] sm:$0xff]
    %v352 = vld [vmem:[#allocation5 + $0x670] sm:$0xff]
    %v353 = vld [vmem:[#allocation5 + $0x678] sm:$0xff]
    %v354 = vld [vmem:[#allocation5 + $0x680] sm:$0xff]
    %v355 = vld [vmem:[#allocation5 + $0x688] sm:$0xff]
    %v356 = vld [vmem:[#allocation5 + $0x690] sm:$0xff]
    %v357 = vld [vmem:[#allocation5 + $0x698] sm:$0xff]
    %v358 = vld [vmem:[#allocation5 + $0x6a0] sm:$0xff]
    %v359 = vld [vmem:[#allocation5 + $0x6a8] sm:$0xff]
    %v360 = vld [vmem:[#allocation5 + $0x6b0] sm:$0xff]
    %v361 = vld [vmem:[#allocation5 + $0x6b8] sm:$0xff]
    %v362 = vld [vmem:[#allocation5 + $0x6c0] sm:$0xff]
    %v363 = vld [vmem:[#allocation5 + $0x6c8] sm:$0xff]
    %v364 = vld [vmem:[#allocation5 + $0x6d0] sm:$0xff]
    %v365 = vld [vmem:[#allocation5 + $0x6d8] sm:$0xff]
    %v366 = vld [vmem:[#allocation5 + $0x6e0] sm:$0xff]
    %v367 = vld [vmem:[#allocation5 + $0x6e8] sm:$0xff]
    %v368 = vld [vmem:[#allocation5 + $0x6f0] sm:$0xff]
    %v369 = vld [vmem:[#allocation5 + $0x6f8] sm:$0xff]
    %v370 = vld [vmem:[#allocation5 + $0x700] sm:$0xff]
    %v371 = vld [vmem:[#allocation5 + $0x708] sm:$0xff]
    %v372 = vld [vmem:[#allocation5 + $0x710] sm:$0xff]
    %v373 = vld [vmem:[#allocation5 + $0x718] sm:$0xff]
    %v374 = vld [vmem:[#allocation5 + $0x720] sm:$0xff]
    %v375 = vld [vmem:[#allocation5 + $0x728] sm:$0xff]
    %v376 = vld [vmem:[#allocation5 + $0x730] sm:$0xff]
    %v377 = vld [vmem:[#allocation5 + $0x738] sm:$0xff]
    %v378 = vld [vmem:[#allocation5 + $0x740] sm:$0xff]
    %v379 = vld [vmem:[#allocation5 + $0x748] sm:$0xff]
    %v380 = vld [vmem:[#allocation5 + $0x750] sm:$0xff]
    %v381 = vld [vmem:[#allocation5 + $0x758] sm:$0xff]
    %v382 = vld [vmem:[#allocation5 + $0x760] sm:$0xff]
    %v383 = vld [vmem:[#allocation5 + $0x768] sm:$0xff]
    %v384 = vld [vmem:[#allocation5 + $0x770] sm:$0xff]
    %v385 = vld [vmem:[#allocation5 + $0x778] sm:$0xff]
    %v386 = vld [vmem:[#allocation5 + $0x780] sm:$0xff]
    %v387 = vld [vmem:[#allocation5 + $0x788] sm:$0xff]
    %v388 = vld [vmem:[#allocation5 + $0x790] sm:$0xff]
    %v389 = vld [vmem:[#allocation5 + $0x798] sm:$0xff]
    %v390 = vld [vmem:[#allocation5 + $0x7a0] sm:$0xff]
    %v391 = vld [vmem:[#allocation5 + $0x7a8] sm:$0xff]
    %v392 = vld [vmem:[#allocation5 + $0x7b0] sm:$0xff]
    %v393 = vld [vmem:[#allocation5 + $0x7b8] sm:$0xff]
    %v394 = vld [vmem:[#allocation5 + $0x7c0] sm:$0xff]
    %v395 = vld [vmem:[#allocation5 + $0x7c8] sm:$0xff]
    %v396 = vld [vmem:[#allocation5 + $0x7d0] sm:$0xff]
    %v397 = vld [vmem:[#allocation5 + $0x7d8] sm:$0xff]
    %v398 = vld [vmem:[#allocation5 + $0x7e0] sm:$0xff]
    %v399 = vld [vmem:[#allocation5 + $0x7e8] sm:$0xff]
    %v400 = vld [vmem:[#allocation5 + $0x7f0] sm:$0xff]
    %v401 = vld [vmem:[#allocation5 + $0x7f8] sm:$0xff]
    %v402 = vld [vmem:[#allocation5 + $0x800] sm:$0xff]
    %v403 = vld [vmem:[#allocation5 + $0x808] sm:$0xff]
    %v404 = vld [vmem:[#allocation5 + $0x810] sm:$0xff]
    %v405 = vld [vmem:[#allocation5 + $0x818] sm:$0xff]
    %v406 = vld [vmem:[#allocation5 + $0x820] sm:$0xff]
    %v407 = vld [vmem:[#allocation5 + $0x828] sm:$0xff]
    %v408 = vld [vmem:[#allocation5 + $0x830] sm:$0xff]
    %v409 = vld [vmem:[#allocation5 + $0x838] sm:$0xff]
    %v410 = vld [vmem:[#allocation5 + $0x840] sm:$0xff]
    %v411 = vld [vmem:[#allocation5 + $0x848] sm:$0xff]
    %v412 = vld [vmem:[#allocation5 + $0x850] sm:$0xff]
    %v413 = vld [vmem:[#allocation5 + $0x858] sm:$0xff]
    %v414 = vld [vmem:[#allocation5 + $0x860] sm:$0xff]
    %v415 = vld [vmem:[#allocation5 + $0x868] sm:$0xff]
    %v416 = vld [vmem:[#allocation5 + $0x870] sm:$0xff]
    %v417 = vld [vmem:[#allocation5 + $0x878] sm:$0xff]
    %v418 = vld [vmem:[#allocation5 + $0x880] sm:$0xff]
    %v419 = vld [vmem:[#allocation5 + $0x888] sm:$0xff]
    %v420 = vld [vmem:[#allocation5 + $0x890] sm:$0xff]
    %v421 = vld [vmem:[#allocation5 + $0x898] sm:$0xff]
    %v422 = vld [vmem:[#allocation5 + $0x8a0] sm:$0xff]
    %v423 = vld [vmem:[#allocation5 + $0x8a8] sm:$0xff]
    %v424 = vld [vmem:[#allocation5 + $0x8b0] sm:$0xff]
    %v425 = vld [vmem:[#allocation5 + $0x8b8] sm:$0xff]
    %v426 = vld [vmem:[#allocation5 + $0x8c0] sm:$0xff]
    %v427 = vld [vmem:[#allocation5 + $0x8c8] sm:$0xff]
    %v428 = vld [vmem:[#allocation5 + $0x8d0] sm:$0xff]
    %v429 = vld [vmem:[#allocation5 + $0x8d8] sm:$0xff]
    %v430 = vld [vmem:[#allocation5 + $0x8e0] sm:$0xff]
    %v431 = vld [vmem:[#allocation5 + $0x8e8] sm:$0xff]
    %v432 = vld [vmem:[#allocation5 + $0x8f0] sm:$0xff]
    %v433 = vld [vmem:[#allocation5 + $0x8f8] sm:$0xff]
    %v434 = vld [vmem:[#allocation5 + $0x900] sm:$0xff]
    %v435 = vld [vmem:[#allocation5 + $0x908] sm:$0xff]
    %v436 = vld [vmem:[#allocation5 + $0x910] sm:$0xff]
    %v437 = vld [vmem:[#allocation5 + $0x918] sm:$0xff]
    %v438 = vld [vmem:[#allocation5 + $0x920] sm:$0xff]
    %v439 = vld [vmem:[#allocation5 + $0x928] sm:$0xff]
    %v440 = vld [vmem:[#allocation5 + $0x930] sm:$0xff]
    %v441 = vld [vmem:[#allocation5 + $0x938] sm:$0xff]
    %v442 = vld [vmem:[#allocation5 + $0x940] sm:$0xff]
    %v443 = vld [vmem:[#allocation5 + $0x948] sm:$0xff]
    %v444 = vld [vmem:[#allocation5 + $0x950] sm:$0xff]
    %v445 = vld [vmem:[#allocation5 + $0x958] sm:$0xff]
    %v446 = vld [vmem:[#allocation5 + $0x960] sm:$0xff]
    %v447 = vld [vmem:[#allocation5 + $0x968] sm:$0xff]
    %v448 = vld [vmem:[#allocation5 + $0x970] sm:$0xff]
    %v449 = vld [vmem:[#allocation5 + $0x978] sm:$0xff]
    %v450 = vld [vmem:[#allocation5 + $0x980] sm:$0xff]
    %v451 = vld [vmem:[#allocation5 + $0x988] sm:$0xff]
    %v452 = vld [vmem:[#allocation5 + $0x990] sm:$0xff]
    %v453 = vld [vmem:[#allocation5 + $0x998] sm:$0xff]
    %v454 = vld [vmem:[#allocation5 + $0x9a0] sm:$0xff]
    %v455 = vld [vmem:[#allocation5 + $0x9a8] sm:$0xff]
    %v456 = vld [vmem:[#allocation5 + $0x9b0] sm:$0xff]
    %v457 = vld [vmem:[#allocation5 + $0x9b8] sm:$0xff]
    %v458 = vld [vmem:[#allocation5 + $0x9c0] sm:$0xff]
    %v459 = vld [vmem:[#allocation5 + $0x9c8] sm:$0xff]
    %v460 = vld [vmem:[#allocation5 + $0x9d0] sm:$0xff]
    %v461 = vld [vmem:[#allocation5 + $0x9d8] sm:$0xff]
    %v462 = vld [vmem:[#allocation5 + $0x9e0] sm:$0xff]
    %v463 = vld [vmem:[#allocation5 + $0x9e8] sm:$0xff]
    %v464 = vld [vmem:[#allocation5 + $0x9f0] sm:$0xff]
    %v465 = vld [vmem:[#allocation5 + $0x9f8] sm:$0xff]
    %v466 = vld [vmem:[#allocation14] ss:$8 sm:$0xf]
    %v467 = vld [vmem:[#allocation14] ss:$8 sm:$0xf0]
    %v468 = vor.u32 %v466, %v467
    %v470 = vlaneseq
    %v471 = vshrl.u32 %v470, 7
    %v472 = vsub.s32 0, %v471
    %v473 = vrot.slane %v468, %v472
    %v474 = vlaneseq
    %v475 = vshrl.u32 %v474, 7
    %v476 = vsub.s32 1, %v475
    %v477 = vrot.slane %v468, %v476
    %v478 = vlaneseq
    %v479 = vshrl.u32 %v478, 7
    %v480 = vsub.s32 2, %v479
    %v481 = vrot.slane %v468, %v480
    %v482 = vlaneseq
    %v483 = vshrl.u32 %v482, 7
    %v484 = vsub.s32 3, %v483
    %v485 = vrot.slane %v468, %v484
    %v486 = vlaneseq
    %v487 = vshrl.u32 %v486, 7
    %v488 = vsub.s32 4, %v487
    %v489 = vrot.slane %v468, %v488
    %v490 = vlaneseq
    %v491 = vshrl.u32 %v490, 7
    %v492 = vsub.s32 5, %v491
    %v493 = vrot.slane %v468, %v492
    %v494 = vlaneseq
    %v495 = vshrl.u32 %v494, 7
    %v496 = vsub.s32 6, %v495
    %v497 = vrot.slane %v468, %v496
    %v498 = vlaneseq
    %v499 = vshrl.u32 %v498, 7
    %v500 = vsub.s32 7, %v499
    %v501 = vrot.slane %v468, %v500
    %v830 = vunpack.c.l.b16 %v146
    %v831 = vunpack.c.h.b16 %v146
    %v832 = vunpack.c.l.b16 %v147
    %v833 = vunpack.c.h.b16 %v147
    %v834 = vunpack.c.l.b16 %v148
    %v835 = vunpack.c.h.b16 %v148
    %v836 = vunpack.c.l.b16 %v149
    %v837 = vunpack.c.h.b16 %v149
    %v838 = vunpack.c.l.b16 %v150
    %v839 = vunpack.c.h.b16 %v150
    %v840 = vunpack.c.l.b16 %v151
    %v841 = vunpack.c.h.b16 %v151
    %v842 = vunpack.c.l.b16 %v152
    %v843 = vunpack.c.h.b16 %v152
    %v844 = vunpack.c.l.b16 %v153
    %v845 = vunpack.c.h.b16 %v153
    %v846 = vunpack.c.l.b16 %v154
    %v847 = vunpack.c.h.b16 %v154
    %v848 = vunpack.c.l.b16 %v155
    %v849 = vunpack.c.h.b16 %v155
    %v850 = vunpack.c.l.b16 %v156
    %v851 = vunpack.c.h.b16 %v156
    %v852 = vunpack.c.l.b16 %v157
    %v853 = vunpack.c.h.b16 %v157
    %v854 = vunpack.c.l.b16 %v158
    %v855 = vunpack.c.h.b16 %v158
    %v856 = vunpack.c.l.b16 %v159
    %v857 = vunpack.c.h.b16 %v159
    %v858 = vunpack.c.l.b16 %v160
    %v859 = vunpack.c.h.b16 %v160
    %v860 = vunpack.c.l.b16 %v161
    %v861 = vunpack.c.h.b16 %v161
    %v862 = vunpack.c.l.b16 %v162
    %v863 = vunpack.c.h.b16 %v162
    %v864 = vunpack.c.l.b16 %v163
    %v865 = vunpack.c.h.b16 %v163
    %v866 = vunpack.c.l.b16 %v164
    %v867 = vunpack.c.h.b16 %v164
    %v868 = vunpack.c.l.b16 %v165
    %v869 = vunpack.c.h.b16 %v165
    %v870 = vunpack.c.l.b16 %v166
    %v871 = vunpack.c.h.b16 %v166
    %v872 = vunpack.c.l.b16 %v167
    %v873 = vunpack.c.h.b16 %v167
    %v874 = vunpack.c.l.b16 %v168
    %v875 = vunpack.c.h.b16 %v168
    %v876 = vunpack.c.l.b16 %v169
    %v877 = vunpack.c.h.b16 %v169
    %v878 = vunpack.c.l.b16 %v170
    %v879 = vunpack.c.h.b16 %v170
    %v880 = vunpack.c.l.b16 %v171
    %v881 = vunpack.c.h.b16 %v171
    %v882 = vunpack.c.l.b16 %v172
    %v883 = vunpack.c.h.b16 %v172
    %v884 = vunpack.c.l.b16 %v173
    %v885 = vunpack.c.h.b16 %v173
    %v886 = vunpack.c.l.b16 %v174
    %v887 = vunpack.c.h.b16 %v174
    %v888 = vunpack.c.l.b16 %v175
    %v889 = vunpack.c.h.b16 %v175
    %v890 = vunpack.c.l.b16 %v176
    %v891 = vunpack.c.h.b16 %v176
    %v892 = vunpack.c.l.b16 %v177
    %v893 = vunpack.c.h.b16 %v177
    %v894 = vunpack.c.l.b16 %v178
    %v895 = vunpack.c.h.b16 %v178
    %v896 = vunpack.c.l.b16 %v179
    %v897 = vunpack.c.h.b16 %v179
    %v898 = vunpack.c.l.b16 %v180
    %v899 = vunpack.c.h.b16 %v180
    %v900 = vunpack.c.l.b16 %v181
    %v901 = vunpack.c.h.b16 %v181
    %v902 = vunpack.c.l.b16 %v182
    %v903 = vunpack.c.h.b16 %v182
    %v904 = vunpack.c.l.b16 %v183
    %v905 = vunpack.c.h.b16 %v183
    %v906 = vunpack.c.l.b16 %v184
    %v907 = vunpack.c.h.b16 %v184
    %v908 = vunpack.c.l.b16 %v185
    %v909 = vunpack.c.h.b16 %v185
    %v910 = vunpack.c.l.b16 %v186
    %v911 = vunpack.c.h.b16 %v186
    %v912 = vunpack.c.l.b16 %v187
    %v913 = vunpack.c.h.b16 %v187
    %v914 = vunpack.c.l.b16 %v188
    %v915 = vunpack.c.h.b16 %v188
    %v916 = vunpack.c.l.b16 %v189
    %v917 = vunpack.c.h.b16 %v189
    %v918 = vunpack.c.l.b16 %v190
    %v919 = vunpack.c.h.b16 %v190
    %v920 = vunpack.c.l.b16 %v191
    %v921 = vunpack.c.h.b16 %v191
    %v922 = vunpack.c.l.b16 %v192
    %v923 = vunpack.c.h.b16 %v192
    %v924 = vunpack.c.l.b16 %v193
    %v925 = vunpack.c.h.b16 %v193
    %v926 = vunpack.c.l.b16 %v194
    %v927 = vunpack.c.h.b16 %v194
    %v928 = vunpack.c.l.b16 %v195
    %v929 = vunpack.c.h.b16 %v195
    %v930 = vunpack.c.l.b16 %v196
    %v931 = vunpack.c.h.b16 %v196
    %v932 = vunpack.c.l.b16 %v197
    %v933 = vunpack.c.h.b16 %v197
    %v934 = vunpack.c.l.b16 %v198
    %v935 = vunpack.c.h.b16 %v198
    %v936 = vunpack.c.l.b16 %v199
    %v937 = vunpack.c.h.b16 %v199
    %v938 = vunpack.c.l.b16 %v200
    %v939 = vunpack.c.h.b16 %v200
    %v940 = vunpack.c.l.b16 %v201
    %v941 = vunpack.c.h.b16 %v201
    %v942 = vunpack.c.l.b16 %v202
    %v943 = vunpack.c.h.b16 %v202
    %v944 = vunpack.c.l.b16 %v203
    %v945 = vunpack.c.h.b16 %v203
    %v946 = vunpack.c.l.b16 %v204
    %v947 = vunpack.c.h.b16 %v204
    %v948 = vunpack.c.l.b16 %v205
    %v949 = vunpack.c.h.b16 %v205
    %v950 = vunpack.c.l.b16 %v206
    %v951 = vunpack.c.h.b16 %v206
    %v952 = vunpack.c.l.b16 %v207
    %v953 = vunpack.c.h.b16 %v207
    %v954 = vunpack.c.l.b16 %v208
    %v955 = vunpack.c.h.b16 %v208
    %v956 = vunpack.c.l.b16 %v209
    %v957 = vunpack.c.h.b16 %v209
    %v958 = vunpack.c.l.b16 %v210
    %v959 = vunpack.c.h.b16 %v210
    %v960 = vunpack.c.l.b16 %v211
    %v961 = vunpack.c.h.b16 %v211
    %v962 = vunpack.c.l.b16 %v212
    %v963 = vunpack.c.h.b16 %v212
    %v964 = vunpack.c.l.b16 %v213
    %v965 = vunpack.c.h.b16 %v213
    %v966 = vunpack.c.l.b16 %v214
    %v967 = vunpack.c.h.b16 %v214
    %v968 = vunpack.c.l.b16 %v215
    %v969 = vunpack.c.h.b16 %v215
    %v970 = vunpack.c.l.b16 %v216
    %v971 = vunpack.c.h.b16 %v216
    %v972 = vunpack.c.l.b16 %v217
    %v973 = vunpack.c.h.b16 %v217
    %v974 = vunpack.c.l.b16 %v218
    %v975 = vunpack.c.h.b16 %v218
    %v976 = vunpack.c.l.b16 %v219
    %v977 = vunpack.c.h.b16 %v219
    %v978 = vunpack.c.l.b16 %v220
    %v979 = vunpack.c.h.b16 %v220
    %v980 = vunpack.c.l.b16 %v221
    %v981 = vunpack.c.h.b16 %v221
    %v982 = vunpack.c.l.b16 %v222
    %v983 = vunpack.c.h.b16 %v222
    %v984 = vunpack.c.l.b16 %v223
    %v985 = vunpack.c.h.b16 %v223
    %v986 = vunpack.c.l.b16 %v224
    %v987 = vunpack.c.h.b16 %v224
    %v988 = vunpack.c.l.b16 %v225
    %v989 = vunpack.c.h.b16 %v225
    %v990 = vunpack.c.l.b16 %v226
    %v991 = vunpack.c.h.b16 %v226
    %v992 = vunpack.c.l.b16 %v227
    %v993 = vunpack.c.h.b16 %v227
    %v994 = vunpack.c.l.b16 %v228
    %v995 = vunpack.c.h.b16 %v228
    %v996 = vunpack.c.l.b16 %v229
    %v997 = vunpack.c.h.b16 %v229
    %v998 = vunpack.c.l.b16 %v230
    %v999 = vunpack.c.h.b16 %v230
    %v1000 = vunpack.c.l.b16 %v231
    %v1001 = vunpack.c.h.b16 %v231
    %v1002 = vunpack.c.l.b16 %v232
    %v1003 = vunpack.c.h.b16 %v232
    %v1004 = vunpack.c.l.b16 %v233
    %v1005 = vunpack.c.h.b16 %v233
    %v1006 = vunpack.c.l.b16 %v234
    %v1007 = vunpack.c.h.b16 %v234
    %v1008 = vunpack.c.l.b16 %v235
    %v1009 = vunpack.c.h.b16 %v235
    %v1010 = vunpack.c.l.b16 %v236
    %v1011 = vunpack.c.h.b16 %v236
    %v1012 = vunpack.c.l.b16 %v237
    %v1013 = vunpack.c.h.b16 %v237
    %v1014 = vunpack.c.l.b16 %v238
    %v1015 = vunpack.c.h.b16 %v238
    %v1016 = vunpack.c.l.b16 %v239
    %v1017 = vunpack.c.h.b16 %v239
    %v1018 = vunpack.c.l.b16 %v240
    %v1019 = vunpack.c.h.b16 %v240
    %v1020 = vunpack.c.l.b16 %v241
    %v1021 = vunpack.c.h.b16 %v241
    %v1022 = vunpack.c.l.b16 %v242
    %v1023 = vunpack.c.h.b16 %v242
    %v1024 = vunpack.c.l.b16 %v243
    %v1025 = vunpack.c.h.b16 %v243
    %v1026 = vunpack.c.l.b16 %v244
    %v1027 = vunpack.c.h.b16 %v244
    %v1028 = vunpack.c.l.b16 %v245
    %v1029 = vunpack.c.h.b16 %v245
    %v1030 = vunpack.c.l.b16 %v246
    %v1031 = vunpack.c.h.b16 %v246
    %v1032 = vunpack.c.l.b16 %v247
    %v1033 = vunpack.c.h.b16 %v247
    %v1034 = vunpack.c.l.b16 %v248
    %v1035 = vunpack.c.h.b16 %v248
    %v1036 = vunpack.c.l.b16 %v249
    %v1037 = vunpack.c.h.b16 %v249
    %v1038 = vunpack.c.l.b16 %v250
    %v1039 = vunpack.c.h.b16 %v250
    %v1040 = vunpack.c.l.b16 %v251
    %v1041 = vunpack.c.h.b16 %v251
    %v1042 = vunpack.c.l.b16 %v252
    %v1043 = vunpack.c.h.b16 %v252
    %v1044 = vunpack.c.l.b16 %v253
    %v1045 = vunpack.c.h.b16 %v253
    %v1046 = vunpack.c.l.b16 %v254
    %v1047 = vunpack.c.h.b16 %v254
    %v1048 = vunpack.c.l.b16 %v255
    %v1049 = vunpack.c.h.b16 %v255
    %v1050 = vunpack.c.l.b16 %v256
    %v1051 = vunpack.c.h.b16 %v256
    %v1052 = vunpack.c.l.b16 %v257
    %v1053 = vunpack.c.h.b16 %v257
    %v1054 = vunpack.c.l.b16 %v258
    %v1055 = vunpack.c.h.b16 %v258
    %v1056 = vunpack.c.l.b16 %v259
    %v1057 = vunpack.c.h.b16 %v259
    %v1058 = vunpack.c.l.b16 %v260
    %v1059 = vunpack.c.h.b16 %v260
    %v1060 = vunpack.c.l.b16 %v261
    %v1061 = vunpack.c.h.b16 %v261
    %v1062 = vunpack.c.l.b16 %v262
    %v1063 = vunpack.c.h.b16 %v262
    %v1064 = vunpack.c.l.b16 %v263
    %v1065 = vunpack.c.h.b16 %v263
    %v1066 = vunpack.c.l.b16 %v264
    %v1067 = vunpack.c.h.b16 %v264
    %v1068 = vunpack.c.l.b16 %v265
    %v1069 = vunpack.c.h.b16 %v265
    %v1070 = vunpack.c.l.b16 %v266
    %v1071 = vunpack.c.h.b16 %v266
    %v1072 = vunpack.c.l.b16 %v267
    %v1073 = vunpack.c.h.b16 %v267
    %v1074 = vunpack.c.l.b16 %v268
    %v1075 = vunpack.c.h.b16 %v268
    %v1076 = vunpack.c.l.b16 %v269
    %v1077 = vunpack.c.h.b16 %v269
    %v1078 = vunpack.c.l.b16 %v270
    %v1079 = vunpack.c.h.b16 %v270
    %v1080 = vunpack.c.l.b16 %v271
    %v1081 = vunpack.c.h.b16 %v271
    %v1082 = vunpack.c.l.b16 %v272
    %v1083 = vunpack.c.h.b16 %v272
    %v1084 = vunpack.c.l.b16 %v273
    %v1085 = vunpack.c.h.b16 %v273
    %v1086 = vunpack.c.l.b16 %v274
    %v1087 = vunpack.c.h.b16 %v274
    %v1088 = vunpack.c.l.b16 %v275
    %v1089 = vunpack.c.h.b16 %v275
    %v1090 = vunpack.c.l.b16 %v276
    %v1091 = vunpack.c.h.b16 %v276
    %v1092 = vunpack.c.l.b16 %v277
    %v1093 = vunpack.c.h.b16 %v277
    %v1094 = vunpack.c.l.b16 %v278
    %v1095 = vunpack.c.h.b16 %v278
    %v1096 = vunpack.c.l.b16 %v279
    %v1097 = vunpack.c.h.b16 %v279
    %v1098 = vunpack.c.l.b16 %v280
    %v1099 = vunpack.c.h.b16 %v280
    %v1100 = vunpack.c.l.b16 %v281
    %v1101 = vunpack.c.h.b16 %v281
    %v1102 = vunpack.c.l.b16 %v282
    %v1103 = vunpack.c.h.b16 %v282
    %v1104 = vunpack.c.l.b16 %v283
    %v1105 = vunpack.c.h.b16 %v283
    %v1106 = vunpack.c.l.b16 %v284
    %v1107 = vunpack.c.h.b16 %v284
    %v1108 = vunpack.c.l.b16 %v285
    %v1109 = vunpack.c.h.b16 %v285
    %v1110 = vunpack.c.l.b16 %v286
    %v1111 = vunpack.c.h.b16 %v286
    %v1112 = vunpack.c.l.b16 %v287
    %v1113 = vunpack.c.h.b16 %v287
    %v1114 = vunpack.c.l.b16 %v288
    %v1115 = vunpack.c.h.b16 %v288
    %v1116 = vunpack.c.l.b16 %v289
    %v1117 = vunpack.c.h.b16 %v289
    %v1118 = vunpack.c.l.b16 %v290
    %v1119 = vunpack.c.h.b16 %v290
    %v1120 = vunpack.c.l.b16 %v291
    %v1121 = vunpack.c.h.b16 %v291
    %v1122 = vunpack.c.l.b16 %v292
    %v1123 = vunpack.c.h.b16 %v292
    %v1124 = vunpack.c.l.b16 %v293
    %v1125 = vunpack.c.h.b16 %v293
    %v1126 = vunpack.c.l.b16 %v294
    %v1127 = vunpack.c.h.b16 %v294
    %v1128 = vunpack.c.l.b16 %v295
    %v1129 = vunpack.c.h.b16 %v295
    %v1130 = vunpack.c.l.b16 %v296
    %v1131 = vunpack.c.h.b16 %v296
    %v1132 = vunpack.c.l.b16 %v297
    %v1133 = vunpack.c.h.b16 %v297
    %v1134 = vunpack.c.l.b16 %v298
    %v1135 = vunpack.c.h.b16 %v298
    %v1136 = vunpack.c.l.b16 %v299
    %v1137 = vunpack.c.h.b16 %v299
    %v1138 = vunpack.c.l.b16 %v300
    %v1139 = vunpack.c.h.b16 %v300
    %v1140 = vunpack.c.l.b16 %v301
    %v1141 = vunpack.c.h.b16 %v301
    %v1142 = vunpack.c.l.b16 %v302
    %v1143 = vunpack.c.h.b16 %v302
    %v1144 = vunpack.c.l.b16 %v303
    %v1145 = vunpack.c.h.b16 %v303
    %v1146 = vunpack.c.l.b16 %v304
    %v1147 = vunpack.c.h.b16 %v304
    %v1148 = vunpack.c.l.b16 %v305
    %v1149 = vunpack.c.h.b16 %v305
    %v1150 = vunpack.c.l.b16 %v306
    %v1151 = vunpack.c.h.b16 %v306
    %v1152 = vunpack.c.l.b16 %v307
    %v1153 = vunpack.c.h.b16 %v307
    %v1154 = vunpack.c.l.b16 %v308
    %v1155 = vunpack.c.h.b16 %v308
    %v1156 = vunpack.c.l.b16 %v309
    %v1157 = vunpack.c.h.b16 %v309
    %v1158 = vunpack.c.l.b16 %v310
    %v1159 = vunpack.c.h.b16 %v310
    %v1160 = vunpack.c.l.b16 %v311
    %v1161 = vunpack.c.h.b16 %v311
    %v1162 = vunpack.c.l.b16 %v312
    %v1163 = vunpack.c.h.b16 %v312
    %v1164 = vunpack.c.l.b16 %v313
    %v1165 = vunpack.c.h.b16 %v313
    %v1166 = vunpack.c.l.b16 %v314
    %v1167 = vunpack.c.h.b16 %v314
    %v1168 = vunpack.c.l.b16 %v315
    %v1169 = vunpack.c.h.b16 %v315
    %v1170 = vunpack.c.l.b16 %v316
    %v1171 = vunpack.c.h.b16 %v316
    %v1172 = vunpack.c.l.b16 %v317
    %v1173 = vunpack.c.h.b16 %v317
    %v1174 = vunpack.c.l.b16 %v318
    %v1175 = vunpack.c.h.b16 %v318
    %v1176 = vunpack.c.l.b16 %v319
    %v1177 = vunpack.c.h.b16 %v319
    %v1178 = vunpack.c.l.b16 %v320
    %v1179 = vunpack.c.h.b16 %v320
    %v1180 = vunpack.c.l.b16 %v321
    %v1181 = vunpack.c.h.b16 %v321
    %v1182 = vunpack.c.l.b16 %v322
    %v1183 = vunpack.c.h.b16 %v322
    %v1184 = vunpack.c.l.b16 %v323
    %v1185 = vunpack.c.h.b16 %v323
    %v1186 = vunpack.c.l.b16 %v324
    %v1187 = vunpack.c.h.b16 %v324
    %v1188 = vunpack.c.l.b16 %v325
    %v1189 = vunpack.c.h.b16 %v325
    %v1190 = vunpack.c.l.b16 %v326
    %v1191 = vunpack.c.h.b16 %v326
    %v1192 = vunpack.c.l.b16 %v327
    %v1193 = vunpack.c.h.b16 %v327
    %v1194 = vunpack.c.l.b16 %v328
    %v1195 = vunpack.c.h.b16 %v328
    %v1196 = vunpack.c.l.b16 %v329
    %v1197 = vunpack.c.h.b16 %v329
    %v1198 = vunpack.c.l.b16 %v330
    %v1199 = vunpack.c.h.b16 %v330
    %v1200 = vunpack.c.l.b16 %v331
    %v1201 = vunpack.c.h.b16 %v331
    %v1202 = vunpack.c.l.b16 %v332
    %v1203 = vunpack.c.h.b16 %v332
    %v1204 = vunpack.c.l.b16 %v333
    %v1205 = vunpack.c.h.b16 %v333
    %v1206 = vunpack.c.l.b16 %v334
    %v1207 = vunpack.c.h.b16 %v334
    %v1208 = vunpack.c.l.b16 %v335
    %v1209 = vunpack.c.h.b16 %v335
    %v1210 = vunpack.c.l.b16 %v336
    %v1211 = vunpack.c.h.b16 %v336
    %v1212 = vunpack.c.l.b16 %v337
    %v1213 = vunpack.c.h.b16 %v337
    %v1214 = vunpack.c.l.b16 %v338
    %v1215 = vunpack.c.h.b16 %v338
    %v1216 = vunpack.c.l.b16 %v339
    %v1217 = vunpack.c.h.b16 %v339
    %v1218 = vunpack.c.l.b16 %v340
    %v1219 = vunpack.c.h.b16 %v340
    %v1220 = vunpack.c.l.b16 %v341
    %v1221 = vunpack.c.h.b16 %v341
    %v1222 = vunpack.c.l.b16 %v342
    %v1223 = vunpack.c.h.b16 %v342
    %v1224 = vunpack.c.l.b16 %v343
    %v1225 = vunpack.c.h.b16 %v343
    %v1226 = vunpack.c.l.b16 %v344
    %v1227 = vunpack.c.h.b16 %v344
    %v1228 = vunpack.c.l.b16 %v345
    %v1229 = vunpack.c.h.b16 %v345
    %v1230 = vunpack.c.l.b16 %v346
    %v1231 = vunpack.c.h.b16 %v346
    %v1232 = vunpack.c.l.b16 %v347
    %v1233 = vunpack.c.h.b16 %v347
    %v1234 = vunpack.c.l.b16 %v348
    %v1235 = vunpack.c.h.b16 %v348
    %v1236 = vunpack.c.l.b16 %v349
    %v1237 = vunpack.c.h.b16 %v349
    %v1238 = vunpack.c.l.b16 %v350
    %v1239 = vunpack.c.h.b16 %v350
    %v1240 = vunpack.c.l.b16 %v351
    %v1241 = vunpack.c.h.b16 %v351
    %v1242 = vunpack.c.l.b16 %v352
    %v1243 = vunpack.c.h.b16 %v352
    %v1244 = vunpack.c.l.b16 %v353
    %v1245 = vunpack.c.h.b16 %v353
    %v1246 = vunpack.c.l.b16 %v354
    %v1247 = vunpack.c.h.b16 %v354
    %v1248 = vunpack.c.l.b16 %v355
    %v1249 = vunpack.c.h.b16 %v355
    %v1250 = vunpack.c.l.b16 %v356
    %v1251 = vunpack.c.h.b16 %v356
    %v1252 = vunpack.c.l.b16 %v357
    %v1253 = vunpack.c.h.b16 %v357
    %v1254 = vunpack.c.l.b16 %v358
    %v1255 = vunpack.c.h.b16 %v358
    %v1256 = vunpack.c.l.b16 %v359
    %v1257 = vunpack.c.h.b16 %v359
    %v1258 = vunpack.c.l.b16 %v360
    %v1259 = vunpack.c.h.b16 %v360
    %v1260 = vunpack.c.l.b16 %v361
    %v1261 = vunpack.c.h.b16 %v361
    %v1262 = vunpack.c.l.b16 %v362
    %v1263 = vunpack.c.h.b16 %v362
    %v1264 = vunpack.c.l.b16 %v363
    %v1265 = vunpack.c.h.b16 %v363
    %v1266 = vunpack.c.l.b16 %v364
    %v1267 = vunpack.c.h.b16 %v364
    %v1268 = vunpack.c.l.b16 %v365
    %v1269 = vunpack.c.h.b16 %v365
    %v1270 = vunpack.c.l.b16 %v366
    %v1271 = vunpack.c.h.b16 %v366
    %v1272 = vunpack.c.l.b16 %v367
    %v1273 = vunpack.c.h.b16 %v367
    %v1274 = vunpack.c.l.b16 %v368
    %v1275 = vunpack.c.h.b16 %v368
    %v1276 = vunpack.c.l.b16 %v369
    %v1277 = vunpack.c.h.b16 %v369
    %v1278 = vunpack.c.l.b16 %v370
    %v1279 = vunpack.c.h.b16 %v370
    %v1280 = vunpack.c.l.b16 %v371
    %v1281 = vunpack.c.h.b16 %v371
    %v1282 = vunpack.c.l.b16 %v372
    %v1283 = vunpack.c.h.b16 %v372
    %v1284 = vunpack.c.l.b16 %v373
    %v1285 = vunpack.c.h.b16 %v373
    %v1286 = vunpack.c.l.b16 %v374
    %v1287 = vunpack.c.h.b16 %v374
    %v1288 = vunpack.c.l.b16 %v375
    %v1289 = vunpack.c.h.b16 %v375
    %v1290 = vunpack.c.l.b16 %v376
    %v1291 = vunpack.c.h.b16 %v376
    %v1292 = vunpack.c.l.b16 %v377
    %v1293 = vunpack.c.h.b16 %v377
    %v1294 = vunpack.c.l.b16 %v378
    %v1295 = vunpack.c.h.b16 %v378
    %v1296 = vunpack.c.l.b16 %v379
    %v1297 = vunpack.c.h.b16 %v379
    %v1298 = vunpack.c.l.b16 %v380
    %v1299 = vunpack.c.h.b16 %v380
    %v1300 = vunpack.c.l.b16 %v381
    %v1301 = vunpack.c.h.b16 %v381
    %v1302 = vunpack.c.l.b16 %v382
    %v1303 = vunpack.c.h.b16 %v382
    %v1304 = vunpack.c.l.b16 %v383
    %v1305 = vunpack.c.h.b16 %v383
    %v1306 = vunpack.c.l.b16 %v384
    %v1307 = vunpack.c.h.b16 %v384
    %v1308 = vunpack.c.l.b16 %v385
    %v1309 = vunpack.c.h.b16 %v385
    %v1310 = vunpack.c.l.b16 %v386
    %v1311 = vunpack.c.h.b16 %v386
    %v1312 = vunpack.c.l.b16 %v387
    %v1313 = vunpack.c.h.b16 %v387
    %v1314 = vunpack.c.l.b16 %v388
    %v1315 = vunpack.c.h.b16 %v388
    %v1316 = vunpack.c.l.b16 %v389
    %v1317 = vunpack.c.h.b16 %v389
    %v1318 = vunpack.c.l.b16 %v390
    %v1319 = vunpack.c.h.b16 %v390
    %v1320 = vunpack.c.l.b16 %v391
    %v1321 = vunpack.c.h.b16 %v391
    %v1322 = vunpack.c.l.b16 %v392
    %v1323 = vunpack.c.h.b16 %v392
    %v1324 = vunpack.c.l.b16 %v393
    %v1325 = vunpack.c.h.b16 %v393
    %v1326 = vunpack.c.l.b16 %v394
    %v1327 = vunpack.c.h.b16 %v394
    %v1328 = vunpack.c.l.b16 %v395
    %v1329 = vunpack.c.h.b16 %v395
    %v1330 = vunpack.c.l.b16 %v396
    %v1331 = vunpack.c.h.b16 %v396
    %v1332 = vunpack.c.l.b16 %v397
    %v1333 = vunpack.c.h.b16 %v397
    %v1334 = vunpack.c.l.b16 %v398
    %v1335 = vunpack.c.h.b16 %v398
    %v1336 = vunpack.c.l.b16 %v399
    %v1337 = vunpack.c.h.b16 %v399
    %v1338 = vunpack.c.l.b16 %v400
    %v1339 = vunpack.c.h.b16 %v400
    %v1340 = vunpack.c.l.b16 %v401
    %v1341 = vunpack.c.h.b16 %v401
    %v1342 = vunpack.c.l.b16 %v402
    %v1343 = vunpack.c.h.b16 %v402
    %v1344 = vunpack.c.l.b16 %v403
    %v1345 = vunpack.c.h.b16 %v403
    %v1346 = vunpack.c.l.b16 %v404
    %v1347 = vunpack.c.h.b16 %v404
    %v1348 = vunpack.c.l.b16 %v405
    %v1349 = vunpack.c.h.b16 %v405
    %v1350 = vunpack.c.l.b16 %v406
    %v1351 = vunpack.c.h.b16 %v406
    %v1352 = vunpack.c.l.b16 %v407
    %v1353 = vunpack.c.h.b16 %v407
    %v1354 = vunpack.c.l.b16 %v408
    %v1355 = vunpack.c.h.b16 %v408
    %v1356 = vunpack.c.l.b16 %v409
    %v1357 = vunpack.c.h.b16 %v409
    %v1358 = vunpack.c.l.b16 %v410
    %v1359 = vunpack.c.h.b16 %v410
    %v1360 = vunpack.c.l.b16 %v411
    %v1361 = vunpack.c.h.b16 %v411
    %v1362 = vunpack.c.l.b16 %v412
    %v1363 = vunpack.c.h.b16 %v412
    %v1364 = vunpack.c.l.b16 %v413
    %v1365 = vunpack.c.h.b16 %v413
    %v1366 = vunpack.c.l.b16 %v414
    %v1367 = vunpack.c.h.b16 %v414
    %v1368 = vunpack.c.l.b16 %v415
    %v1369 = vunpack.c.h.b16 %v415
    %v1370 = vunpack.c.l.b16 %v416
    %v1371 = vunpack.c.h.b16 %v416
    %v1372 = vunpack.c.l.b16 %v417
    %v1373 = vunpack.c.h.b16 %v417
    %v1374 = vunpack.c.l.b16 %v418
    %v1375 = vunpack.c.h.b16 %v418
    %v1376 = vunpack.c.l.b16 %v419
    %v1377 = vunpack.c.h.b16 %v419
    %v1378 = vunpack.c.l.b16 %v420
    %v1379 = vunpack.c.h.b16 %v420
    %v1380 = vunpack.c.l.b16 %v421
    %v1381 = vunpack.c.h.b16 %v421
    %v1382 = vunpack.c.l.b16 %v422
    %v1383 = vunpack.c.h.b16 %v422
    %v1384 = vunpack.c.l.b16 %v423
    %v1385 = vunpack.c.h.b16 %v423
    %v1386 = vunpack.c.l.b16 %v424
    %v1387 = vunpack.c.h.b16 %v424
    %v1388 = vunpack.c.l.b16 %v425
    %v1389 = vunpack.c.h.b16 %v425
    %v1390 = vunpack.c.l.b16 %v426
    %v1391 = vunpack.c.h.b16 %v426
    %v1392 = vunpack.c.l.b16 %v427
    %v1393 = vunpack.c.h.b16 %v427
    %v1394 = vunpack.c.l.b16 %v428
    %v1395 = vunpack.c.h.b16 %v428
    %v1396 = vunpack.c.l.b16 %v429
    %v1397 = vunpack.c.h.b16 %v429
    %v1398 = vunpack.c.l.b16 %v430
    %v1399 = vunpack.c.h.b16 %v430
    %v1400 = vunpack.c.l.b16 %v431
    %v1401 = vunpack.c.h.b16 %v431
    %v1402 = vunpack.c.l.b16 %v432
    %v1403 = vunpack.c.h.b16 %v432
    %v1404 = vunpack.c.l.b16 %v433
    %v1405 = vunpack.c.h.b16 %v433
    %v1406 = vunpack.c.l.b16 %v434
    %v1407 = vunpack.c.h.b16 %v434
    %v1408 = vunpack.c.l.b16 %v435
    %v1409 = vunpack.c.h.b16 %v435
    %v1410 = vunpack.c.l.b16 %v436
    %v1411 = vunpack.c.h.b16 %v436
    %v1412 = vunpack.c.l.b16 %v437
    %v1413 = vunpack.c.h.b16 %v437
    %v1414 = vunpack.c.l.b16 %v438
    %v1415 = vunpack.c.h.b16 %v438
    %v1416 = vunpack.c.l.b16 %v439
    %v1417 = vunpack.c.h.b16 %v439
    %v1418 = vunpack.c.l.b16 %v440
    %v1419 = vunpack.c.h.b16 %v440
    %v1420 = vunpack.c.l.b16 %v441
    %v1421 = vunpack.c.h.b16 %v441
    %v1422 = vunpack.c.l.b16 %v442
    %v1423 = vunpack.c.h.b16 %v442
    %v1424 = vunpack.c.l.b16 %v443
    %v1425 = vunpack.c.h.b16 %v443
    %v1426 = vunpack.c.l.b16 %v444
    %v1427 = vunpack.c.h.b16 %v444
    %v1428 = vunpack.c.l.b16 %v445
    %v1429 = vunpack.c.h.b16 %v445
    %v1430 = vunpack.c.l.b16 %v446
    %v1431 = vunpack.c.h.b16 %v446
    %v1432 = vunpack.c.l.b16 %v447
    %v1433 = vunpack.c.h.b16 %v447
    %v1434 = vunpack.c.l.b16 %v448
    %v1435 = vunpack.c.h.b16 %v448
    %v1436 = vunpack.c.l.b16 %v449
    %v1437 = vunpack.c.h.b16 %v449
    %v1438 = vunpack.c.l.b16 %v450
    %v1439 = vunpack.c.h.b16 %v450
    %v1440 = vunpack.c.l.b16 %v451
    %v1441 = vunpack.c.h.b16 %v451
    %v1442 = vunpack.c.l.b16 %v452
    %v1443 = vunpack.c.h.b16 %v452
    %v1444 = vunpack.c.l.b16 %v453
    %v1445 = vunpack.c.h.b16 %v453
    %v1446 = vunpack.c.l.b16 %v454
    %v1447 = vunpack.c.h.b16 %v454
    %v1448 = vunpack.c.l.b16 %v455
    %v1449 = vunpack.c.h.b16 %v455
    %v1450 = vunpack.c.l.b16 %v456
    %v1451 = vunpack.c.h.b16 %v456
    %v1452 = vunpack.c.l.b16 %v457
    %v1453 = vunpack.c.h.b16 %v457
    %v1454 = vunpack.c.l.b16 %v458
    %v1455 = vunpack.c.h.b16 %v458
    %v1456 = vunpack.c.l.b16 %v459
    %v1457 = vunpack.c.h.b16 %v459
    %v1458 = vunpack.c.l.b16 %v460
    %v1459 = vunpack.c.h.b16 %v460
    %v1460 = vunpack.c.l.b16 %v461
    %v1461 = vunpack.c.h.b16 %v461
    %v1462 = vunpack.c.l.b16 %v462
    %v1463 = vunpack.c.h.b16 %v462
    %v1464 = vunpack.c.l.b16 %v463
    %v1465 = vunpack.c.h.b16 %v463
    %v1466 = vunpack.c.l.b16 %v464
    %v1467 = vunpack.c.h.b16 %v464
    %v1468 = vunpack.c.l.b16 %v465
    %v1469 = vunpack.c.h.b16 %v465
    %v1470 = vpack.c.b16 %v838, %v830
    %v1471 = vpack.c.b16 %v839, %v831
    %v1472 = vpack.c.b16 %v840, %v832
    %v1473 = vpack.c.b16 %v841, %v833
    %v1474 = vpack.c.b16 %v842, %v834
    %v1475 = vpack.c.b16 %v843, %v835
    %v1476 = vpack.c.b16 %v844, %v836
    %v1477 = vpack.c.b16 %v845, %v837
    %v1478 = vpack.c.b16 %v854, %v846
    %v1479 = vpack.c.b16 %v855, %v847
    %v1480 = vpack.c.b16 %v856, %v848
    %v1481 = vpack.c.b16 %v857, %v849
    %v1482 = vpack.c.b16 %v858, %v850
    %v1483 = vpack.c.b16 %v859, %v851
    %v1484 = vpack.c.b16 %v860, %v852
    %v1485 = vpack.c.b16 %v861, %v853
    %v1486 = vpack.c.b16 %v870, %v862
    %v1487 = vpack.c.b16 %v871, %v863
    %v1488 = vpack.c.b16 %v872, %v864
    %v1489 = vpack.c.b16 %v873, %v865
    %v1490 = vpack.c.b16 %v874, %v866
    %v1491 = vpack.c.b16 %v875, %v867
    %v1492 = vpack.c.b16 %v876, %v868
    %v1493 = vpack.c.b16 %v877, %v869
    %v1494 = vpack.c.b16 %v886, %v878
    %v1495 = vpack.c.b16 %v887, %v879
    %v1496 = vpack.c.b16 %v888, %v880
    %v1497 = vpack.c.b16 %v889, %v881
    %v1498 = vpack.c.b16 %v890, %v882
    %v1499 = vpack.c.b16 %v891, %v883
    %v1500 = vpack.c.b16 %v892, %v884
    %v1501 = vpack.c.b16 %v893, %v885
    %v1502 = vpack.c.b16 %v902, %v894
    %v1503 = vpack.c.b16 %v903, %v895
    %v1504 = vpack.c.b16 %v904, %v896
    %v1505 = vpack.c.b16 %v905, %v897
    %v1506 = vpack.c.b16 %v906, %v898
    %v1507 = vpack.c.b16 %v907, %v899
    %v1508 = vpack.c.b16 %v908, %v900
    %v1509 = vpack.c.b16 %v909, %v901
    %v1510 = vpack.c.b16 %v918, %v910
    %v1511 = vpack.c.b16 %v919, %v911
    %v1512 = vpack.c.b16 %v920, %v912
    %v1513 = vpack.c.b16 %v921, %v913
    %v1514 = vpack.c.b16 %v922, %v914
    %v1515 = vpack.c.b16 %v923, %v915
    %v1516 = vpack.c.b16 %v924, %v916
    %v1517 = vpack.c.b16 %v925, %v917
    %v1518 = vpack.c.b16 %v934, %v926
    %v1519 = vpack.c.b16 %v935, %v927
    %v1520 = vpack.c.b16 %v936, %v928
    %v1521 = vpack.c.b16 %v937, %v929
    %v1522 = vpack.c.b16 %v938, %v930
    %v1523 = vpack.c.b16 %v939, %v931
    %v1524 = vpack.c.b16 %v940, %v932
    %v1525 = vpack.c.b16 %v941, %v933
    %v1526 = vpack.c.b16 %v950, %v942
    %v1527 = vpack.c.b16 %v951, %v943
    %v1528 = vpack.c.b16 %v952, %v944
    %v1529 = vpack.c.b16 %v953, %v945
    %v1530 = vpack.c.b16 %v954, %v946
    %v1531 = vpack.c.b16 %v955, %v947
    %v1532 = vpack.c.b16 %v956, %v948
    %v1533 = vpack.c.b16 %v957, %v949
    %v1534 = vpack.c.b16 %v966, %v958
    %v1535 = vpack.c.b16 %v967, %v959
    %v1536 = vpack.c.b16 %v968, %v960
    %v1537 = vpack.c.b16 %v969, %v961
    %v1538 = vpack.c.b16 %v970, %v962
    %v1539 = vpack.c.b16 %v971, %v963
    %v1540 = vpack.c.b16 %v972, %v964
    %v1541 = vpack.c.b16 %v973, %v965
    %v1542 = vpack.c.b16 %v982, %v974
    %v1543 = vpack.c.b16 %v983, %v975
    %v1544 = vpack.c.b16 %v984, %v976
    %v1545 = vpack.c.b16 %v985, %v977
    %v1546 = vpack.c.b16 %v986, %v978
    %v1547 = vpack.c.b16 %v987, %v979
    %v1548 = vpack.c.b16 %v988, %v980
    %v1549 = vpack.c.b16 %v989, %v981
    %v1550 = vpack.c.b16 %v998, %v990
    %v1551 = vpack.c.b16 %v999, %v991
    %v1552 = vpack.c.b16 %v1000, %v992
    %v1553 = vpack.c.b16 %v1001, %v993
    %v1554 = vpack.c.b16 %v1002, %v994
    %v1555 = vpack.c.b16 %v1003, %v995
    %v1556 = vpack.c.b16 %v1004, %v996
    %v1557 = vpack.c.b16 %v1005, %v997
    %v1558 = vpack.c.b16 %v1014, %v1006
    %v1559 = vpack.c.b16 %v1015, %v1007
    %v1560 = vpack.c.b16 %v1016, %v1008
    %v1561 = vpack.c.b16 %v1017, %v1009
    %v1562 = vpack.c.b16 %v1018, %v1010
    %v1563 = vpack.c.b16 %v1019, %v1011
    %v1564 = vpack.c.b16 %v1020, %v1012
    %v1565 = vpack.c.b16 %v1021, %v1013
    %v1566 = vpack.c.b16 %v1030, %v1022
    %v1567 = vpack.c.b16 %v1031, %v1023
    %v1568 = vpack.c.b16 %v1032, %v1024
    %v1569 = vpack.c.b16 %v1033, %v1025
    %v1570 = vpack.c.b16 %v1034, %v1026
    %v1571 = vpack.c.b16 %v1035, %v1027
    %v1572 = vpack.c.b16 %v1036, %v1028
    %v1573 = vpack.c.b16 %v1037, %v1029
    %v1574 = vpack.c.b16 %v1046, %v1038
    %v1575 = vpack.c.b16 %v1047, %v1039
    %v1576 = vpack.c.b16 %v1048, %v1040
    %v1577 = vpack.c.b16 %v1049, %v1041
    %v1578 = vpack.c.b16 %v1050, %v1042
    %v1579 = vpack.c.b16 %v1051, %v1043
    %v1580 = vpack.c.b16 %v1052, %v1044
    %v1581 = vpack.c.b16 %v1053, %v1045
    %v1582 = vpack.c.b16 %v1062, %v1054
    %v1583 = vpack.c.b16 %v1063, %v1055
    %v1584 = vpack.c.b16 %v1064, %v1056
    %v1585 = vpack.c.b16 %v1065, %v1057
    %v1586 = vpack.c.b16 %v1066, %v1058
    %v1587 = vpack.c.b16 %v1067, %v1059
    %v1588 = vpack.c.b16 %v1068, %v1060
    %v1589 = vpack.c.b16 %v1069, %v1061
    %v1590 = vpack.c.b16 %v1078, %v1070
    %v1591 = vpack.c.b16 %v1079, %v1071
    %v1592 = vpack.c.b16 %v1080, %v1072
    %v1593 = vpack.c.b16 %v1081, %v1073
    %v1594 = vpack.c.b16 %v1082, %v1074
    %v1595 = vpack.c.b16 %v1083, %v1075
    %v1596 = vpack.c.b16 %v1084, %v1076
    %v1597 = vpack.c.b16 %v1085, %v1077
    %v1598 = vpack.c.b16 %v1094, %v1086
    %v1599 = vpack.c.b16 %v1095, %v1087
    %v1600 = vpack.c.b16 %v1096, %v1088
    %v1601 = vpack.c.b16 %v1097, %v1089
    %v1602 = vpack.c.b16 %v1098, %v1090
    %v1603 = vpack.c.b16 %v1099, %v1091
    %v1604 = vpack.c.b16 %v1100, %v1092
    %v1605 = vpack.c.b16 %v1101, %v1093
    %v1606 = vpack.c.b16 %v1110, %v1102
    %v1607 = vpack.c.b16 %v1111, %v1103
    %v1608 = vpack.c.b16 %v1112, %v1104
    %v1609 = vpack.c.b16 %v1113, %v1105
    %v1610 = vpack.c.b16 %v1114, %v1106
    %v1611 = vpack.c.b16 %v1115, %v1107
    %v1612 = vpack.c.b16 %v1116, %v1108
    %v1613 = vpack.c.b16 %v1117, %v1109
    %v1614 = vpack.c.b16 %v1126, %v1118
    %v1615 = vpack.c.b16 %v1127, %v1119
    %v1616 = vpack.c.b16 %v1128, %v1120
    %v1617 = vpack.c.b16 %v1129, %v1121
    %v1618 = vpack.c.b16 %v1130, %v1122
    %v1619 = vpack.c.b16 %v1131, %v1123
    %v1620 = vpack.c.b16 %v1132, %v1124
    %v1621 = vpack.c.b16 %v1133, %v1125
    %v1622 = vpack.c.b16 %v1142, %v1134
    %v1623 = vpack.c.b16 %v1143, %v1135
    %v1624 = vpack.c.b16 %v1144, %v1136
    %v1625 = vpack.c.b16 %v1145, %v1137
    %v1626 = vpack.c.b16 %v1146, %v1138
    %v1627 = vpack.c.b16 %v1147, %v1139
    %v1628 = vpack.c.b16 %v1148, %v1140
    %v1629 = vpack.c.b16 %v1149, %v1141
    %v1630 = vpack.c.b16 %v1158, %v1150
    %v1631 = vpack.c.b16 %v1159, %v1151
    %v1632 = vpack.c.b16 %v1160, %v1152
    %v1633 = vpack.c.b16 %v1161, %v1153
    %v1634 = vpack.c.b16 %v1162, %v1154
    %v1635 = vpack.c.b16 %v1163, %v1155
    %v1636 = vpack.c.b16 %v1164, %v1156
    %v1637 = vpack.c.b16 %v1165, %v1157
    %v1638 = vpack.c.b16 %v1174, %v1166
    %v1639 = vpack.c.b16 %v1175, %v1167
    %v1640 = vpack.c.b16 %v1176, %v1168
    %v1641 = vpack.c.b16 %v1177, %v1169
    %v1642 = vpack.c.b16 %v1178, %v1170
    %v1643 = vpack.c.b16 %v1179, %v1171
    %v1644 = vpack.c.b16 %v1180, %v1172
    %v1645 = vpack.c.b16 %v1181, %v1173
    %v1646 = vpack.c.b16 %v1190, %v1182
    %v1647 = vpack.c.b16 %v1191, %v1183
    %v1648 = vpack.c.b16 %v1192, %v1184
    %v1649 = vpack.c.b16 %v1193, %v1185
    %v1650 = vpack.c.b16 %v1194, %v1186
    %v1651 = vpack.c.b16 %v1195, %v1187
    %v1652 = vpack.c.b16 %v1196, %v1188
    %v1653 = vpack.c.b16 %v1197, %v1189
    %v1654 = vpack.c.b16 %v1206, %v1198
    %v1655 = vpack.c.b16 %v1207, %v1199
    %v1656 = vpack.c.b16 %v1208, %v1200
    %v1657 = vpack.c.b16 %v1209, %v1201
    %v1658 = vpack.c.b16 %v1210, %v1202
    %v1659 = vpack.c.b16 %v1211, %v1203
    %v1660 = vpack.c.b16 %v1212, %v1204
    %v1661 = vpack.c.b16 %v1213, %v1205
    %v1662 = vpack.c.b16 %v1222, %v1214
    %v1663 = vpack.c.b16 %v1223, %v1215
    %v1664 = vpack.c.b16 %v1224, %v1216
    %v1665 = vpack.c.b16 %v1225, %v1217
    %v1666 = vpack.c.b16 %v1226, %v1218
    %v1667 = vpack.c.b16 %v1227, %v1219
    %v1668 = vpack.c.b16 %v1228, %v1220
    %v1669 = vpack.c.b16 %v1229, %v1221
    %v1670 = vpack.c.b16 %v1238, %v1230
    %v1671 = vpack.c.b16 %v1239, %v1231
    %v1672 = vpack.c.b16 %v1240, %v1232
    %v1673 = vpack.c.b16 %v1241, %v1233
    %v1674 = vpack.c.b16 %v1242, %v1234
    %v1675 = vpack.c.b16 %v1243, %v1235
    %v1676 = vpack.c.b16 %v1244, %v1236
    %v1677 = vpack.c.b16 %v1245, %v1237
    %v1678 = vpack.c.b16 %v1254, %v1246
    %v1679 = vpack.c.b16 %v1255, %v1247
    %v1680 = vpack.c.b16 %v1256, %v1248
    %v1681 = vpack.c.b16 %v1257, %v1249
    %v1682 = vpack.c.b16 %v1258, %v1250
    %v1683 = vpack.c.b16 %v1259, %v1251
    %v1684 = vpack.c.b16 %v1260, %v1252
    %v1685 = vpack.c.b16 %v1261, %v1253
    %v1686 = vpack.c.b16 %v1270, %v1262
    %v1687 = vpack.c.b16 %v1271, %v1263
    %v1688 = vpack.c.b16 %v1272, %v1264
    %v1689 = vpack.c.b16 %v1273, %v1265
    %v1690 = vpack.c.b16 %v1274, %v1266
    %v1691 = vpack.c.b16 %v1275, %v1267
    %v1692 = vpack.c.b16 %v1276, %v1268
    %v1693 = vpack.c.b16 %v1277, %v1269
    %v1694 = vpack.c.b16 %v1286, %v1278
    %v1695 = vpack.c.b16 %v1287, %v1279
    %v1696 = vpack.c.b16 %v1288, %v1280
    %v1697 = vpack.c.b16 %v1289, %v1281
    %v1698 = vpack.c.b16 %v1290, %v1282
    %v1699 = vpack.c.b16 %v1291, %v1283
    %v1700 = vpack.c.b16 %v1292, %v1284
    %v1701 = vpack.c.b16 %v1293, %v1285
    %v1702 = vpack.c.b16 %v1302, %v1294
    %v1703 = vpack.c.b16 %v1303, %v1295
    %v1704 = vpack.c.b16 %v1304, %v1296
    %v1705 = vpack.c.b16 %v1305, %v1297
    %v1706 = vpack.c.b16 %v1306, %v1298
    %v1707 = vpack.c.b16 %v1307, %v1299
    %v1708 = vpack.c.b16 %v1308, %v1300
    %v1709 = vpack.c.b16 %v1309, %v1301
    %v1710 = vpack.c.b16 %v1318, %v1310
    %v1711 = vpack.c.b16 %v1319, %v1311
    %v1712 = vpack.c.b16 %v1320, %v1312
    %v1713 = vpack.c.b16 %v1321, %v1313
    %v1714 = vpack.c.b16 %v1322, %v1314
    %v1715 = vpack.c.b16 %v1323, %v1315
    %v1716 = vpack.c.b16 %v1324, %v1316
    %v1717 = vpack.c.b16 %v1325, %v1317
    %v1718 = vpack.c.b16 %v1334, %v1326
    %v1719 = vpack.c.b16 %v1335, %v1327
    %v1720 = vpack.c.b16 %v1336, %v1328
    %v1721 = vpack.c.b16 %v1337, %v1329
    %v1722 = vpack.c.b16 %v1338, %v1330
    %v1723 = vpack.c.b16 %v1339, %v1331
    %v1724 = vpack.c.b16 %v1340, %v1332
    %v1725 = vpack.c.b16 %v1341, %v1333
    %v1726 = vpack.c.b16 %v1350, %v1342
    %v1727 = vpack.c.b16 %v1351, %v1343
    %v1728 = vpack.c.b16 %v1352, %v1344
    %v1729 = vpack.c.b16 %v1353, %v1345
    %v1730 = vpack.c.b16 %v1354, %v1346
    %v1731 = vpack.c.b16 %v1355, %v1347
    %v1732 = vpack.c.b16 %v1356, %v1348
    %v1733 = vpack.c.b16 %v1357, %v1349
    %v1734 = vpack.c.b16 %v1366, %v1358
    %v1735 = vpack.c.b16 %v1367, %v1359
    %v1736 = vpack.c.b16 %v1368, %v1360
    %v1737 = vpack.c.b16 %v1369, %v1361
    %v1738 = vpack.c.b16 %v1370, %v1362
    %v1739 = vpack.c.b16 %v1371, %v1363
    %v1740 = vpack.c.b16 %v1372, %v1364
    %v1741 = vpack.c.b16 %v1373, %v1365
    %v1742 = vpack.c.b16 %v1382, %v1374
    %v1743 = vpack.c.b16 %v1383, %v1375
    %v1744 = vpack.c.b16 %v1384, %v1376
    %v1745 = vpack.c.b16 %v1385, %v1377
    %v1746 = vpack.c.b16 %v1386, %v1378
    %v1747 = vpack.c.b16 %v1387, %v1379
    %v1748 = vpack.c.b16 %v1388, %v1380
    %v1749 = vpack.c.b16 %v1389, %v1381
    %v1750 = vpack.c.b16 %v1398, %v1390
    %v1751 = vpack.c.b16 %v1399, %v1391
    %v1752 = vpack.c.b16 %v1400, %v1392
    %v1753 = vpack.c.b16 %v1401, %v1393
    %v1754 = vpack.c.b16 %v1402, %v1394
    %v1755 = vpack.c.b16 %v1403, %v1395
    %v1756 = vpack.c.b16 %v1404, %v1396
    %v1757 = vpack.c.b16 %v1405, %v1397
    %v1758 = vpack.c.b16 %v1414, %v1406
    %v1759 = vpack.c.b16 %v1415, %v1407
    %v1760 = vpack.c.b16 %v1416, %v1408
    %v1761 = vpack.c.b16 %v1417, %v1409
    %v1762 = vpack.c.b16 %v1418, %v1410
    %v1763 = vpack.c.b16 %v1419, %v1411
    %v1764 = vpack.c.b16 %v1420, %v1412
    %v1765 = vpack.c.b16 %v1421, %v1413
    %v1766 = vpack.c.b16 %v1430, %v1422
    %v1767 = vpack.c.b16 %v1431, %v1423
    %v1768 = vpack.c.b16 %v1432, %v1424
    %v1769 = vpack.c.b16 %v1433, %v1425
    %v1770 = vpack.c.b16 %v1434, %v1426
    %v1771 = vpack.c.b16 %v1435, %v1427
    %v1772 = vpack.c.b16 %v1436, %v1428
    %v1773 = vpack.c.b16 %v1437, %v1429
    %v1774 = vpack.c.b16 %v1446, %v1438
    %v1775 = vpack.c.b16 %v1447, %v1439
    %v1776 = vpack.c.b16 %v1448, %v1440
    %v1777 = vpack.c.b16 %v1449, %v1441
    %v1778 = vpack.c.b16 %v1450, %v1442
    %v1779 = vpack.c.b16 %v1451, %v1443
    %v1780 = vpack.c.b16 %v1452, %v1444
    %v1781 = vpack.c.b16 %v1453, %v1445
    %v1782 = vpack.c.b16 %v1462, %v1454
    %v1783 = vpack.c.b16 %v1463, %v1455
    %v1784 = vpack.c.b16 %v1464, %v1456
    %v1785 = vpack.c.b16 %v1465, %v1457
    %v1786 = vpack.c.b16 %v1466, %v1458
    %v1787 = vpack.c.b16 %v1467, %v1459
    %v1788 = vpack.c.b16 %v1468, %v1460
    %v1789 = vpack.c.b16 %v1469, %v1461
    %2110 = vmatprep.subr.bf16.mxu0 %v1527
    %2111 = vmatpush1.bf16.msra.mxu0 %v1526
    %2112 = vmatprep.subr.bf16.mxu0 %v1519
    %2113 = vmatpush1.bf16.msra.mxu0 %v1518
    %2114 = vmatprep.subr.bf16.mxu0 %v1511
    %2115 = vmatpush1.bf16.msra.mxu0 %v1510
    %2116 = vmatprep.subr.bf16.mxu0 %v1503
    %2117 = vmatpush1.bf16.msra.mxu0 %v1502
    %2118 = vmatprep.subr.bf16.mxu0 %v1495
    %2119 = vmatpush1.bf16.msra.mxu0 %v1494
    %2120 = vmatprep.subr.bf16.mxu0 %v1487
    %2121 = vmatpush1.bf16.msra.mxu0 %v1486
    %2122 = vmatprep.subr.bf16.mxu0 %v1479
    %2123 = vmatpush1.bf16.msra.mxu0 %v1478
    %2124 = vmatprep.subr.bf16.mxu0 %v1471
    %2125 = vmatpush1.bf16.msra.mxu0 %v1470
    %2126 = vmatprep.subr.bf16.mxu0 %v1591
    %2127 = vmatpush2.bf16.msra.mxu0 %v1590
    %2128 = vmatprep.subr.bf16.mxu0 %v1583
    %2129 = vmatpush2.bf16.msra.mxu0 %v1582
    %2130 = vmatprep.subr.bf16.mxu0 %v1575
    %2131 = vmatpush2.bf16.msra.mxu0 %v1574
    %2132 = vmatprep.subr.bf16.mxu0 %v1567
    %2133 = vmatpush2.bf16.msra.mxu0 %v1566
    %2134 = vmatprep.subr.bf16.mxu0 %v1559
    %2135 = vmatpush2.bf16.msra.mxu0 %v1558
    %2136 = vmatprep.subr.bf16.mxu0 %v1551
    %2137 = vmatpush2.bf16.msra.mxu0 %v1550
    %2138 = vmatprep.subr.bf16.mxu0 %v1543
    %2139 = vmatpush2.bf16.msra.mxu0 %v1542
    %2140 = vmatprep.subr.bf16.mxu0 %v1535
    %2141 = vmatpush2.bf16.msra.mxu0 %v1534
    %2142 = vmatprep.mubr.bf16.mxu0 %v142
    %2143 = vmatmul.mubr.bf16.gmra.mxu0 %v141
    %v2144 = vpop.f32.mrf.mxu0
    %v2145 = vadd.f32 %v473, %v2144
    %v2146 = vpop.f32.mrf.mxu0
    %v2147 = vadd.f32 %v477, %v2146
    %v2148 = vpop.f32.mrf.mxu0
    %v2149 = vpop.f32.mrf.mxu0
    %2150 = vdwg.mxu0
    %2151 = vmatprep.subr.bf16.mxu0 %v1655
    %2152 = vmatpush1.bf16.msra.mxu0 %v1654
    %2153 = vmatprep.subr.bf16.mxu0 %v1647
    %2154 = vmatpush1.bf16.msra.mxu0 %v1646
    %2155 = vmatprep.subr.bf16.mxu0 %v1639
    %2156 = vmatpush1.bf16.msra.mxu0 %v1638
    %2157 = vmatprep.subr.bf16.mxu0 %v1631
    %2158 = vmatpush1.bf16.msra.mxu0 %v1630
    %2159 = vmatprep.subr.bf16.mxu0 %v1623
    %2160 = vmatpush1.bf16.msra.mxu0 %v1622
    %2161 = vmatprep.subr.bf16.mxu0 %v1615
    %2162 = vmatpush1.bf16.msra.mxu0 %v1614
    %2163 = vmatprep.subr.bf16.mxu0 %v1607
    %2164 = vmatpush1.bf16.msra.mxu0 %v1606
    %2165 = vmatprep.subr.bf16.mxu0 %v1599
    %2166 = vmatpush1.bf16.msra.mxu0 %v1598
    %2167 = vmatprep.subr.bf16.mxu0 %v1719
    %2168 = vmatpush2.bf16.msra.mxu0 %v1718
    %2169 = vmatprep.subr.bf16.mxu0 %v1711
    %2170 = vmatpush2.bf16.msra.mxu0 %v1710
    %2171 = vmatprep.subr.bf16.mxu0 %v1703
    %2172 = vmatpush2.bf16.msra.mxu0 %v1702
    %2173 = vmatprep.subr.bf16.mxu0 %v1695
    %2174 = vmatpush2.bf16.msra.mxu0 %v1694
    %2175 = vmatprep.subr.bf16.mxu0 %v1687
    %2176 = vmatpush2.bf16.msra.mxu0 %v1686
    %2177 = vmatprep.subr.bf16.mxu0 %v1679
    %2178 = vmatpush2.bf16.msra.mxu0 %v1678
    %2179 = vmatprep.subr.bf16.mxu0 %v1671
    %2180 = vmatpush2.bf16.msra.mxu0 %v1670
    %2181 = vmatprep.subr.bf16.mxu0 %v1663
    %2182 = vmatpush2.bf16.msra.mxu0 %v1662
    %2183 = vmatprep.mubr.bf16.mxu0 %v144
    %2184 = vmatmul.mubr.bf16.gmra.mxu0 %v143
    %v2185 = vpop.f32.mrf.mxu0
    %v2186 = vadd.f32 %v2145, %v2185
    %v2187 = vpop.f32.mrf.mxu0
    %v2188 = vadd.f32 %v2147, %v2187
    %v2189 = vpop.f32.mrf.mxu0
    %v2190 = vpop.f32.mrf.mxu0
    %2191 = vdwg.mxu0
    %2192 = vmatprep.subr.bf16.mxu0 %v1783
    %2193 = vmatpush1.bf16.msra.mxu0 %v1782
    %2194 = vmatprep.subr.bf16.mxu0 %v1775
    %2195 = vmatpush1.bf16.msra.mxu0 %v1774
    %2196 = vmatprep.subr.bf16.mxu0 %v1767
    %2197 = vmatpush1.bf16.msra.mxu0 %v1766
    %2198 = vmatprep.subr.bf16.mxu0 %v1759
    %2199 = vmatpush1.bf16.msra.mxu0 %v1758
    %2200 = vmatprep.subr.bf16.mxu0 %v1751
    %2201 = vmatpush1.bf16.msra.mxu0 %v1750
    %2202 = vmatprep.subr.bf16.mxu0 %v1743
    %2203 = vmatpush1.bf16.msra.mxu0 %v1742
    %2204 = vmatprep.subr.bf16.mxu0 %v1735
    %2205 = vmatpush1.bf16.msra.mxu0 %v1734
    %2206 = vmatprep.subr.bf16.mxu0 %v1727
    %2207 = vmatpush1.bf16.msra.mxu0 %v1726
    %2208 = vmatprep.subr.bf16.mxu0 0
    %2209 = vmatpush2.bf16.msra.mxu0 0
    %2210 = vmatprep.subr.bf16.mxu0 0
    %2211 = vmatpush2.bf16.msra.mxu0 0
    %2212 = vmatprep.subr.bf16.mxu0 0
    %2213 = vmatpush2.bf16.msra.mxu0 0
    %2214 = vmatprep.subr.bf16.mxu0 0
    %2215 = vmatpush2.bf16.msra.mxu0 0
    %2216 = vmatprep.subr.bf16.mxu0 0
    %2217 = vmatpush2.bf16.msra.mxu0 0
    %2218 = vmatprep.subr.bf16.mxu0 0
    %2219 = vmatpush2.bf16.msra.mxu0 0
    %2220 = vmatprep.subr.bf16.mxu0 0
    %2221 = vmatpush2.bf16.msra.mxu0 0
    %2222 = vmatprep.subr.bf16.mxu0 0
    %2223 = vmatpush2.bf16.msra.mxu0 0
    %2224 = vmatprep.mubr.bf16.mxu0 0
    %2225 = vmatmul.mubr.bf16.gmra.mxu0 %v145
    %v2226 = vpop.f32.mrf.mxu0
    %v2227 = vadd.f32 %v2186, %v2226
    %v2228 = vpop.f32.mrf.mxu0
    %v2229 = vadd.f32 %v2188, %v2228
    %v2230 = vpop.f32.mrf.mxu0
    %v2231 = vpop.f32.mrf.mxu0
    %2232 = vdwg.mxu0
    %2233 = vmatprep.subr.bf16.mxu0 %v1529
    %2234 = vmatpush1.bf16.msra.mxu0 %v1528
    %2235 = vmatprep.subr.bf16.mxu0 %v1521
    %2236 = vmatpush1.bf16.msra.mxu0 %v1520
    %2237 = vmatprep.subr.bf16.mxu0 %v1513
    %2238 = vmatpush1.bf16.msra.mxu0 %v1512
    %2239 = vmatprep.subr.bf16.mxu0 %v1505
    %2240 = vmatpush1.bf16.msra.mxu0 %v1504
    %2241 = vmatprep.subr.bf16.mxu0 %v1497
    %2242 = vmatpush1.bf16.msra.mxu0 %v1496
    %2243 = vmatprep.subr.bf16.mxu0 %v1489
    %2244 = vmatpush1.bf16.msra.mxu0 %v1488
    %2245 = vmatprep.subr.bf16.mxu0 %v1481
    %2246 = vmatpush1.bf16.msra.mxu0 %v1480
    %2247 = vmatprep.subr.bf16.mxu0 %v1473
    %2248 = vmatpush1.bf16.msra.mxu0 %v1472
    %2249 = vmatprep.subr.bf16.mxu0 %v1593
    %2250 = vmatpush2.bf16.msra.mxu0 %v1592
    %2251 = vmatprep.subr.bf16.mxu0 %v1585
    %2252 = vmatpush2.bf16.msra.mxu0 %v1584
    %2253 = vmatprep.subr.bf16.mxu0 %v1577
    %2254 = vmatpush2.bf16.msra.mxu0 %v1576
    %2255 = vmatprep.subr.bf16.mxu0 %v1569
    %2256 = vmatpush2.bf16.msra.mxu0 %v1568
    %2257 = vmatprep.subr.bf16.mxu0 %v1561
    %2258 = vmatpush2.bf16.msra.mxu0 %v1560
    %2259 = vmatprep.subr.bf16.mxu0 %v1553
    %2260 = vmatpush2.bf16.msra.mxu0 %v1552
    %2261 = vmatprep.subr.bf16.mxu0 %v1545
    %2262 = vmatpush2.bf16.msra.mxu0 %v1544
    %2263 = vmatprep.subr.bf16.mxu0 %v1537
    %2264 = vmatpush2.bf16.msra.mxu0 %v1536
    %2265 = vmatprep.mubr.bf16.mxu0 %v142
    %2266 = vmatmul.mubr.bf16.gmra.mxu0 %v141
    %v2267 = vpop.f32.mrf.mxu0
    %v2268 = vadd.f32 %v481, %v2267
    %v2269 = vpop.f32.mrf.mxu0
    %v2270 = vadd.f32 %v485, %v2269
    %v2271 = vpop.f32.mrf.mxu0
    %v2272 = vpop.f32.mrf.mxu0
    %2273 = vdwg.mxu0
    %2274 = vmatprep.subr.bf16.mxu0 %v1657
    %2275 = vmatpush1.bf16.msra.mxu0 %v1656
    %2276 = vmatprep.subr.bf16.mxu0 %v1649
    %2277 = vmatpush1.bf16.msra.mxu0 %v1648
    %2278 = vmatprep.subr.bf16.mxu0 %v1641
    %2279 = vmatpush1.bf16.msra.mxu0 %v1640
    %2280 = vmatprep.subr.bf16.mxu0 %v1633
    %2281 = vmatpush1.bf16.msra.mxu0 %v1632
    %2282 = vmatprep.subr.bf16.mxu0 %v1625
    %2283 = vmatpush1.bf16.msra.mxu0 %v1624
    %2284 = vmatprep.subr.bf16.mxu0 %v1617
    %2285 = vmatpush1.bf16.msra.mxu0 %v1616
    %2286 = vmatprep.subr.bf16.mxu0 %v1609
    %2287 = vmatpush1.bf16.msra.mxu0 %v1608
    %2288 = vmatprep.subr.bf16.mxu0 %v1601
    %2289 = vmatpush1.bf16.msra.mxu0 %v1600
    %2290 = vmatprep.subr.bf16.mxu0 %v1721
    %2291 = vmatpush2.bf16.msra.mxu0 %v1720
    %2292 = vmatprep.subr.bf16.mxu0 %v1713
    %2293 = vmatpush2.bf16.msra.mxu0 %v1712
    %2294 = vmatprep.subr.bf16.mxu0 %v1705
    %2295 = vmatpush2.bf16.msra.mxu0 %v1704
    %2296 = vmatprep.subr.bf16.mxu0 %v1697
    %2297 = vmatpush2.bf16.msra.mxu0 %v1696
    %2298 = vmatprep.subr.bf16.mxu0 %v1689
    %2299 = vmatpush2.bf16.msra.mxu0 %v1688
    %2300 = vmatprep.subr.bf16.mxu0 %v1681
    %2301 = vmatpush2.bf16.msra.mxu0 %v1680
    %2302 = vmatprep.subr.bf16.mxu0 %v1673
    %2303 = vmatpush2.bf16.msra.mxu0 %v1672
    %2304 = vmatprep.subr.bf16.mxu0 %v1665
    %2305 = vmatpush2.bf16.msra.mxu0 %v1664
    %2306 = vmatprep.mubr.bf16.mxu0 %v144
    %2307 = vmatmul.mubr.bf16.gmra.mxu0 %v143
    %v2308 = vpop.f32.mrf.mxu0
    %v2309 = vadd.f32 %v2268, %v2308
    %v2310 = vpop.f32.mrf.mxu0
    %v2311 = vadd.f32 %v2270, %v2310
    %v2312 = vpop.f32.mrf.mxu0
    %v2313 = vpop.f32.mrf.mxu0
    %2314 = vdwg.mxu0
    %2315 = vmatprep.subr.bf16.mxu0 %v1785
    %2316 = vmatpush1.bf16.msra.mxu0 %v1784
    %2317 = vmatprep.subr.bf16.mxu0 %v1777
    %2318 = vmatpush1.bf16.msra.mxu0 %v1776
    %2319 = vmatprep.subr.bf16.mxu0 %v1769
    %2320 = vmatpush1.bf16.msra.mxu0 %v1768
    %2321 = vmatprep.subr.bf16.mxu0 %v1761
    %2322 = vmatpush1.bf16.msra.mxu0 %v1760
    %2323 = vmatprep.subr.bf16.mxu0 %v1753
    %2324 = vmatpush1.bf16.msra.mxu0 %v1752
    %2325 = vmatprep.subr.bf16.mxu0 %v1745
    %2326 = vmatpush1.bf16.msra.mxu0 %v1744
    %2327 = vmatprep.subr.bf16.mxu0 %v1737
    %2328 = vmatpush1.bf16.msra.mxu0 %v1736
    %2329 = vmatprep.subr.bf16.mxu0 %v1729
    %2330 = vmatpush1.bf16.msra.mxu0 %v1728
    %2331 = vmatprep.subr.bf16.mxu0 0
    %2332 = vmatpush2.bf16.msra.mxu0 0
    %2333 = vmatprep.subr.bf16.mxu0 0
    %2334 = vmatpush2.bf16.msra.mxu0 0
    %2335 = vmatprep.subr.bf16.mxu0 0
    %2336 = vmatpush2.bf16.msra.mxu0 0
    %2337 = vmatprep.subr.bf16.mxu0 0
    %2338 = vmatpush2.bf16.msra.mxu0 0
    %2339 = vmatprep.subr.bf16.mxu0 0
    %2340 = vmatpush2.bf16.msra.mxu0 0
    %2341 = vmatprep.subr.bf16.mxu0 0
    %2342 = vmatpush2.bf16.msra.mxu0 0
    %2343 = vmatprep.subr.bf16.mxu0 0
    %2344 = vmatpush2.bf16.msra.mxu0 0
    %2345 = vmatprep.subr.bf16.mxu0 0
    %2346 = vmatpush2.bf16.msra.mxu0 0
    %2347 = vmatprep.mubr.bf16.mxu0 0
    %2348 = vmatmul.mubr.bf16.gmra.mxu0 %v145
    %v2349 = vpop.f32.mrf.mxu0
    %v2350 = vadd.f32 %v2309, %v2349
    %v2351 = vpop.f32.mrf.mxu0
    %v2352 = vadd.f32 %v2311, %v2351
    %v2353 = vpop.f32.mrf.mxu0
    %v2354 = vpop.f32.mrf.mxu0
    %2355 = vdwg.mxu0
    %2356 = vmatprep.subr.bf16.mxu0 %v1531
    %2357 = vmatpush1.bf16.msra.mxu0 %v1530
    %2358 = vmatprep.subr.bf16.mxu0 %v1523
    %2359 = vmatpush1.bf16.msra.mxu0 %v1522
    %2360 = vmatprep.subr.bf16.mxu0 %v1515
    %2361 = vmatpush1.bf16.msra.mxu0 %v1514
    %2362 = vmatprep.subr.bf16.mxu0 %v1507
    %2363 = vmatpush1.bf16.msra.mxu0 %v1506
    %2364 = vmatprep.subr.bf16.mxu0 %v1499
    %2365 = vmatpush1.bf16.msra.mxu0 %v1498
    %2366 = vmatprep.subr.bf16.mxu0 %v1491
    %2367 = vmatpush1.bf16.msra.mxu0 %v1490
    %2368 = vmatprep.subr.bf16.mxu0 %v1483
    %2369 = vmatpush1.bf16.msra.mxu0 %v1482
    %2370 = vmatprep.subr.bf16.mxu0 %v1475
    %2371 = vmatpush1.bf16.msra.mxu0 %v1474
    %2372 = vmatprep.subr.bf16.mxu0 %v1595
    %2373 = vmatpush2.bf16.msra.mxu0 %v1594
    %2374 = vmatprep.subr.bf16.mxu0 %v1587
    %2375 = vmatpush2.bf16.msra.mxu0 %v1586
    %2376 = vmatprep.subr.bf16.mxu0 %v1579
    %2377 = vmatpush2.bf16.msra.mxu0 %v1578
    %2378 = vmatprep.subr.bf16.mxu0 %v1571
    %2379 = vmatpush2.bf16.msra.mxu0 %v1570
    %2380 = vmatprep.subr.bf16.mxu0 %v1563
    %2381 = vmatpush2.bf16.msra.mxu0 %v1562
    %2382 = vmatprep.subr.bf16.mxu0 %v1555
    %2383 = vmatpush2.bf16.msra.mxu0 %v1554
    %2384 = vmatprep.subr.bf16.mxu0 %v1547
    %2385 = vmatpush2.bf16.msra.mxu0 %v1546
    %2386 = vmatprep.subr.bf16.mxu0 %v1539
    %2387 = vmatpush2.bf16.msra.mxu0 %v1538
    %2388 = vmatprep.mubr.bf16.mxu0 %v142
    %2389 = vmatmul.mubr.bf16.gmra.mxu0 %v141
    %v2390 = vpop.f32.mrf.mxu0
    %v2391 = vadd.f32 %v489, %v2390
    %v2392 = vpop.f32.mrf.mxu0
    %v2393 = vadd.f32 %v493, %v2392
    %v2394 = vpop.f32.mrf.mxu0
    %v2395 = vpop.f32.mrf.mxu0
    %2396 = vdwg.mxu0
    %2397 = vmatprep.subr.bf16.mxu0 %v1659
    %2398 = vmatpush1.bf16.msra.mxu0 %v1658
    %2399 = vmatprep.subr.bf16.mxu0 %v1651
    %2400 = vmatpush1.bf16.msra.mxu0 %v1650
    %2401 = vmatprep.subr.bf16.mxu0 %v1643
    %2402 = vmatpush1.bf16.msra.mxu0 %v1642
    %2403 = vmatprep.subr.bf16.mxu0 %v1635
    %2404 = vmatpush1.bf16.msra.mxu0 %v1634
    %2405 = vmatprep.subr.bf16.mxu0 %v1627
    %2406 = vmatpush1.bf16.msra.mxu0 %v1626
    %2407 = vmatprep.subr.bf16.mxu0 %v1619
    %2408 = vmatpush1.bf16.msra.mxu0 %v1618
    %2409 = vmatprep.subr.bf16.mxu0 %v1611
    %2410 = vmatpush1.bf16.msra.mxu0 %v1610
    %2411 = vmatprep.subr.bf16.mxu0 %v1603
    %2412 = vmatpush1.bf16.msra.mxu0 %v1602
    %2413 = vmatprep.subr.bf16.mxu0 %v1723
    %2414 = vmatpush2.bf16.msra.mxu0 %v1722
    %2415 = vmatprep.subr.bf16.mxu0 %v1715
    %2416 = vmatpush2.bf16.msra.mxu0 %v1714
    %2417 = vmatprep.subr.bf16.mxu0 %v1707
    %2418 = vmatpush2.bf16.msra.mxu0 %v1706
    %2419 = vmatprep.subr.bf16.mxu0 %v1699
    %2420 = vmatpush2.bf16.msra.mxu0 %v1698
    %2421 = vmatprep.subr.bf16.mxu0 %v1691
    %2422 = vmatpush2.bf16.msra.mxu0 %v1690
    %2423 = vmatprep.subr.bf16.mxu0 %v1683
    %2424 = vmatpush2.bf16.msra.mxu0 %v1682
    %2425 = vmatprep.subr.bf16.mxu0 %v1675
    %2426 = vmatpush2.bf16.msra.mxu0 %v1674
    %2427 = vmatprep.subr.bf16.mxu0 %v1667
    %2428 = vmatpush2.bf16.msra.mxu0 %v1666
    %2429 = vmatprep.mubr.bf16.mxu0 %v144
    %2430 = vmatmul.mubr.bf16.gmra.mxu0 %v143
    %v2431 = vpop.f32.mrf.mxu0
    %v2432 = vadd.f32 %v2391, %v2431
    %v2433 = vpop.f32.mrf.mxu0
    %v2434 = vadd.f32 %v2393, %v2433
    %v2435 = vpop.f32.mrf.mxu0
    %v2436 = vpop.f32.mrf.mxu0
    %2437 = vdwg.mxu0
    %2438 = vmatprep.subr.bf16.mxu0 %v1787
    %2439 = vmatpush1.bf16.msra.mxu0 %v1786
    %2440 = vmatprep.subr.bf16.mxu0 %v1779
    %2441 = vmatpush1.bf16.msra.mxu0 %v1778
    %2442 = vmatprep.subr.bf16.mxu0 %v1771
    %2443 = vmatpush1.bf16.msra.mxu0 %v1770
    %2444 = vmatprep.subr.bf16.mxu0 %v1763
    %2445 = vmatpush1.bf16.msra.mxu0 %v1762
    %2446 = vmatprep.subr.bf16.mxu0 %v1755
    %2447 = vmatpush1.bf16.msra.mxu0 %v1754
    %2448 = vmatprep.subr.bf16.mxu0 %v1747
    %2449 = vmatpush1.bf16.msra.mxu0 %v1746
    %2450 = vmatprep.subr.bf16.mxu0 %v1739
    %2451 = vmatpush1.bf16.msra.mxu0 %v1738
    %2452 = vmatprep.subr.bf16.mxu0 %v1731
    %2453 = vmatpush1.bf16.msra.mxu0 %v1730
    %2454 = vmatprep.subr.bf16.mxu0 0
    %2455 = vmatpush2.bf16.msra.mxu0 0
    %2456 = vmatprep.subr.bf16.mxu0 0
    %2457 = vmatpush2.bf16.msra.mxu0 0
    %2458 = vmatprep.subr.bf16.mxu0 0
    %2459 = vmatpush2.bf16.msra.mxu0 0
    %2460 = vmatprep.subr.bf16.mxu0 0
    %2461 = vmatpush2.bf16.msra.mxu0 0
    %2462 = vmatprep.subr.bf16.mxu0 0
    %2463 = vmatpush2.bf16.msra.mxu0 0
    %2464 = vmatprep.subr.bf16.mxu0 0
    %2465 = vmatpush2.bf16.msra.mxu0 0
    %2466 = vmatprep.subr.bf16.mxu0 0
    %2467 = vmatpush2.bf16.msra.mxu0 0
    %2468 = vmatprep.subr.bf16.mxu0 0
    %2469 = vmatpush2.bf16.msra.mxu0 0
    %2470 = vmatprep.mubr.bf16.mxu0 0
    %2471 = vmatmul.mubr.bf16.gmra.mxu0 %v145
    %v2472 = vpop.f32.mrf.mxu0
    %v2473 = vadd.f32 %v2432, %v2472
    %v2474 = vpop.f32.mrf.mxu0
    %v2475 = vadd.f32 %v2434, %v2474
    %v2476 = vpop.f32.mrf.mxu0
    %v2477 = vpop.f32.mrf.mxu0
    %2478 = vdwg.mxu0
    %2479 = vmatprep.subr.bf16.mxu0 %v1533
    %2480 = vmatpush1.bf16.msra.mxu0 %v1532
    %2481 = vmatprep.subr.bf16.mxu0 %v1525
    %2482 = vmatpush1.bf16.msra.mxu0 %v1524
    %2483 = vmatprep.subr.bf16.mxu0 %v1517
    %2484 = vmatpush1.bf16.msra.mxu0 %v1516
    %2485 = vmatprep.subr.bf16.mxu0 %v1509
    %2486 = vmatpush1.bf16.msra.mxu0 %v1508
    %2487 = vmatprep.subr.bf16.mxu0 %v1501
    %2488 = vmatpush1.bf16.msra.mxu0 %v1500
    %2489 = vmatprep.subr.bf16.mxu0 %v1493
    %2490 = vmatpush1.bf16.msra.mxu0 %v1492
    %2491 = vmatprep.subr.bf16.mxu0 %v1485
    %2492 = vmatpush1.bf16.msra.mxu0 %v1484
    %2493 = vmatprep.subr.bf16.mxu0 %v1477
    %2494 = vmatpush1.bf16.msra.mxu0 %v1476
    %2495 = vmatprep.subr.bf16.mxu0 %v1597
    %2496 = vmatpush2.bf16.msra.mxu0 %v1596
    %2497 = vmatprep.subr.bf16.mxu0 %v1589
    %2498 = vmatpush2.bf16.msra.mxu0 %v1588
    %2499 = vmatprep.subr.bf16.mxu0 %v1581
    %2500 = vmatpush2.bf16.msra.mxu0 %v1580
    %2501 = vmatprep.subr.bf16.mxu0 %v1573
    %2502 = vmatpush2.bf16.msra.mxu0 %v1572
    %2503 = vmatprep.subr.bf16.mxu0 %v1565
    %2504 = vmatpush2.bf16.msra.mxu0 %v1564
    %2505 = vmatprep.subr.bf16.mxu0 %v1557
    %2506 = vmatpush2.bf16.msra.mxu0 %v1556
    %2507 = vmatprep.subr.bf16.mxu0 %v1549
    %2508 = vmatpush2.bf16.msra.mxu0 %v1548
    %2509 = vmatprep.subr.bf16.mxu0 %v1541
    %2510 = vmatpush2.bf16.msra.mxu0 %v1540
    %2511 = vmatprep.mubr.bf16.mxu0 %v142
    %2512 = vmatmul.mubr.bf16.gmra.mxu0 %v141
    %v2513 = vpop.f32.mrf.mxu0
    %v2514 = vadd.f32 %v497, %v2513
    %v2515 = vpop.f32.mrf.mxu0
    %v2516 = vadd.f32 %v501, %v2515
    %v2517 = vpop.f32.mrf.mxu0
    %v2518 = vpop.f32.mrf.mxu0
    %2519 = vdwg.mxu0
    %2520 = vmatprep.subr.bf16.mxu0 %v1661
    %2521 = vmatpush1.bf16.msra.mxu0 %v1660
    %2522 = vmatprep.subr.bf16.mxu0 %v1653
    %2523 = vmatpush1.bf16.msra.mxu0 %v1652
    %2524 = vmatprep.subr.bf16.mxu0 %v1645
    %2525 = vmatpush1.bf16.msra.mxu0 %v1644
    %2526 = vmatprep.subr.bf16.mxu0 %v1637
    %2527 = vmatpush1.bf16.msra.mxu0 %v1636
    %2528 = vmatprep.subr.bf16.mxu0 %v1629
    %2529 = vmatpush1.bf16.msra.mxu0 %v1628
    %2530 = vmatprep.subr.bf16.mxu0 %v1621
    %2531 = vmatpush1.bf16.msra.mxu0 %v1620
    %2532 = vmatprep.subr.bf16.mxu0 %v1613
    %2533 = vmatpush1.bf16.msra.mxu0 %v1612
    %2534 = vmatprep.subr.bf16.mxu0 %v1605
    %2535 = vmatpush1.bf16.msra.mxu0 %v1604
    %2536 = vmatprep.subr.bf16.mxu0 %v1725
    %2537 = vmatpush2.bf16.msra.mxu0 %v1724
    %2538 = vmatprep.subr.bf16.mxu0 %v1717
    %2539 = vmatpush2.bf16.msra.mxu0 %v1716
    %2540 = vmatprep.subr.bf16.mxu0 %v1709
    %2541 = vmatpush2.bf16.msra.mxu0 %v1708
    %2542 = vmatprep.subr.bf16.mxu0 %v1701
    %2543 = vmatpush2.bf16.msra.mxu0 %v1700
    %2544 = vmatprep.subr.bf16.mxu0 %v1693
    %2545 = vmatpush2.bf16.msra.mxu0 %v1692
    %2546 = vmatprep.subr.bf16.mxu0 %v1685
    %2547 = vmatpush2.bf16.msra.mxu0 %v1684
    %2548 = vmatprep.subr.bf16.mxu0 %v1677
    %2549 = vmatpush2.bf16.msra.mxu0 %v1676
    %2550 = vmatprep.subr.bf16.mxu0 %v1669
    %2551 = vmatpush2.bf16.msra.mxu0 %v1668
    %2552 = vmatprep.mubr.bf16.mxu0 %v144
    %2553 = vmatmul.mubr.bf16.gmra.mxu0 %v143
    %v2554 = vpop.f32.mrf.mxu0
    %v2555 = vadd.f32 %v2514, %v2554
    %v2556 = vpop.f32.mrf.mxu0
    %v2557 = vadd.f32 %v2516, %v2556
    %v2558 = vpop.f32.mrf.mxu0
    %v2559 = vpop.f32.mrf.mxu0
    %2560 = vdwg.mxu0
    %2561 = vmatprep.subr.bf16.mxu0 %v1789
    %2562 = vmatpush1.bf16.msra.mxu0 %v1788
    %2563 = vmatprep.subr.bf16.mxu0 %v1781
    %2564 = vmatpush1.bf16.msra.mxu0 %v1780
    %2565 = vmatprep.subr.bf16.mxu0 %v1773
    %2566 = vmatpush1.bf16.msra.mxu0 %v1772
    %2567 = vmatprep.subr.bf16.mxu0 %v1765
    %2568 = vmatpush1.bf16.msra.mxu0 %v1764
    %2569 = vmatprep.subr.bf16.mxu0 %v1757
    %2570 = vmatpush1.bf16.msra.mxu0 %v1756
    %2571 = vmatprep.subr.bf16.mxu0 %v1749
    %2572 = vmatpush1.bf16.msra.mxu0 %v1748
    %2573 = vmatprep.subr.bf16.mxu0 %v1741
    %2574 = vmatpush1.bf16.msra.mxu0 %v1740
    %2575 = vmatprep.subr.bf16.mxu0 %v1733
    %2576 = vmatpush1.bf16.msra.mxu0 %v1732
    %2577 = vmatprep.subr.bf16.mxu0 0
    %2578 = vmatpush2.bf16.msra.mxu0 0
    %2579 = vmatprep.subr.bf16.mxu0 0
    %2580 = vmatpush2.bf16.msra.mxu0 0
    %2581 = vmatprep.subr.bf16.mxu0 0
    %2582 = vmatpush2.bf16.msra.mxu0 0
    %2583 = vmatprep.subr.bf16.mxu0 0
    %2584 = vmatpush2.bf16.msra.mxu0 0
    %2585 = vmatprep.subr.bf16.mxu0 0
    %2586 = vmatpush2.bf16.msra.mxu0 0
    %2587 = vmatprep.subr.bf16.mxu0 0
    %2588 = vmatpush2.bf16.msra.mxu0 0
    %2589 = vmatprep.subr.bf16.mxu0 0
    %2590 = vmatpush2.bf16.msra.mxu0 0
    %2591 = vmatprep.subr.bf16.mxu0 0
    %2592 = vmatpush2.bf16.msra.mxu0 0
    %2593 = vmatprep.mubr.bf16.mxu0 0
    %2594 = vmatmul.mubr.bf16.gmra.mxu0 %v145
    %v2595 = vpop.f32.mrf.mxu0
    %v2596 = vadd.f32 %v2555, %v2595
    %v2597 = vpop.f32.mrf.mxu0
    %v2598 = vadd.f32 %v2557, %v2597
    %v2599 = vpop.f32.mrf.mxu0
    %v2600 = vpop.f32.mrf.mxu0
    %2601 = vdwg.mxu0
    %v2602 = vmax.f32 %v2227, 0.0
    %v2603 = vmax.f32 %v2229, 0.0
    %v2604 = vmax.f32 %v2350, 0.0
    %v2605 = vmax.f32 %v2352, 0.0
    %v2606 = vmax.f32 %v2473, 0.0
    %v2607 = vmax.f32 %v2475, 0.0
    %v2608 = vmax.f32 %v2596, 0.0
    %v2609 = vmax.f32 %v2598, 0.0
    %v2610 = vpack.c.bf16 %v2602, %v2602
    %v2611 = vpack.c.bf16 %v2603, %v2603
    %v2612 = vpack.c.bf16 %v2604, %v2604
    %v2613 = vpack.c.bf16 %v2605, %v2605
    %v2614 = vpack.c.bf16 %v2606, %v2606
    %v2615 = vpack.c.bf16 %v2607, %v2607
    %v2616 = vpack.c.bf16 %v2608, %v2608
    %v2617 = vpack.c.bf16 %v2609, %v2609
    %v2618 = vld [vmem:[#allocation7] sm:$0xff]
    %v2619 = vld [vmem:[#allocation7 + $0x8] sm:$0xff]
    %v2620 = vld [vmem:[#allocation7 + $0x10] sm:$0xff]
    %v2621 = vld [vmem:[#allocation7 + $0x18] sm:$0xff]
    %v2622 = vld [vmem:[#allocation7 + $0x20] sm:$0xff]
    %v2623 = vld [vmem:[#allocation7 + $0x28] sm:$0xff]
    %v2624 = vld [vmem:[#allocation7 + $0x30] sm:$0xff]
    %v2625 = vld [vmem:[#allocation7 + $0x38] sm:$0xff]
    %v2626 = vld [vmem:[#allocation7 + $0x40] sm:$0xff]
    %v2627 = vld [vmem:[#allocation7 + $0x48] sm:$0xff]
    %v2628 = vld [vmem:[#allocation7 + $0x50] sm:$0xff]
    %v2629 = vld [vmem:[#allocation7 + $0x58] sm:$0xff]
    %v2630 = vld [vmem:[#allocation7 + $0x60] sm:$0xff]
    %v2631 = vld [vmem:[#allocation7 + $0x68] sm:$0xff]
    %v2632 = vld [vmem:[#allocation7 + $0x70] sm:$0xff]
    %v2633 = vld [vmem:[#allocation7 + $0x78] sm:$0xff]
    %v2634 = vld [vmem:[#allocation7 + $0x80] sm:$0xff]
    %v2635 = vld [vmem:[#allocation7 + $0x88] sm:$0xff]
    %v2636 = vld [vmem:[#allocation7 + $0x90] sm:$0xff]
    %v2637 = vld [vmem:[#allocation7 + $0x98] sm:$0xff]
    %v2638 = vld [vmem:[#allocation7 + $0xa0] sm:$0xff]
    %v2639 = vld [vmem:[#allocation7 + $0xa8] sm:$0xff]
    %v2640 = vld [vmem:[#allocation7 + $0xb0] sm:$0xff]
    %v2641 = vld [vmem:[#allocation7 + $0xb8] sm:$0xff]
    %v2642 = vld [vmem:[#allocation7 + $0xc0] sm:$0xff]
    %v2643 = vld [vmem:[#allocation7 + $0xc8] sm:$0xff]
    %v2644 = vld [vmem:[#allocation7 + $0xd0] sm:$0xff]
    %v2645 = vld [vmem:[#allocation7 + $0xd8] sm:$0xff]
    %v2646 = vld [vmem:[#allocation7 + $0xe0] sm:$0xff]
    %v2647 = vld [vmem:[#allocation7 + $0xe8] sm:$0xff]
    %v2648 = vld [vmem:[#allocation7 + $0xf0] sm:$0xff]
    %v2649 = vld [vmem:[#allocation7 + $0xf8] sm:$0xff]
    %v2650 = vld [vmem:[#allocation7 + $0x100] sm:$0xff]
    %v2651 = vld [vmem:[#allocation7 + $0x108] sm:$0xff]
    %v2652 = vld [vmem:[#allocation7 + $0x110] sm:$0xff]
    %v2653 = vld [vmem:[#allocation7 + $0x118] sm:$0xff]
    %v2654 = vld [vmem:[#allocation7 + $0x120] sm:$0xff]
    %v2655 = vld [vmem:[#allocation7 + $0x128] sm:$0xff]
    %v2656 = vld [vmem:[#allocation7 + $0x130] sm:$0xff]
    %v2657 = vld [vmem:[#allocation7 + $0x138] sm:$0xff]
    %v2658 = vld [vmem:[#allocation7 + $0x140] sm:$0xff]
    %v2659 = vld [vmem:[#allocation7 + $0x148] sm:$0xff]
    %v2660 = vld [vmem:[#allocation7 + $0x150] sm:$0xff]
    %v2661 = vld [vmem:[#allocation7 + $0x158] sm:$0xff]
    %v2662 = vld [vmem:[#allocation7 + $0x160] sm:$0xff]
    %v2663 = vld [vmem:[#allocation7 + $0x168] sm:$0xff]
    %v2664 = vld [vmem:[#allocation7 + $0x170] sm:$0xff]
    %v2665 = vld [vmem:[#allocation7 + $0x178] sm:$0xff]
    %v2666 = vld [vmem:[#allocation7 + $0x180] sm:$0xff]
    %v2667 = vld [vmem:[#allocation7 + $0x188] sm:$0xff]
    %v2668 = vld [vmem:[#allocation7 + $0x190] sm:$0xff]
    %v2669 = vld [vmem:[#allocation7 + $0x198] sm:$0xff]
    %v2670 = vld [vmem:[#allocation7 + $0x1a0] sm:$0xff]
    %v2671 = vld [vmem:[#allocation7 + $0x1a8] sm:$0xff]
    %v2672 = vld [vmem:[#allocation7 + $0x1b0] sm:$0xff]
    %v2673 = vld [vmem:[#allocation7 + $0x1b8] sm:$0xff]
    %v2674 = vld [vmem:[#allocation7 + $0x1c0] sm:$0xff]
    %v2675 = vld [vmem:[#allocation7 + $0x1c8] sm:$0xff]
    %v2676 = vld [vmem:[#allocation7 + $0x1d0] sm:$0xff]
    %v2677 = vld [vmem:[#allocation7 + $0x1d8] sm:$0xff]
    %v2678 = vld [vmem:[#allocation7 + $0x1e0] sm:$0xff]
    %v2679 = vld [vmem:[#allocation7 + $0x1e8] sm:$0xff]
    %v2680 = vld [vmem:[#allocation7 + $0x1f0] sm:$0xff]
    %v2681 = vld [vmem:[#allocation7 + $0x1f8] sm:$0xff]
    %v2682 = vld [vmem:[#allocation7 + $0x200] sm:$0xff]
    %v2683 = vld [vmem:[#allocation7 + $0x208] sm:$0xff]
    %v2684 = vld [vmem:[#allocation7 + $0x210] sm:$0xff]
    %v2685 = vld [vmem:[#allocation7 + $0x218] sm:$0xff]
    %v2686 = vld [vmem:[#allocation7 + $0x220] sm:$0xff]
    %v2687 = vld [vmem:[#allocation7 + $0x228] sm:$0xff]
    %v2688 = vld [vmem:[#allocation7 + $0x230] sm:$0xff]
    %v2689 = vld [vmem:[#allocation7 + $0x238] sm:$0xff]
    %v2690 = vld [vmem:[#allocation7 + $0x240] sm:$0xff]
    %v2691 = vld [vmem:[#allocation7 + $0x248] sm:$0xff]
    %v2692 = vld [vmem:[#allocation7 + $0x250] sm:$0xff]
    %v2693 = vld [vmem:[#allocation7 + $0x258] sm:$0xff]
    %v2694 = vld [vmem:[#allocation7 + $0x260] sm:$0xff]
    %v2695 = vld [vmem:[#allocation7 + $0x268] sm:$0xff]
    %v2696 = vld [vmem:[#allocation7 + $0x270] sm:$0xff]
    %v2697 = vld [vmem:[#allocation7 + $0x278] sm:$0xff]
    %v2698 = vld [vmem:[#allocation7 + $0x280] sm:$0xff]
    %v2699 = vld [vmem:[#allocation7 + $0x288] sm:$0xff]
    %v2700 = vld [vmem:[#allocation7 + $0x290] sm:$0xff]
    %v2701 = vld [vmem:[#allocation7 + $0x298] sm:$0xff]
    %v2702 = vld [vmem:[#allocation7 + $0x2a0] sm:$0xff]
    %v2703 = vld [vmem:[#allocation7 + $0x2a8] sm:$0xff]
    %v2704 = vld [vmem:[#allocation7 + $0x2b0] sm:$0xff]
    %v2705 = vld [vmem:[#allocation7 + $0x2b8] sm:$0xff]
    %v2706 = vld [vmem:[#allocation7 + $0x2c0] sm:$0xff]
    %v2707 = vld [vmem:[#allocation7 + $0x2c8] sm:$0xff]
    %v2708 = vld [vmem:[#allocation7 + $0x2d0] sm:$0xff]
    %v2709 = vld [vmem:[#allocation7 + $0x2d8] sm:$0xff]
    %v2710 = vld [vmem:[#allocation7 + $0x2e0] sm:$0xff]
    %v2711 = vld [vmem:[#allocation7 + $0x2e8] sm:$0xff]
    %v2712 = vld [vmem:[#allocation7 + $0x2f0] sm:$0xff]
    %v2713 = vld [vmem:[#allocation7 + $0x2f8] sm:$0xff]
    %v2714 = vld [vmem:[#allocation7 + $0x300] sm:$0xff]
    %v2715 = vld [vmem:[#allocation7 + $0x308] sm:$0xff]
    %v2716 = vld [vmem:[#allocation7 + $0x310] sm:$0xff]
    %v2717 = vld [vmem:[#allocation7 + $0x318] sm:$0xff]
    %v2718 = vld [vmem:[#allocation7 + $0x320] sm:$0xff]
    %v2719 = vld [vmem:[#allocation7 + $0x328] sm:$0xff]
    %v2720 = vld [vmem:[#allocation7 + $0x330] sm:$0xff]
    %v2721 = vld [vmem:[#allocation7 + $0x338] sm:$0xff]
    %v2722 = vld [vmem:[#allocation7 + $0x340] sm:$0xff]
    %v2723 = vld [vmem:[#allocation7 + $0x348] sm:$0xff]
    %v2724 = vld [vmem:[#allocation7 + $0x350] sm:$0xff]
    %v2725 = vld [vmem:[#allocation7 + $0x358] sm:$0xff]
    %v2726 = vld [vmem:[#allocation7 + $0x360] sm:$0xff]
    %v2727 = vld [vmem:[#allocation7 + $0x368] sm:$0xff]
    %v2728 = vld [vmem:[#allocation7 + $0x370] sm:$0xff]
    %v2729 = vld [vmem:[#allocation7 + $0x378] sm:$0xff]
    %v2730 = vld [vmem:[#allocation7 + $0x380] sm:$0xff]
    %v2731 = vld [vmem:[#allocation7 + $0x388] sm:$0xff]
    %v2732 = vld [vmem:[#allocation7 + $0x390] sm:$0xff]
    %v2733 = vld [vmem:[#allocation7 + $0x398] sm:$0xff]
    %v2734 = vld [vmem:[#allocation7 + $0x3a0] sm:$0xff]
    %v2735 = vld [vmem:[#allocation7 + $0x3a8] sm:$0xff]
    %v2736 = vld [vmem:[#allocation7 + $0x3b0] sm:$0xff]
    %v2737 = vld [vmem:[#allocation7 + $0x3b8] sm:$0xff]
    %v2738 = vld [vmem:[#allocation7 + $0x3c0] sm:$0xff]
    %v2739 = vld [vmem:[#allocation7 + $0x3c8] sm:$0xff]
    %v2740 = vld [vmem:[#allocation7 + $0x3d0] sm:$0xff]
    %v2741 = vld [vmem:[#allocation7 + $0x3d8] sm:$0xff]
    %v2742 = vld [vmem:[#allocation7 + $0x3e0] sm:$0xff]
    %v2743 = vld [vmem:[#allocation7 + $0x3e8] sm:$0xff]
    %v2744 = vld [vmem:[#allocation7 + $0x3f0] sm:$0xff]
    %v2745 = vld [vmem:[#allocation7 + $0x3f8] sm:$0xff]
    %v2746 = vld [vmem:[#allocation7 + $0x400] sm:$0xff]
    %v2747 = vld [vmem:[#allocation7 + $0x408] sm:$0xff]
    %v2748 = vld [vmem:[#allocation7 + $0x410] sm:$0xff]
    %v2749 = vld [vmem:[#allocation7 + $0x418] sm:$0xff]
    %v2750 = vld [vmem:[#allocation7 + $0x420] sm:$0xff]
    %v2751 = vld [vmem:[#allocation7 + $0x428] sm:$0xff]
    %v2752 = vld [vmem:[#allocation7 + $0x430] sm:$0xff]
    %v2753 = vld [vmem:[#allocation7 + $0x438] sm:$0xff]
    %v2754 = vld [vmem:[#allocation7 + $0x440] sm:$0xff]
    %v2755 = vld [vmem:[#allocation7 + $0x448] sm:$0xff]
    %v2756 = vld [vmem:[#allocation7 + $0x450] sm:$0xff]
    %v2757 = vld [vmem:[#allocation7 + $0x458] sm:$0xff]
    %v2758 = vld [vmem:[#allocation7 + $0x460] sm:$0xff]
    %v2759 = vld [vmem:[#allocation7 + $0x468] sm:$0xff]
    %v2760 = vld [vmem:[#allocation7 + $0x470] sm:$0xff]
    %v2761 = vld [vmem:[#allocation7 + $0x478] sm:$0xff]
    %v2762 = vld [vmem:[#allocation7 + $0x480] sm:$0xff]
    %v2763 = vld [vmem:[#allocation7 + $0x488] sm:$0xff]
    %v2764 = vld [vmem:[#allocation7 + $0x490] sm:$0xff]
    %v2765 = vld [vmem:[#allocation7 + $0x498] sm:$0xff]
    %v2766 = vld [vmem:[#allocation7 + $0x4a0] sm:$0xff]
    %v2767 = vld [vmem:[#allocation7 + $0x4a8] sm:$0xff]
    %v2768 = vld [vmem:[#allocation7 + $0x4b0] sm:$0xff]
    %v2769 = vld [vmem:[#allocation7 + $0x4b8] sm:$0xff]
    %v2770 = vld [vmem:[#allocation7 + $0x4c0] sm:$0xff]
    %v2771 = vld [vmem:[#allocation7 + $0x4c8] sm:$0xff]
    %v2772 = vld [vmem:[#allocation7 + $0x4d0] sm:$0xff]
    %v2773 = vld [vmem:[#allocation7 + $0x4d8] sm:$0xff]
    %v2774 = vld [vmem:[#allocation7 + $0x4e0] sm:$0xff]
    %v2775 = vld [vmem:[#allocation7 + $0x4e8] sm:$0xff]
    %v2776 = vld [vmem:[#allocation7 + $0x4f0] sm:$0xff]
    %v2777 = vld [vmem:[#allocation7 + $0x4f8] sm:$0xff]
    %v2778 = vld [vmem:[#allocation7 + $0x500] sm:$0xff]
    %v2779 = vld [vmem:[#allocation7 + $0x508] sm:$0xff]
    %v2780 = vld [vmem:[#allocation7 + $0x510] sm:$0xff]
    %v2781 = vld [vmem:[#allocation7 + $0x518] sm:$0xff]
    %v2782 = vld [vmem:[#allocation7 + $0x520] sm:$0xff]
    %v2783 = vld [vmem:[#allocation7 + $0x528] sm:$0xff]
    %v2784 = vld [vmem:[#allocation7 + $0x530] sm:$0xff]
    %v2785 = vld [vmem:[#allocation7 + $0x538] sm:$0xff]
    %v2786 = vld [vmem:[#allocation7 + $0x540] sm:$0xff]
    %v2787 = vld [vmem:[#allocation7 + $0x548] sm:$0xff]
    %v2788 = vld [vmem:[#allocation7 + $0x550] sm:$0xff]
    %v2789 = vld [vmem:[#allocation7 + $0x558] sm:$0xff]
    %v2790 = vld [vmem:[#allocation7 + $0x560] sm:$0xff]
    %v2791 = vld [vmem:[#allocation7 + $0x568] sm:$0xff]
    %v2792 = vld [vmem:[#allocation7 + $0x570] sm:$0xff]
    %v2793 = vld [vmem:[#allocation7 + $0x578] sm:$0xff]
    %v2794 = vld [vmem:[#allocation7 + $0x580] sm:$0xff]
    %v2795 = vld [vmem:[#allocation7 + $0x588] sm:$0xff]
    %v2796 = vld [vmem:[#allocation7 + $0x590] sm:$0xff]
    %v2797 = vld [vmem:[#allocation7 + $0x598] sm:$0xff]
    %v2798 = vld [vmem:[#allocation7 + $0x5a0] sm:$0xff]
    %v2799 = vld [vmem:[#allocation7 + $0x5a8] sm:$0xff]
    %v2800 = vld [vmem:[#allocation7 + $0x5b0] sm:$0xff]
    %v2801 = vld [vmem:[#allocation7 + $0x5b8] sm:$0xff]
    %v2802 = vld [vmem:[#allocation7 + $0x5c0] sm:$0xff]
    %v2803 = vld [vmem:[#allocation7 + $0x5c8] sm:$0xff]
    %v2804 = vld [vmem:[#allocation7 + $0x5d0] sm:$0xff]
    %v2805 = vld [vmem:[#allocation7 + $0x5d8] sm:$0xff]
    %v2806 = vld [vmem:[#allocation7 + $0x5e0] sm:$0xff]
    %v2807 = vld [vmem:[#allocation7 + $0x5e8] sm:$0xff]
    %v2808 = vld [vmem:[#allocation7 + $0x5f0] sm:$0xff]
    %v2809 = vld [vmem:[#allocation7 + $0x5f8] sm:$0xff]
    %v2810 = vld [vmem:[#allocation7 + $0x600] sm:$0xff]
    %v2811 = vld [vmem:[#allocation7 + $0x608] sm:$0xff]
    %v2812 = vld [vmem:[#allocation7 + $0x610] sm:$0xff]
    %v2813 = vld [vmem:[#allocation7 + $0x618] sm:$0xff]
    %v2814 = vld [vmem:[#allocation7 + $0x620] sm:$0xff]
    %v2815 = vld [vmem:[#allocation7 + $0x628] sm:$0xff]
    %v2816 = vld [vmem:[#allocation7 + $0x630] sm:$0xff]
    %v2817 = vld [vmem:[#allocation7 + $0x638] sm:$0xff]
    %v2818 = vld [vmem:[#allocation7 + $0x640] sm:$0xff]
    %v2819 = vld [vmem:[#allocation7 + $0x648] sm:$0xff]
    %v2820 = vld [vmem:[#allocation7 + $0x650] sm:$0xff]
    %v2821 = vld [vmem:[#allocation7 + $0x658] sm:$0xff]
    %v2822 = vld [vmem:[#allocation7 + $0x660] sm:$0xff]
    %v2823 = vld [vmem:[#allocation7 + $0x668] sm:$0xff]
    %v2824 = vld [vmem:[#allocation7 + $0x670] sm:$0xff]
    %v2825 = vld [vmem:[#allocation7 + $0x678] sm:$0xff]
    %v2826 = vld [vmem:[#allocation7 + $0x680] sm:$0xff]
    %v2827 = vld [vmem:[#allocation7 + $0x688] sm:$0xff]
    %v2828 = vld [vmem:[#allocation7 + $0x690] sm:$0xff]
    %v2829 = vld [vmem:[#allocation7 + $0x698] sm:$0xff]
    %v2830 = vld [vmem:[#allocation7 + $0x6a0] sm:$0xff]
    %v2831 = vld [vmem:[#allocation7 + $0x6a8] sm:$0xff]
    %v2832 = vld [vmem:[#allocation7 + $0x6b0] sm:$0xff]
    %v2833 = vld [vmem:[#allocation7 + $0x6b8] sm:$0xff]
    %v2834 = vld [vmem:[#allocation7 + $0x6c0] sm:$0xff]
    %v2835 = vld [vmem:[#allocation7 + $0x6c8] sm:$0xff]
    %v2836 = vld [vmem:[#allocation7 + $0x6d0] sm:$0xff]
    %v2837 = vld [vmem:[#allocation7 + $0x6d8] sm:$0xff]
    %v2838 = vld [vmem:[#allocation7 + $0x6e0] sm:$0xff]
    %v2839 = vld [vmem:[#allocation7 + $0x6e8] sm:$0xff]
    %v2840 = vld [vmem:[#allocation7 + $0x6f0] sm:$0xff]
    %v2841 = vld [vmem:[#allocation7 + $0x6f8] sm:$0xff]
    %v2842 = vld [vmem:[#allocation7 + $0x700] sm:$0xff]
    %v2843 = vld [vmem:[#allocation7 + $0x708] sm:$0xff]
    %v2844 = vld [vmem:[#allocation7 + $0x710] sm:$0xff]
    %v2845 = vld [vmem:[#allocation7 + $0x718] sm:$0xff]
    %v2846 = vld [vmem:[#allocation7 + $0x720] sm:$0xff]
    %v2847 = vld [vmem:[#allocation7 + $0x728] sm:$0xff]
    %v2848 = vld [vmem:[#allocation7 + $0x730] sm:$0xff]
    %v2849 = vld [vmem:[#allocation7 + $0x738] sm:$0xff]
    %v2850 = vld [vmem:[#allocation7 + $0x740] sm:$0xff]
    %v2851 = vld [vmem:[#allocation7 + $0x748] sm:$0xff]
    %v2852 = vld [vmem:[#allocation7 + $0x750] sm:$0xff]
    %v2853 = vld [vmem:[#allocation7 + $0x758] sm:$0xff]
    %v2854 = vld [vmem:[#allocation7 + $0x760] sm:$0xff]
    %v2855 = vld [vmem:[#allocation7 + $0x768] sm:$0xff]
    %v2856 = vld [vmem:[#allocation7 + $0x770] sm:$0xff]
    %v2857 = vld [vmem:[#allocation7 + $0x778] sm:$0xff]
    %v2858 = vld [vmem:[#allocation7 + $0x780] sm:$0xff]
    %v2859 = vld [vmem:[#allocation7 + $0x788] sm:$0xff]
    %v2860 = vld [vmem:[#allocation7 + $0x790] sm:$0xff]
    %v2861 = vld [vmem:[#allocation7 + $0x798] sm:$0xff]
    %v2862 = vld [vmem:[#allocation7 + $0x7a0] sm:$0xff]
    %v2863 = vld [vmem:[#allocation7 + $0x7a8] sm:$0xff]
    %v2864 = vld [vmem:[#allocation7 + $0x7b0] sm:$0xff]
    %v2865 = vld [vmem:[#allocation7 + $0x7b8] sm:$0xff]
    %v2866 = vld [vmem:[#allocation7 + $0x7c0] sm:$0xff]
    %v2867 = vld [vmem:[#allocation7 + $0x7c8] sm:$0xff]
    %v2868 = vld [vmem:[#allocation7 + $0x7d0] sm:$0xff]
    %v2869 = vld [vmem:[#allocation7 + $0x7d8] sm:$0xff]
    %v2870 = vld [vmem:[#allocation7 + $0x7e0] sm:$0xff]
    %v2871 = vld [vmem:[#allocation7 + $0x7e8] sm:$0xff]
    %v2872 = vld [vmem:[#allocation7 + $0x7f0] sm:$0xff]
    %v2873 = vld [vmem:[#allocation7 + $0x7f8] sm:$0xff]
    %s2874 = scalar_lea.vmem [#allocation14], 1
    %v2875 = vld [vmem:[%s2874] ss:$8 sm:$0xf]
    %v2877 = vlaneseq
    %v2878 = vshrl.u32 %v2877, 7
    %v2879 = vsub.s32 0, %v2878
    %v2880 = vrot.slane %v2875, %v2879
    %v2881 = vlaneseq
    %v2882 = vshrl.u32 %v2881, 7
    %v2883 = vsub.s32 1, %v2882
    %v2884 = vrot.slane %v2875, %v2883
    %v2885 = vlaneseq
    %v2886 = vshrl.u32 %v2885, 7
    %v2887 = vsub.s32 2, %v2886
    %v2888 = vrot.slane %v2875, %v2887
    %v2889 = vlaneseq
    %v2890 = vshrl.u32 %v2889, 7
    %v2891 = vsub.s32 3, %v2890
    %v2892 = vrot.slane %v2875, %v2891
    %v3153 = vunpack.c.l.b16 %v2618
    %v3154 = vunpack.c.h.b16 %v2618
    %v3155 = vunpack.c.l.b16 %v2619
    %v3156 = vunpack.c.h.b16 %v2619
    %v3157 = vunpack.c.l.b16 %v2620
    %v3158 = vunpack.c.h.b16 %v2620
    %v3159 = vunpack.c.l.b16 %v2621
    %v3160 = vunpack.c.h.b16 %v2621
    %v3161 = vunpack.c.l.b16 %v2622
    %v3162 = vunpack.c.h.b16 %v2622
    %v3163 = vunpack.c.l.b16 %v2623
    %v3164 = vunpack.c.h.b16 %v2623
    %v3165 = vunpack.c.l.b16 %v2624
    %v3166 = vunpack.c.h.b16 %v2624
    %v3167 = vunpack.c.l.b16 %v2625
    %v3168 = vunpack.c.h.b16 %v2625
    %v3169 = vunpack.c.l.b16 %v2626
    %v3170 = vunpack.c.h.b16 %v2626
    %v3171 = vunpack.c.l.b16 %v2627
    %v3172 = vunpack.c.h.b16 %v2627
    %v3173 = vunpack.c.l.b16 %v2628
    %v3174 = vunpack.c.h.b16 %v2628
    %v3175 = vunpack.c.l.b16 %v2629
    %v3176 = vunpack.c.h.b16 %v2629
    %v3177 = vunpack.c.l.b16 %v2630
    %v3178 = vunpack.c.h.b16 %v2630
    %v3179 = vunpack.c.l.b16 %v2631
    %v3180 = vunpack.c.h.b16 %v2631
    %v3181 = vunpack.c.l.b16 %v2632
    %v3182 = vunpack.c.h.b16 %v2632
    %v3183 = vunpack.c.l.b16 %v2633
    %v3184 = vunpack.c.h.b16 %v2633
    %v3185 = vunpack.c.l.b16 %v2634
    %v3186 = vunpack.c.h.b16 %v2634
    %v3187 = vunpack.c.l.b16 %v2635
    %v3188 = vunpack.c.h.b16 %v2635
    %v3189 = vunpack.c.l.b16 %v2636
    %v3190 = vunpack.c.h.b16 %v2636
    %v3191 = vunpack.c.l.b16 %v2637
    %v3192 = vunpack.c.h.b16 %v2637
    %v3193 = vunpack.c.l.b16 %v2638
    %v3194 = vunpack.c.h.b16 %v2638
    %v3195 = vunpack.c.l.b16 %v2639
    %v3196 = vunpack.c.h.b16 %v2639
    %v3197 = vunpack.c.l.b16 %v2640
    %v3198 = vunpack.c.h.b16 %v2640
    %v3199 = vunpack.c.l.b16 %v2641
    %v3200 = vunpack.c.h.b16 %v2641
    %v3201 = vunpack.c.l.b16 %v2642
    %v3202 = vunpack.c.h.b16 %v2642
    %v3203 = vunpack.c.l.b16 %v2643
    %v3204 = vunpack.c.h.b16 %v2643
    %v3205 = vunpack.c.l.b16 %v2644
    %v3206 = vunpack.c.h.b16 %v2644
    %v3207 = vunpack.c.l.b16 %v2645
    %v3208 = vunpack.c.h.b16 %v2645
    %v3209 = vunpack.c.l.b16 %v2646
    %v3210 = vunpack.c.h.b16 %v2646
    %v3211 = vunpack.c.l.b16 %v2647
    %v3212 = vunpack.c.h.b16 %v2647
    %v3213 = vunpack.c.l.b16 %v2648
    %v3214 = vunpack.c.h.b16 %v2648
    %v3215 = vunpack.c.l.b16 %v2649
    %v3216 = vunpack.c.h.b16 %v2649
    %v3217 = vunpack.c.l.b16 %v2650
    %v3218 = vunpack.c.h.b16 %v2650
    %v3219 = vunpack.c.l.b16 %v2651
    %v3220 = vunpack.c.h.b16 %v2651
    %v3221 = vunpack.c.l.b16 %v2652
    %v3222 = vunpack.c.h.b16 %v2652
    %v3223 = vunpack.c.l.b16 %v2653
    %v3224 = vunpack.c.h.b16 %v2653
    %v3225 = vunpack.c.l.b16 %v2654
    %v3226 = vunpack.c.h.b16 %v2654
    %v3227 = vunpack.c.l.b16 %v2655
    %v3228 = vunpack.c.h.b16 %v2655
    %v3229 = vunpack.c.l.b16 %v2656
    %v3230 = vunpack.c.h.b16 %v2656
    %v3231 = vunpack.c.l.b16 %v2657
    %v3232 = vunpack.c.h.b16 %v2657
    %v3233 = vunpack.c.l.b16 %v2658
    %v3234 = vunpack.c.h.b16 %v2658
    %v3235 = vunpack.c.l.b16 %v2659
    %v3236 = vunpack.c.h.b16 %v2659
    %v3237 = vunpack.c.l.b16 %v2660
    %v3238 = vunpack.c.h.b16 %v2660
    %v3239 = vunpack.c.l.b16 %v2661
    %v3240 = vunpack.c.h.b16 %v2661
    %v3241 = vunpack.c.l.b16 %v2662
    %v3242 = vunpack.c.h.b16 %v2662
    %v3243 = vunpack.c.l.b16 %v2663
    %v3244 = vunpack.c.h.b16 %v2663
    %v3245 = vunpack.c.l.b16 %v2664
    %v3246 = vunpack.c.h.b16 %v2664
    %v3247 = vunpack.c.l.b16 %v2665
    %v3248 = vunpack.c.h.b16 %v2665
    %v3249 = vunpack.c.l.b16 %v2666
    %v3250 = vunpack.c.h.b16 %v2666
    %v3251 = vunpack.c.l.b16 %v2667
    %v3252 = vunpack.c.h.b16 %v2667
    %v3253 = vunpack.c.l.b16 %v2668
    %v3254 = vunpack.c.h.b16 %v2668
    %v3255 = vunpack.c.l.b16 %v2669
    %v3256 = vunpack.c.h.b16 %v2669
    %v3257 = vunpack.c.l.b16 %v2670
    %v3258 = vunpack.c.h.b16 %v2670
    %v3259 = vunpack.c.l.b16 %v2671
    %v3260 = vunpack.c.h.b16 %v2671
    %v3261 = vunpack.c.l.b16 %v2672
    %v3262 = vunpack.c.h.b16 %v2672
    %v3263 = vunpack.c.l.b16 %v2673
    %v3264 = vunpack.c.h.b16 %v2673
    %v3265 = vunpack.c.l.b16 %v2674
    %v3266 = vunpack.c.h.b16 %v2674
    %v3267 = vunpack.c.l.b16 %v2675
    %v3268 = vunpack.c.h.b16 %v2675
    %v3269 = vunpack.c.l.b16 %v2676
    %v3270 = vunpack.c.h.b16 %v2676
    %v3271 = vunpack.c.l.b16 %v2677
    %v3272 = vunpack.c.h.b16 %v2677
    %v3273 = vunpack.c.l.b16 %v2678
    %v3274 = vunpack.c.h.b16 %v2678
    %v3275 = vunpack.c.l.b16 %v2679
    %v3276 = vunpack.c.h.b16 %v2679
    %v3277 = vunpack.c.l.b16 %v2680
    %v3278 = vunpack.c.h.b16 %v2680
    %v3279 = vunpack.c.l.b16 %v2681
    %v3280 = vunpack.c.h.b16 %v2681
    %v3281 = vunpack.c.l.b16 %v2682
    %v3282 = vunpack.c.h.b16 %v2682
    %v3283 = vunpack.c.l.b16 %v2683
    %v3284 = vunpack.c.h.b16 %v2683
    %v3285 = vunpack.c.l.b16 %v2684
    %v3286 = vunpack.c.h.b16 %v2684
    %v3287 = vunpack.c.l.b16 %v2685
    %v3288 = vunpack.c.h.b16 %v2685
    %v3289 = vunpack.c.l.b16 %v2686
    %v3290 = vunpack.c.h.b16 %v2686
    %v3291 = vunpack.c.l.b16 %v2687
    %v3292 = vunpack.c.h.b16 %v2687
    %v3293 = vunpack.c.l.b16 %v2688
    %v3294 = vunpack.c.h.b16 %v2688
    %v3295 = vunpack.c.l.b16 %v2689
    %v3296 = vunpack.c.h.b16 %v2689
    %v3297 = vunpack.c.l.b16 %v2690
    %v3298 = vunpack.c.h.b16 %v2690
    %v3299 = vunpack.c.l.b16 %v2691
    %v3300 = vunpack.c.h.b16 %v2691
    %v3301 = vunpack.c.l.b16 %v2692
    %v3302 = vunpack.c.h.b16 %v2692
    %v3303 = vunpack.c.l.b16 %v2693
    %v3304 = vunpack.c.h.b16 %v2693
    %v3305 = vunpack.c.l.b16 %v2694
    %v3306 = vunpack.c.h.b16 %v2694
    %v3307 = vunpack.c.l.b16 %v2695
    %v3308 = vunpack.c.h.b16 %v2695
    %v3309 = vunpack.c.l.b16 %v2696
    %v3310 = vunpack.c.h.b16 %v2696
    %v3311 = vunpack.c.l.b16 %v2697
    %v3312 = vunpack.c.h.b16 %v2697
    %v3313 = vunpack.c.l.b16 %v2698
    %v3314 = vunpack.c.h.b16 %v2698
    %v3315 = vunpack.c.l.b16 %v2699
    %v3316 = vunpack.c.h.b16 %v2699
    %v3317 = vunpack.c.l.b16 %v2700
    %v3318 = vunpack.c.h.b16 %v2700
    %v3319 = vunpack.c.l.b16 %v2701
    %v3320 = vunpack.c.h.b16 %v2701
    %v3321 = vunpack.c.l.b16 %v2702
    %v3322 = vunpack.c.h.b16 %v2702
    %v3323 = vunpack.c.l.b16 %v2703
    %v3324 = vunpack.c.h.b16 %v2703
    %v3325 = vunpack.c.l.b16 %v2704
    %v3326 = vunpack.c.h.b16 %v2704
    %v3327 = vunpack.c.l.b16 %v2705
    %v3328 = vunpack.c.h.b16 %v2705
    %v3329 = vunpack.c.l.b16 %v2706
    %v3330 = vunpack.c.h.b16 %v2706
    %v3331 = vunpack.c.l.b16 %v2707
    %v3332 = vunpack.c.h.b16 %v2707
    %v3333 = vunpack.c.l.b16 %v2708
    %v3334 = vunpack.c.h.b16 %v2708
    %v3335 = vunpack.c.l.b16 %v2709
    %v3336 = vunpack.c.h.b16 %v2709
    %v3337 = vunpack.c.l.b16 %v2710
    %v3338 = vunpack.c.h.b16 %v2710
    %v3339 = vunpack.c.l.b16 %v2711
    %v3340 = vunpack.c.h.b16 %v2711
    %v3341 = vunpack.c.l.b16 %v2712
    %v3342 = vunpack.c.h.b16 %v2712
    %v3343 = vunpack.c.l.b16 %v2713
    %v3344 = vunpack.c.h.b16 %v2713
    %v3345 = vunpack.c.l.b16 %v2714
    %v3346 = vunpack.c.h.b16 %v2714
    %v3347 = vunpack.c.l.b16 %v2715
    %v3348 = vunpack.c.h.b16 %v2715
    %v3349 = vunpack.c.l.b16 %v2716
    %v3350 = vunpack.c.h.b16 %v2716
    %v3351 = vunpack.c.l.b16 %v2717
    %v3352 = vunpack.c.h.b16 %v2717
    %v3353 = vunpack.c.l.b16 %v2718
    %v3354 = vunpack.c.h.b16 %v2718
    %v3355 = vunpack.c.l.b16 %v2719
    %v3356 = vunpack.c.h.b16 %v2719
    %v3357 = vunpack.c.l.b16 %v2720
    %v3358 = vunpack.c.h.b16 %v2720
    %v3359 = vunpack.c.l.b16 %v2721
    %v3360 = vunpack.c.h.b16 %v2721
    %v3361 = vunpack.c.l.b16 %v2722
    %v3362 = vunpack.c.h.b16 %v2722
    %v3363 = vunpack.c.l.b16 %v2723
    %v3364 = vunpack.c.h.b16 %v2723
    %v3365 = vunpack.c.l.b16 %v2724
    %v3366 = vunpack.c.h.b16 %v2724
    %v3367 = vunpack.c.l.b16 %v2725
    %v3368 = vunpack.c.h.b16 %v2725
    %v3369 = vunpack.c.l.b16 %v2726
    %v3370 = vunpack.c.h.b16 %v2726
    %v3371 = vunpack.c.l.b16 %v2727
    %v3372 = vunpack.c.h.b16 %v2727
    %v3373 = vunpack.c.l.b16 %v2728
    %v3374 = vunpack.c.h.b16 %v2728
    %v3375 = vunpack.c.l.b16 %v2729
    %v3376 = vunpack.c.h.b16 %v2729
    %v3377 = vunpack.c.l.b16 %v2730
    %v3378 = vunpack.c.h.b16 %v2730
    %v3379 = vunpack.c.l.b16 %v2731
    %v3380 = vunpack.c.h.b16 %v2731
    %v3381 = vunpack.c.l.b16 %v2732
    %v3382 = vunpack.c.h.b16 %v2732
    %v3383 = vunpack.c.l.b16 %v2733
    %v3384 = vunpack.c.h.b16 %v2733
    %v3385 = vunpack.c.l.b16 %v2734
    %v3386 = vunpack.c.h.b16 %v2734
    %v3387 = vunpack.c.l.b16 %v2735
    %v3388 = vunpack.c.h.b16 %v2735
    %v3389 = vunpack.c.l.b16 %v2736
    %v3390 = vunpack.c.h.b16 %v2736
    %v3391 = vunpack.c.l.b16 %v2737
    %v3392 = vunpack.c.h.b16 %v2737
    %v3393 = vunpack.c.l.b16 %v2738
    %v3394 = vunpack.c.h.b16 %v2738
    %v3395 = vunpack.c.l.b16 %v2739
    %v3396 = vunpack.c.h.b16 %v2739
    %v3397 = vunpack.c.l.b16 %v2740
    %v3398 = vunpack.c.h.b16 %v2740
    %v3399 = vunpack.c.l.b16 %v2741
    %v3400 = vunpack.c.h.b16 %v2741
    %v3401 = vunpack.c.l.b16 %v2742
    %v3402 = vunpack.c.h.b16 %v2742
    %v3403 = vunpack.c.l.b16 %v2743
    %v3404 = vunpack.c.h.b16 %v2743
    %v3405 = vunpack.c.l.b16 %v2744
    %v3406 = vunpack.c.h.b16 %v2744
    %v3407 = vunpack.c.l.b16 %v2745
    %v3408 = vunpack.c.h.b16 %v2745
    %v3409 = vunpack.c.l.b16 %v2746
    %v3410 = vunpack.c.h.b16 %v2746
    %v3411 = vunpack.c.l.b16 %v2747
    %v3412 = vunpack.c.h.b16 %v2747
    %v3413 = vunpack.c.l.b16 %v2748
    %v3414 = vunpack.c.h.b16 %v2748
    %v3415 = vunpack.c.l.b16 %v2749
    %v3416 = vunpack.c.h.b16 %v2749
    %v3417 = vunpack.c.l.b16 %v2750
    %v3418 = vunpack.c.h.b16 %v2750
    %v3419 = vunpack.c.l.b16 %v2751
    %v3420 = vunpack.c.h.b16 %v2751
    %v3421 = vunpack.c.l.b16 %v2752
    %v3422 = vunpack.c.h.b16 %v2752
    %v3423 = vunpack.c.l.b16 %v2753
    %v3424 = vunpack.c.h.b16 %v2753
    %v3425 = vunpack.c.l.b16 %v2754
    %v3426 = vunpack.c.h.b16 %v2754
    %v3427 = vunpack.c.l.b16 %v2755
    %v3428 = vunpack.c.h.b16 %v2755
    %v3429 = vunpack.c.l.b16 %v2756
    %v3430 = vunpack.c.h.b16 %v2756
    %v3431 = vunpack.c.l.b16 %v2757
    %v3432 = vunpack.c.h.b16 %v2757
    %v3433 = vunpack.c.l.b16 %v2758
    %v3434 = vunpack.c.h.b16 %v2758
    %v3435 = vunpack.c.l.b16 %v2759
    %v3436 = vunpack.c.h.b16 %v2759
    %v3437 = vunpack.c.l.b16 %v2760
    %v3438 = vunpack.c.h.b16 %v2760
    %v3439 = vunpack.c.l.b16 %v2761
    %v3440 = vunpack.c.h.b16 %v2761
    %v3441 = vunpack.c.l.b16 %v2762
    %v3442 = vunpack.c.h.b16 %v2762
    %v3443 = vunpack.c.l.b16 %v2763
    %v3444 = vunpack.c.h.b16 %v2763
    %v3445 = vunpack.c.l.b16 %v2764
    %v3446 = vunpack.c.h.b16 %v2764
    %v3447 = vunpack.c.l.b16 %v2765
    %v3448 = vunpack.c.h.b16 %v2765
    %v3449 = vunpack.c.l.b16 %v2766
    %v3450 = vunpack.c.h.b16 %v2766
    %v3451 = vunpack.c.l.b16 %v2767
    %v3452 = vunpack.c.h.b16 %v2767
    %v3453 = vunpack.c.l.b16 %v2768
    %v3454 = vunpack.c.h.b16 %v2768
    %v3455 = vunpack.c.l.b16 %v2769
    %v3456 = vunpack.c.h.b16 %v2769
    %v3457 = vunpack.c.l.b16 %v2770
    %v3458 = vunpack.c.h.b16 %v2770
    %v3459 = vunpack.c.l.b16 %v2771
    %v3460 = vunpack.c.h.b16 %v2771
    %v3461 = vunpack.c.l.b16 %v2772
    %v3462 = vunpack.c.h.b16 %v2772
    %v3463 = vunpack.c.l.b16 %v2773
    %v3464 = vunpack.c.h.b16 %v2773
    %v3465 = vunpack.c.l.b16 %v2774
    %v3466 = vunpack.c.h.b16 %v2774
    %v3467 = vunpack.c.l.b16 %v2775
    %v3468 = vunpack.c.h.b16 %v2775
    %v3469 = vunpack.c.l.b16 %v2776
    %v3470 = vunpack.c.h.b16 %v2776
    %v3471 = vunpack.c.l.b16 %v2777
    %v3472 = vunpack.c.h.b16 %v2777
    %v3473 = vunpack.c.l.b16 %v2778
    %v3474 = vunpack.c.h.b16 %v2778
    %v3475 = vunpack.c.l.b16 %v2779
    %v3476 = vunpack.c.h.b16 %v2779
    %v3477 = vunpack.c.l.b16 %v2780
    %v3478 = vunpack.c.h.b16 %v2780
    %v3479 = vunpack.c.l.b16 %v2781
    %v3480 = vunpack.c.h.b16 %v2781
    %v3481 = vunpack.c.l.b16 %v2782
    %v3482 = vunpack.c.h.b16 %v2782
    %v3483 = vunpack.c.l.b16 %v2783
    %v3484 = vunpack.c.h.b16 %v2783
    %v3485 = vunpack.c.l.b16 %v2784
    %v3486 = vunpack.c.h.b16 %v2784
    %v3487 = vunpack.c.l.b16 %v2785
    %v3488 = vunpack.c.h.b16 %v2785
    %v3489 = vunpack.c.l.b16 %v2786
    %v3490 = vunpack.c.h.b16 %v2786
    %v3491 = vunpack.c.l.b16 %v2787
    %v3492 = vunpack.c.h.b16 %v2787
    %v3493 = vunpack.c.l.b16 %v2788
    %v3494 = vunpack.c.h.b16 %v2788
    %v3495 = vunpack.c.l.b16 %v2789
    %v3496 = vunpack.c.h.b16 %v2789
    %v3497 = vunpack.c.l.b16 %v2790
    %v3498 = vunpack.c.h.b16 %v2790
    %v3499 = vunpack.c.l.b16 %v2791
    %v3500 = vunpack.c.h.b16 %v2791
    %v3501 = vunpack.c.l.b16 %v2792
    %v3502 = vunpack.c.h.b16 %v2792
    %v3503 = vunpack.c.l.b16 %v2793
    %v3504 = vunpack.c.h.b16 %v2793
    %v3505 = vunpack.c.l.b16 %v2794
    %v3506 = vunpack.c.h.b16 %v2794
    %v3507 = vunpack.c.l.b16 %v2795
    %v3508 = vunpack.c.h.b16 %v2795
    %v3509 = vunpack.c.l.b16 %v2796
    %v3510 = vunpack.c.h.b16 %v2796
    %v3511 = vunpack.c.l.b16 %v2797
    %v3512 = vunpack.c.h.b16 %v2797
    %v3513 = vunpack.c.l.b16 %v2798
    %v3514 = vunpack.c.h.b16 %v2798
    %v3515 = vunpack.c.l.b16 %v2799
    %v3516 = vunpack.c.h.b16 %v2799
    %v3517 = vunpack.c.l.b16 %v2800
    %v3518 = vunpack.c.h.b16 %v2800
    %v3519 = vunpack.c.l.b16 %v2801
    %v3520 = vunpack.c.h.b16 %v2801
    %v3521 = vunpack.c.l.b16 %v2802
    %v3522 = vunpack.c.h.b16 %v2802
    %v3523 = vunpack.c.l.b16 %v2803
    %v3524 = vunpack.c.h.b16 %v2803
    %v3525 = vunpack.c.l.b16 %v2804
    %v3526 = vunpack.c.h.b16 %v2804
    %v3527 = vunpack.c.l.b16 %v2805
    %v3528 = vunpack.c.h.b16 %v2805
    %v3529 = vunpack.c.l.b16 %v2806
    %v3530 = vunpack.c.h.b16 %v2806
    %v3531 = vunpack.c.l.b16 %v2807
    %v3532 = vunpack.c.h.b16 %v2807
    %v3533 = vunpack.c.l.b16 %v2808
    %v3534 = vunpack.c.h.b16 %v2808
    %v3535 = vunpack.c.l.b16 %v2809
    %v3536 = vunpack.c.h.b16 %v2809
    %v3537 = vunpack.c.l.b16 %v2810
    %v3538 = vunpack.c.h.b16 %v2810
    %v3539 = vunpack.c.l.b16 %v2811
    %v3540 = vunpack.c.h.b16 %v2811
    %v3541 = vunpack.c.l.b16 %v2812
    %v3542 = vunpack.c.h.b16 %v2812
    %v3543 = vunpack.c.l.b16 %v2813
    %v3544 = vunpack.c.h.b16 %v2813
    %v3545 = vunpack.c.l.b16 %v2814
    %v3546 = vunpack.c.h.b16 %v2814
    %v3547 = vunpack.c.l.b16 %v2815
    %v3548 = vunpack.c.h.b16 %v2815
    %v3549 = vunpack.c.l.b16 %v2816
    %v3550 = vunpack.c.h.b16 %v2816
    %v3551 = vunpack.c.l.b16 %v2817
    %v3552 = vunpack.c.h.b16 %v2817
    %v3553 = vunpack.c.l.b16 %v2818
    %v3554 = vunpack.c.h.b16 %v2818
    %v3555 = vunpack.c.l.b16 %v2819
    %v3556 = vunpack.c.h.b16 %v2819
    %v3557 = vunpack.c.l.b16 %v2820
    %v3558 = vunpack.c.h.b16 %v2820
    %v3559 = vunpack.c.l.b16 %v2821
    %v3560 = vunpack.c.h.b16 %v2821
    %v3561 = vunpack.c.l.b16 %v2822
    %v3562 = vunpack.c.h.b16 %v2822
    %v3563 = vunpack.c.l.b16 %v2823
    %v3564 = vunpack.c.h.b16 %v2823
    %v3565 = vunpack.c.l.b16 %v2824
    %v3566 = vunpack.c.h.b16 %v2824
    %v3567 = vunpack.c.l.b16 %v2825
    %v3568 = vunpack.c.h.b16 %v2825
    %v3569 = vunpack.c.l.b16 %v2826
    %v3570 = vunpack.c.h.b16 %v2826
    %v3571 = vunpack.c.l.b16 %v2827
    %v3572 = vunpack.c.h.b16 %v2827
    %v3573 = vunpack.c.l.b16 %v2828
    %v3574 = vunpack.c.h.b16 %v2828
    %v3575 = vunpack.c.l.b16 %v2829
    %v3576 = vunpack.c.h.b16 %v2829
    %v3577 = vunpack.c.l.b16 %v2830
    %v3578 = vunpack.c.h.b16 %v2830
    %v3579 = vunpack.c.l.b16 %v2831
    %v3580 = vunpack.c.h.b16 %v2831
    %v3581 = vunpack.c.l.b16 %v2832
    %v3582 = vunpack.c.h.b16 %v2832
    %v3583 = vunpack.c.l.b16 %v2833
    %v3584 = vunpack.c.h.b16 %v2833
    %v3585 = vunpack.c.l.b16 %v2834
    %v3586 = vunpack.c.h.b16 %v2834
    %v3587 = vunpack.c.l.b16 %v2835
    %v3588 = vunpack.c.h.b16 %v2835
    %v3589 = vunpack.c.l.b16 %v2836
    %v3590 = vunpack.c.h.b16 %v2836
    %v3591 = vunpack.c.l.b16 %v2837
    %v3592 = vunpack.c.h.b16 %v2837
    %v3593 = vunpack.c.l.b16 %v2838
    %v3594 = vunpack.c.h.b16 %v2838
    %v3595 = vunpack.c.l.b16 %v2839
    %v3596 = vunpack.c.h.b16 %v2839
    %v3597 = vunpack.c.l.b16 %v2840
    %v3598 = vunpack.c.h.b16 %v2840
    %v3599 = vunpack.c.l.b16 %v2841
    %v3600 = vunpack.c.h.b16 %v2841
    %v3601 = vunpack.c.l.b16 %v2842
    %v3602 = vunpack.c.h.b16 %v2842
    %v3603 = vunpack.c.l.b16 %v2843
    %v3604 = vunpack.c.h.b16 %v2843
    %v3605 = vunpack.c.l.b16 %v2844
    %v3606 = vunpack.c.h.b16 %v2844
    %v3607 = vunpack.c.l.b16 %v2845
    %v3608 = vunpack.c.h.b16 %v2845
    %v3609 = vunpack.c.l.b16 %v2846
    %v3610 = vunpack.c.h.b16 %v2846
    %v3611 = vunpack.c.l.b16 %v2847
    %v3612 = vunpack.c.h.b16 %v2847
    %v3613 = vunpack.c.l.b16 %v2848
    %v3614 = vunpack.c.h.b16 %v2848
    %v3615 = vunpack.c.l.b16 %v2849
    %v3616 = vunpack.c.h.b16 %v2849
    %v3617 = vunpack.c.l.b16 %v2850
    %v3618 = vunpack.c.h.b16 %v2850
    %v3619 = vunpack.c.l.b16 %v2851
    %v3620 = vunpack.c.h.b16 %v2851
    %v3621 = vunpack.c.l.b16 %v2852
    %v3622 = vunpack.c.h.b16 %v2852
    %v3623 = vunpack.c.l.b16 %v2853
    %v3624 = vunpack.c.h.b16 %v2853
    %v3625 = vunpack.c.l.b16 %v2854
    %v3626 = vunpack.c.h.b16 %v2854
    %v3627 = vunpack.c.l.b16 %v2855
    %v3628 = vunpack.c.h.b16 %v2855
    %v3629 = vunpack.c.l.b16 %v2856
    %v3630 = vunpack.c.h.b16 %v2856
    %v3631 = vunpack.c.l.b16 %v2857
    %v3632 = vunpack.c.h.b16 %v2857
    %v3633 = vunpack.c.l.b16 %v2858
    %v3634 = vunpack.c.h.b16 %v2858
    %v3635 = vunpack.c.l.b16 %v2859
    %v3636 = vunpack.c.h.b16 %v2859
    %v3637 = vunpack.c.l.b16 %v2860
    %v3638 = vunpack.c.h.b16 %v2860
    %v3639 = vunpack.c.l.b16 %v2861
    %v3640 = vunpack.c.h.b16 %v2861
    %v3641 = vunpack.c.l.b16 %v2862
    %v3642 = vunpack.c.h.b16 %v2862
    %v3643 = vunpack.c.l.b16 %v2863
    %v3644 = vunpack.c.h.b16 %v2863
    %v3645 = vunpack.c.l.b16 %v2864
    %v3646 = vunpack.c.h.b16 %v2864
    %v3647 = vunpack.c.l.b16 %v2865
    %v3648 = vunpack.c.h.b16 %v2865
    %v3649 = vunpack.c.l.b16 %v2866
    %v3650 = vunpack.c.h.b16 %v2866
    %v3651 = vunpack.c.l.b16 %v2867
    %v3652 = vunpack.c.h.b16 %v2867
    %v3653 = vunpack.c.l.b16 %v2868
    %v3654 = vunpack.c.h.b16 %v2868
    %v3655 = vunpack.c.l.b16 %v2869
    %v3656 = vunpack.c.h.b16 %v2869
    %v3657 = vunpack.c.l.b16 %v2870
    %v3658 = vunpack.c.h.b16 %v2870
    %v3659 = vunpack.c.l.b16 %v2871
    %v3660 = vunpack.c.h.b16 %v2871
    %v3661 = vunpack.c.l.b16 %v2872
    %v3662 = vunpack.c.h.b16 %v2872
    %v3663 = vunpack.c.l.b16 %v2873
    %v3664 = vunpack.c.h.b16 %v2873
    %v3665 = vpack.c.b16 %v3157, %v3153
    %v3666 = vpack.c.b16 %v3158, %v3154
    %v3667 = vpack.c.b16 %v3159, %v3155
    %v3668 = vpack.c.b16 %v3160, %v3156
    %v3669 = vpack.c.b16 %v3165, %v3161
    %v3670 = vpack.c.b16 %v3166, %v3162
    %v3671 = vpack.c.b16 %v3167, %v3163
    %v3672 = vpack.c.b16 %v3168, %v3164
    %v3673 = vpack.c.b16 %v3173, %v3169
    %v3674 = vpack.c.b16 %v3174, %v3170
    %v3675 = vpack.c.b16 %v3175, %v3171
    %v3676 = vpack.c.b16 %v3176, %v3172
    %v3677 = vpack.c.b16 %v3181, %v3177
    %v3678 = vpack.c.b16 %v3182, %v3178
    %v3679 = vpack.c.b16 %v3183, %v3179
    %v3680 = vpack.c.b16 %v3184, %v3180
    %v3681 = vpack.c.b16 %v3189, %v3185
    %v3682 = vpack.c.b16 %v3190, %v3186
    %v3683 = vpack.c.b16 %v3191, %v3187
    %v3684 = vpack.c.b16 %v3192, %v3188
    %v3685 = vpack.c.b16 %v3197, %v3193
    %v3686 = vpack.c.b16 %v3198, %v3194
    %v3687 = vpack.c.b16 %v3199, %v3195
    %v3688 = vpack.c.b16 %v3200, %v3196
    %v3689 = vpack.c.b16 %v3205, %v3201
    %v3690 = vpack.c.b16 %v3206, %v3202
    %v3691 = vpack.c.b16 %v3207, %v3203
    %v3692 = vpack.c.b16 %v3208, %v3204
    %v3693 = vpack.c.b16 %v3213, %v3209
    %v3694 = vpack.c.b16 %v3214, %v3210
    %v3695 = vpack.c.b16 %v3215, %v3211
    %v3696 = vpack.c.b16 %v3216, %v3212
    %v3697 = vpack.c.b16 %v3221, %v3217
    %v3698 = vpack.c.b16 %v3222, %v3218
    %v3699 = vpack.c.b16 %v3223, %v3219
    %v3700 = vpack.c.b16 %v3224, %v3220
    %v3701 = vpack.c.b16 %v3229, %v3225
    %v3702 = vpack.c.b16 %v3230, %v3226
    %v3703 = vpack.c.b16 %v3231, %v3227
    %v3704 = vpack.c.b16 %v3232, %v3228
    %v3705 = vpack.c.b16 %v3237, %v3233
    %v3706 = vpack.c.b16 %v3238, %v3234
    %v3707 = vpack.c.b16 %v3239, %v3235
    %v3708 = vpack.c.b16 %v3240, %v3236
    %v3709 = vpack.c.b16 %v3245, %v3241
    %v3710 = vpack.c.b16 %v3246, %v3242
    %v3711 = vpack.c.b16 %v3247, %v3243
    %v3712 = vpack.c.b16 %v3248, %v3244
    %v3713 = vpack.c.b16 %v3253, %v3249
    %v3714 = vpack.c.b16 %v3254, %v3250
    %v3715 = vpack.c.b16 %v3255, %v3251
    %v3716 = vpack.c.b16 %v3256, %v3252
    %v3717 = vpack.c.b16 %v3261, %v3257
    %v3718 = vpack.c.b16 %v3262, %v3258
    %v3719 = vpack.c.b16 %v3263, %v3259
    %v3720 = vpack.c.b16 %v3264, %v3260
    %v3721 = vpack.c.b16 %v3269, %v3265
    %v3722 = vpack.c.b16 %v3270, %v3266
    %v3723 = vpack.c.b16 %v3271, %v3267
    %v3724 = vpack.c.b16 %v3272, %v3268
    %v3725 = vpack.c.b16 %v3277, %v3273
    %v3726 = vpack.c.b16 %v3278, %v3274
    %v3727 = vpack.c.b16 %v3279, %v3275
    %v3728 = vpack.c.b16 %v3280, %v3276
    %v3729 = vpack.c.b16 %v3285, %v3281
    %v3730 = vpack.c.b16 %v3286, %v3282
    %v3731 = vpack.c.b16 %v3287, %v3283
    %v3732 = vpack.c.b16 %v3288, %v3284
    %v3733 = vpack.c.b16 %v3293, %v3289
    %v3734 = vpack.c.b16 %v3294, %v3290
    %v3735 = vpack.c.b16 %v3295, %v3291
    %v3736 = vpack.c.b16 %v3296, %v3292
    %v3737 = vpack.c.b16 %v3301, %v3297
    %v3738 = vpack.c.b16 %v3302, %v3298
    %v3739 = vpack.c.b16 %v3303, %v3299
    %v3740 = vpack.c.b16 %v3304, %v3300
    %v3741 = vpack.c.b16 %v3309, %v3305
    %v3742 = vpack.c.b16 %v3310, %v3306
    %v3743 = vpack.c.b16 %v3311, %v3307
    %v3744 = vpack.c.b16 %v3312, %v3308
    %v3745 = vpack.c.b16 %v3317, %v3313
    %v3746 = vpack.c.b16 %v3318, %v3314
    %v3747 = vpack.c.b16 %v3319, %v3315
    %v3748 = vpack.c.b16 %v3320, %v3316
    %v3749 = vpack.c.b16 %v3325, %v3321
    %v3750 = vpack.c.b16 %v3326, %v3322
    %v3751 = vpack.c.b16 %v3327, %v3323
    %v3752 = vpack.c.b16 %v3328, %v3324
    %v3753 = vpack.c.b16 %v3333, %v3329
    %v3754 = vpack.c.b16 %v3334, %v3330
    %v3755 = vpack.c.b16 %v3335, %v3331
    %v3756 = vpack.c.b16 %v3336, %v3332
    %v3757 = vpack.c.b16 %v3341, %v3337
    %v3758 = vpack.c.b16 %v3342, %v3338
    %v3759 = vpack.c.b16 %v3343, %v3339
    %v3760 = vpack.c.b16 %v3344, %v3340
    %v3761 = vpack.c.b16 %v3349, %v3345
    %v3762 = vpack.c.b16 %v3350, %v3346
    %v3763 = vpack.c.b16 %v3351, %v3347
    %v3764 = vpack.c.b16 %v3352, %v3348
    %v3765 = vpack.c.b16 %v3357, %v3353
    %v3766 = vpack.c.b16 %v3358, %v3354
    %v3767 = vpack.c.b16 %v3359, %v3355
    %v3768 = vpack.c.b16 %v3360, %v3356
    %v3769 = vpack.c.b16 %v3365, %v3361
    %v3770 = vpack.c.b16 %v3366, %v3362
    %v3771 = vpack.c.b16 %v3367, %v3363
    %v3772 = vpack.c.b16 %v3368, %v3364
    %v3773 = vpack.c.b16 %v3373, %v3369
    %v3774 = vpack.c.b16 %v3374, %v3370
    %v3775 = vpack.c.b16 %v3375, %v3371
    %v3776 = vpack.c.b16 %v3376, %v3372
    %v3777 = vpack.c.b16 %v3381, %v3377
    %v3778 = vpack.c.b16 %v3382, %v3378
    %v3779 = vpack.c.b16 %v3383, %v3379
    %v3780 = vpack.c.b16 %v3384, %v3380
    %v3781 = vpack.c.b16 %v3389, %v3385
    %v3782 = vpack.c.b16 %v3390, %v3386
    %v3783 = vpack.c.b16 %v3391, %v3387
    %v3784 = vpack.c.b16 %v3392, %v3388
    %v3785 = vpack.c.b16 %v3397, %v3393
    %v3786 = vpack.c.b16 %v3398, %v3394
    %v3787 = vpack.c.b16 %v3399, %v3395
    %v3788 = vpack.c.b16 %v3400, %v3396
    %v3789 = vpack.c.b16 %v3405, %v3401
    %v3790 = vpack.c.b16 %v3406, %v3402
    %v3791 = vpack.c.b16 %v3407, %v3403
    %v3792 = vpack.c.b16 %v3408, %v3404
    %v3793 = vpack.c.b16 %v3413, %v3409
    %v3794 = vpack.c.b16 %v3414, %v3410
    %v3795 = vpack.c.b16 %v3415, %v3411
    %v3796 = vpack.c.b16 %v3416, %v3412
    %v3797 = vpack.c.b16 %v3421, %v3417
    %v3798 = vpack.c.b16 %v3422, %v3418
    %v3799 = vpack.c.b16 %v3423, %v3419
    %v3800 = vpack.c.b16 %v3424, %v3420
    %v3801 = vpack.c.b16 %v3429, %v3425
    %v3802 = vpack.c.b16 %v3430, %v3426
    %v3803 = vpack.c.b16 %v3431, %v3427
    %v3804 = vpack.c.b16 %v3432, %v3428
    %v3805 = vpack.c.b16 %v3437, %v3433
    %v3806 = vpack.c.b16 %v3438, %v3434
    %v3807 = vpack.c.b16 %v3439, %v3435
    %v3808 = vpack.c.b16 %v3440, %v3436
    %v3809 = vpack.c.b16 %v3445, %v3441
    %v3810 = vpack.c.b16 %v3446, %v3442
    %v3811 = vpack.c.b16 %v3447, %v3443
    %v3812 = vpack.c.b16 %v3448, %v3444
    %v3813 = vpack.c.b16 %v3453, %v3449
    %v3814 = vpack.c.b16 %v3454, %v3450
    %v3815 = vpack.c.b16 %v3455, %v3451
    %v3816 = vpack.c.b16 %v3456, %v3452
    %v3817 = vpack.c.b16 %v3461, %v3457
    %v3818 = vpack.c.b16 %v3462, %v3458
    %v3819 = vpack.c.b16 %v3463, %v3459
    %v3820 = vpack.c.b16 %v3464, %v3460
    %v3821 = vpack.c.b16 %v3469, %v3465
    %v3822 = vpack.c.b16 %v3470, %v3466
    %v3823 = vpack.c.b16 %v3471, %v3467
    %v3824 = vpack.c.b16 %v3472, %v3468
    %v3825 = vpack.c.b16 %v3477, %v3473
    %v3826 = vpack.c.b16 %v3478, %v3474
    %v3827 = vpack.c.b16 %v3479, %v3475
    %v3828 = vpack.c.b16 %v3480, %v3476
    %v3829 = vpack.c.b16 %v3485, %v3481
    %v3830 = vpack.c.b16 %v3486, %v3482
    %v3831 = vpack.c.b16 %v3487, %v3483
    %v3832 = vpack.c.b16 %v3488, %v3484
    %v3833 = vpack.c.b16 %v3493, %v3489
    %v3834 = vpack.c.b16 %v3494, %v3490
    %v3835 = vpack.c.b16 %v3495, %v3491
    %v3836 = vpack.c.b16 %v3496, %v3492
    %v3837 = vpack.c.b16 %v3501, %v3497
    %v3838 = vpack.c.b16 %v3502, %v3498
    %v3839 = vpack.c.b16 %v3503, %v3499
    %v3840 = vpack.c.b16 %v3504, %v3500
    %v3841 = vpack.c.b16 %v3509, %v3505
    %v3842 = vpack.c.b16 %v3510, %v3506
    %v3843 = vpack.c.b16 %v3511, %v3507
    %v3844 = vpack.c.b16 %v3512, %v3508
    %v3845 = vpack.c.b16 %v3517, %v3513
    %v3846 = vpack.c.b16 %v3518, %v3514
    %v3847 = vpack.c.b16 %v3519, %v3515
    %v3848 = vpack.c.b16 %v3520, %v3516
    %v3849 = vpack.c.b16 %v3525, %v3521
    %v3850 = vpack.c.b16 %v3526, %v3522
    %v3851 = vpack.c.b16 %v3527, %v3523
    %v3852 = vpack.c.b16 %v3528, %v3524
    %v3853 = vpack.c.b16 %v3533, %v3529
    %v3854 = vpack.c.b16 %v3534, %v3530
    %v3855 = vpack.c.b16 %v3535, %v3531
    %v3856 = vpack.c.b16 %v3536, %v3532
    %v3857 = vpack.c.b16 %v3541, %v3537
    %v3858 = vpack.c.b16 %v3542, %v3538
    %v3859 = vpack.c.b16 %v3543, %v3539
    %v3860 = vpack.c.b16 %v3544, %v3540
    %v3861 = vpack.c.b16 %v3549, %v3545
    %v3862 = vpack.c.b16 %v3550, %v3546
    %v3863 = vpack.c.b16 %v3551, %v3547
    %v3864 = vpack.c.b16 %v3552, %v3548
    %v3865 = vpack.c.b16 %v3557, %v3553
    %v3866 = vpack.c.b16 %v3558, %v3554
    %v3867 = vpack.c.b16 %v3559, %v3555
    %v3868 = vpack.c.b16 %v3560, %v3556
    %v3869 = vpack.c.b16 %v3565, %v3561
    %v3870 = vpack.c.b16 %v3566, %v3562
    %v3871 = vpack.c.b16 %v3567, %v3563
    %v3872 = vpack.c.b16 %v3568, %v3564
    %v3873 = vpack.c.b16 %v3573, %v3569
    %v3874 = vpack.c.b16 %v3574, %v3570
    %v3875 = vpack.c.b16 %v3575, %v3571
    %v3876 = vpack.c.b16 %v3576, %v3572
    %v3877 = vpack.c.b16 %v3581, %v3577
    %v3878 = vpack.c.b16 %v3582, %v3578
    %v3879 = vpack.c.b16 %v3583, %v3579
    %v3880 = vpack.c.b16 %v3584, %v3580
    %v3881 = vpack.c.b16 %v3589, %v3585
    %v3882 = vpack.c.b16 %v3590, %v3586
    %v3883 = vpack.c.b16 %v3591, %v3587
    %v3884 = vpack.c.b16 %v3592, %v3588
    %v3885 = vpack.c.b16 %v3597, %v3593
    %v3886 = vpack.c.b16 %v3598, %v3594
    %v3887 = vpack.c.b16 %v3599, %v3595
    %v3888 = vpack.c.b16 %v3600, %v3596
    %v3889 = vpack.c.b16 %v3605, %v3601
    %v3890 = vpack.c.b16 %v3606, %v3602
    %v3891 = vpack.c.b16 %v3607, %v3603
    %v3892 = vpack.c.b16 %v3608, %v3604
    %v3893 = vpack.c.b16 %v3613, %v3609
    %v3894 = vpack.c.b16 %v3614, %v3610
    %v3895 = vpack.c.b16 %v3615, %v3611
    %v3896 = vpack.c.b16 %v3616, %v3612
    %v3897 = vpack.c.b16 %v3621, %v3617
    %v3898 = vpack.c.b16 %v3622, %v3618
    %v3899 = vpack.c.b16 %v3623, %v3619
    %v3900 = vpack.c.b16 %v3624, %v3620
    %v3901 = vpack.c.b16 %v3629, %v3625
    %v3902 = vpack.c.b16 %v3630, %v3626
    %v3903 = vpack.c.b16 %v3631, %v3627
    %v3904 = vpack.c.b16 %v3632, %v3628
    %v3905 = vpack.c.b16 %v3637, %v3633
    %v3906 = vpack.c.b16 %v3638, %v3634
    %v3907 = vpack.c.b16 %v3639, %v3635
    %v3908 = vpack.c.b16 %v3640, %v3636
    %v3909 = vpack.c.b16 %v3645, %v3641
    %v3910 = vpack.c.b16 %v3646, %v3642
    %v3911 = vpack.c.b16 %v3647, %v3643
    %v3912 = vpack.c.b16 %v3648, %v3644
    %v3913 = vpack.c.b16 %v3653, %v3649
    %v3914 = vpack.c.b16 %v3654, %v3650
    %v3915 = vpack.c.b16 %v3655, %v3651
    %v3916 = vpack.c.b16 %v3656, %v3652
    %v3917 = vpack.c.b16 %v3661, %v3657
    %v3918 = vpack.c.b16 %v3662, %v3658
    %v3919 = vpack.c.b16 %v3663, %v3659
    %v3920 = vpack.c.b16 %v3664, %v3660
    %4177 = vmatprep.subr.bf16.mxu0 %v3694
    %4178 = vmatpush1.bf16.msra.mxu0 %v3693
    %4179 = vmatprep.subr.bf16.mxu0 %v3690
    %4180 = vmatpush1.bf16.msra.mxu0 %v3689
    %4181 = vmatprep.subr.bf16.mxu0 %v3686
    %4182 = vmatpush1.bf16.msra.mxu0 %v3685
    %4183 = vmatprep.subr.bf16.mxu0 %v3682
    %4184 = vmatpush1.bf16.msra.mxu0 %v3681
    %4185 = vmatprep.subr.bf16.mxu0 %v3678
    %4186 = vmatpush1.bf16.msra.mxu0 %v3677
    %4187 = vmatprep.subr.bf16.mxu0 %v3674
    %4188 = vmatpush1.bf16.msra.mxu0 %v3673
    %4189 = vmatprep.subr.bf16.mxu0 %v3670
    %4190 = vmatpush1.bf16.msra.mxu0 %v3669
    %4191 = vmatprep.subr.bf16.mxu0 %v3666
    %4192 = vmatpush1.bf16.msra.mxu0 %v3665
    %4193 = vmatprep.subr.bf16.mxu0 %v3726
    %4194 = vmatpush2.bf16.msra.mxu0 %v3725
    %4195 = vmatprep.subr.bf16.mxu0 %v3722
    %4196 = vmatpush2.bf16.msra.mxu0 %v3721
    %4197 = vmatprep.subr.bf16.mxu0 %v3718
    %4198 = vmatpush2.bf16.msra.mxu0 %v3717
    %4199 = vmatprep.subr.bf16.mxu0 %v3714
    %4200 = vmatpush2.bf16.msra.mxu0 %v3713
    %4201 = vmatprep.subr.bf16.mxu0 %v3710
    %4202 = vmatpush2.bf16.msra.mxu0 %v3709
    %4203 = vmatprep.subr.bf16.mxu0 %v3706
    %4204 = vmatpush2.bf16.msra.mxu0 %v3705
    %4205 = vmatprep.subr.bf16.mxu0 %v3702
    %4206 = vmatpush2.bf16.msra.mxu0 %v3701
    %4207 = vmatprep.subr.bf16.mxu0 %v3698
    %4208 = vmatpush2.bf16.msra.mxu0 %v3697
    %4209 = vmatprep.mubr.bf16.mxu0 %v2611
    %4210 = vmatmul.mubr.bf16.gmra.mxu0 %v2610
    %v4211 = vpop.f32.mrf.mxu0
    %v4212 = vadd.f32 %v2880, %v4211
    %v4213 = vpop.f32.mrf.mxu0
    %v4214 = vadd.f32 %v2884, %v4213
    %v4215 = vpop.f32.mrf.mxu0
    %v4216 = vpop.f32.mrf.mxu0
    %4217 = vdwg.mxu0
    %4218 = vmatprep.subr.bf16.mxu0 %v3758
    %4219 = vmatpush1.bf16.msra.mxu0 %v3757
    %4220 = vmatprep.subr.bf16.mxu0 %v3754
    %4221 = vmatpush1.bf16.msra.mxu0 %v3753
    %4222 = vmatprep.subr.bf16.mxu0 %v3750
    %4223 = vmatpush1.bf16.msra.mxu0 %v3749
    %4224 = vmatprep.subr.bf16.mxu0 %v3746
    %4225 = vmatpush1.bf16.msra.mxu0 %v3745
    %4226 = vmatprep.subr.bf16.mxu0 %v3742
    %4227 = vmatpush1.bf16.msra.mxu0 %v3741
    %4228 = vmatprep.subr.bf16.mxu0 %v3738
    %4229 = vmatpush1.bf16.msra.mxu0 %v3737
    %4230 = vmatprep.subr.bf16.mxu0 %v3734
    %4231 = vmatpush1.bf16.msra.mxu0 %v3733
    %4232 = vmatprep.subr.bf16.mxu0 %v3730
    %4233 = vmatpush1.bf16.msra.mxu0 %v3729
    %4234 = vmatprep.subr.bf16.mxu0 %v3790
    %4235 = vmatpush2.bf16.msra.mxu0 %v3789
    %4236 = vmatprep.subr.bf16.mxu0 %v3786
    %4237 = vmatpush2.bf16.msra.mxu0 %v3785
    %4238 = vmatprep.subr.bf16.mxu0 %v3782
    %4239 = vmatpush2.bf16.msra.mxu0 %v3781
    %4240 = vmatprep.subr.bf16.mxu0 %v3778
    %4241 = vmatpush2.bf16.msra.mxu0 %v3777
    %4242 = vmatprep.subr.bf16.mxu0 %v3774
    %4243 = vmatpush2.bf16.msra.mxu0 %v3773
    %4244 = vmatprep.subr.bf16.mxu0 %v3770
    %4245 = vmatpush2.bf16.msra.mxu0 %v3769
    %4246 = vmatprep.subr.bf16.mxu0 %v3766
    %4247 = vmatpush2.bf16.msra.mxu0 %v3765
    %4248 = vmatprep.subr.bf16.mxu0 %v3762
    %4249 = vmatpush2.bf16.msra.mxu0 %v3761
    %4250 = vmatprep.mubr.bf16.mxu0 %v2613
    %4251 = vmatmul.mubr.bf16.gmra.mxu0 %v2612
    %v4252 = vpop.f32.mrf.mxu0
    %v4253 = vadd.f32 %v4212, %v4252
    %v4254 = vpop.f32.mrf.mxu0
    %v4255 = vadd.f32 %v4214, %v4254
    %v4256 = vpop.f32.mrf.mxu0
    %v4257 = vpop.f32.mrf.mxu0
    %4258 = vdwg.mxu0
    %4259 = vmatprep.subr.bf16.mxu0 %v3822
    %4260 = vmatpush1.bf16.msra.mxu0 %v3821
    %4261 = vmatprep.subr.bf16.mxu0 %v3818
    %4262 = vmatpush1.bf16.msra.mxu0 %v3817
    %4263 = vmatprep.subr.bf16.mxu0 %v3814
    %4264 = vmatpush1.bf16.msra.mxu0 %v3813
    %4265 = vmatprep.subr.bf16.mxu0 %v3810
    %4266 = vmatpush1.bf16.msra.mxu0 %v3809
    %4267 = vmatprep.subr.bf16.mxu0 %v3806
    %4268 = vmatpush1.bf16.msra.mxu0 %v3805
    %4269 = vmatprep.subr.bf16.mxu0 %v3802
    %4270 = vmatpush1.bf16.msra.mxu0 %v3801
    %4271 = vmatprep.subr.bf16.mxu0 %v3798
    %4272 = vmatpush1.bf16.msra.mxu0 %v3797
    %4273 = vmatprep.subr.bf16.mxu0 %v3794
    %4274 = vmatpush1.bf16.msra.mxu0 %v3793
    %4275 = vmatprep.subr.bf16.mxu0 %v3854
    %4276 = vmatpush2.bf16.msra.mxu0 %v3853
    %4277 = vmatprep.subr.bf16.mxu0 %v3850
    %4278 = vmatpush2.bf16.msra.mxu0 %v3849
    %4279 = vmatprep.subr.bf16.mxu0 %v3846
    %4280 = vmatpush2.bf16.msra.mxu0 %v3845
    %4281 = vmatprep.subr.bf16.mxu0 %v3842
    %4282 = vmatpush2.bf16.msra.mxu0 %v3841
    %4283 = vmatprep.subr.bf16.mxu0 %v3838
    %4284 = vmatpush2.bf16.msra.mxu0 %v3837
    %4285 = vmatprep.subr.bf16.mxu0 %v3834
    %4286 = vmatpush2.bf16.msra.mxu0 %v3833
    %4287 = vmatprep.subr.bf16.mxu0 %v3830
    %4288 = vmatpush2.bf16.msra.mxu0 %v3829
    %4289 = vmatprep.subr.bf16.mxu0 %v3826
    %4290 = vmatpush2.bf16.msra.mxu0 %v3825
    %4291 = vmatprep.mubr.bf16.mxu0 %v2615
    %4292 = vmatmul.mubr.bf16.gmra.mxu0 %v2614
    %v4293 = vpop.f32.mrf.mxu0
    %v4294 = vadd.f32 %v4253, %v4293
    %v4295 = vpop.f32.mrf.mxu0
    %v4296 = vadd.f32 %v4255, %v4295
    %v4297 = vpop.f32.mrf.mxu0
    %v4298 = vpop.f32.mrf.mxu0
    %4299 = vdwg.mxu0
    %4300 = vmatprep.subr.bf16.mxu0 %v3886
    %4301 = vmatpush1.bf16.msra.mxu0 %v3885
    %4302 = vmatprep.subr.bf16.mxu0 %v3882
    %4303 = vmatpush1.bf16.msra.mxu0 %v3881
    %4304 = vmatprep.subr.bf16.mxu0 %v3878
    %4305 = vmatpush1.bf16.msra.mxu0 %v3877
    %4306 = vmatprep.subr.bf16.mxu0 %v3874
    %4307 = vmatpush1.bf16.msra.mxu0 %v3873
    %4308 = vmatprep.subr.bf16.mxu0 %v3870
    %4309 = vmatpush1.bf16.msra.mxu0 %v3869
    %4310 = vmatprep.subr.bf16.mxu0 %v3866
    %4311 = vmatpush1.bf16.msra.mxu0 %v3865
    %4312 = vmatprep.subr.bf16.mxu0 %v3862
    %4313 = vmatpush1.bf16.msra.mxu0 %v3861
    %4314 = vmatprep.subr.bf16.mxu0 %v3858
    %4315 = vmatpush1.bf16.msra.mxu0 %v3857
    %4316 = vmatprep.subr.bf16.mxu0 %v3918
    %4317 = vmatpush2.bf16.msra.mxu0 %v3917
    %4318 = vmatprep.subr.bf16.mxu0 %v3914
    %4319 = vmatpush2.bf16.msra.mxu0 %v3913
    %4320 = vmatprep.subr.bf16.mxu0 %v3910
    %4321 = vmatpush2.bf16.msra.mxu0 %v3909
    %4322 = vmatprep.subr.bf16.mxu0 %v3906
    %4323 = vmatpush2.bf16.msra.mxu0 %v3905
    %4324 = vmatprep.subr.bf16.mxu0 %v3902
    %4325 = vmatpush2.bf16.msra.mxu0 %v3901
    %4326 = vmatprep.subr.bf16.mxu0 %v3898
    %4327 = vmatpush2.bf16.msra.mxu0 %v3897
    %4328 = vmatprep.subr.bf16.mxu0 %v3894
    %4329 = vmatpush2.bf16.msra.mxu0 %v3893
    %4330 = vmatprep.subr.bf16.mxu0 %v3890
    %4331 = vmatpush2.bf16.msra.mxu0 %v3889
    %4332 = vmatprep.mubr.bf16.mxu0 %v2617
    %4333 = vmatmul.mubr.bf16.gmra.mxu0 %v2616
    %v4334 = vpop.f32.mrf.mxu0
    %v4335 = vadd.f32 %v4294, %v4334
    %v4336 = vpop.f32.mrf.mxu0
    %v4337 = vadd.f32 %v4296, %v4336
    %v4338 = vpop.f32.mrf.mxu0
    %v4339 = vpop.f32.mrf.mxu0
    %4340 = vdwg.mxu0
    %4341 = vmatprep.subr.bf16.mxu0 %v3696
    %4342 = vmatpush1.bf16.msra.mxu0 %v3695
    %4343 = vmatprep.subr.bf16.mxu0 %v3692
    %4344 = vmatpush1.bf16.msra.mxu0 %v3691
    %4345 = vmatprep.subr.bf16.mxu0 %v3688
    %4346 = vmatpush1.bf16.msra.mxu0 %v3687
    %4347 = vmatprep.subr.bf16.mxu0 %v3684
    %4348 = vmatpush1.bf16.msra.mxu0 %v3683
    %4349 = vmatprep.subr.bf16.mxu0 %v3680
    %4350 = vmatpush1.bf16.msra.mxu0 %v3679
    %4351 = vmatprep.subr.bf16.mxu0 %v3676
    %4352 = vmatpush1.bf16.msra.mxu0 %v3675
    %4353 = vmatprep.subr.bf16.mxu0 %v3672
    %4354 = vmatpush1.bf16.msra.mxu0 %v3671
    %4355 = vmatprep.subr.bf16.mxu0 %v3668
    %4356 = vmatpush1.bf16.msra.mxu0 %v3667
    %4357 = vmatprep.subr.bf16.mxu0 %v3728
    %4358 = vmatpush2.bf16.msra.mxu0 %v3727
    %4359 = vmatprep.subr.bf16.mxu0 %v3724
    %4360 = vmatpush2.bf16.msra.mxu0 %v3723
    %4361 = vmatprep.subr.bf16.mxu0 %v3720
    %4362 = vmatpush2.bf16.msra.mxu0 %v3719
    %4363 = vmatprep.subr.bf16.mxu0 %v3716
    %4364 = vmatpush2.bf16.msra.mxu0 %v3715
    %4365 = vmatprep.subr.bf16.mxu0 %v3712
    %4366 = vmatpush2.bf16.msra.mxu0 %v3711
    %4367 = vmatprep.subr.bf16.mxu0 %v3708
    %4368 = vmatpush2.bf16.msra.mxu0 %v3707
    %4369 = vmatprep.subr.bf16.mxu0 %v3704
    %4370 = vmatpush2.bf16.msra.mxu0 %v3703
    %4371 = vmatprep.subr.bf16.mxu0 %v3700
    %4372 = vmatpush2.bf16.msra.mxu0 %v3699
    %4373 = vmatprep.mubr.bf16.mxu0 %v2611
    %4374 = vmatmul.mubr.bf16.gmra.mxu0 %v2610
    %v4375 = vpop.f32.mrf.mxu0
    %v4376 = vadd.f32 %v2888, %v4375
    %v4377 = vpop.f32.mrf.mxu0
    %v4378 = vadd.f32 %v2892, %v4377
    %v4379 = vpop.f32.mrf.mxu0
    %v4380 = vpop.f32.mrf.mxu0
    %4381 = vdwg.mxu0
    %4382 = vmatprep.subr.bf16.mxu0 %v3760
    %4383 = vmatpush1.bf16.msra.mxu0 %v3759
    %4384 = vmatprep.subr.bf16.mxu0 %v3756
    %4385 = vmatpush1.bf16.msra.mxu0 %v3755
    %4386 = vmatprep.subr.bf16.mxu0 %v3752
    %4387 = vmatpush1.bf16.msra.mxu0 %v3751
    %4388 = vmatprep.subr.bf16.mxu0 %v3748
    %4389 = vmatpush1.bf16.msra.mxu0 %v3747
    %4390 = vmatprep.subr.bf16.mxu0 %v3744
    %4391 = vmatpush1.bf16.msra.mxu0 %v3743
    %4392 = vmatprep.subr.bf16.mxu0 %v3740
    %4393 = vmatpush1.bf16.msra.mxu0 %v3739
    %4394 = vmatprep.subr.bf16.mxu0 %v3736
    %4395 = vmatpush1.bf16.msra.mxu0 %v3735
    %4396 = vmatprep.subr.bf16.mxu0 %v3732
    %4397 = vmatpush1.bf16.msra.mxu0 %v3731
    %4398 = vmatprep.subr.bf16.mxu0 %v3792
    %4399 = vmatpush2.bf16.msra.mxu0 %v3791
    %4400 = vmatprep.subr.bf16.mxu0 %v3788
    %4401 = vmatpush2.bf16.msra.mxu0 %v3787
    %4402 = vmatprep.subr.bf16.mxu0 %v3784
    %4403 = vmatpush2.bf16.msra.mxu0 %v3783
    %4404 = vmatprep.subr.bf16.mxu0 %v3780
    %4405 = vmatpush2.bf16.msra.mxu0 %v3779
    %4406 = vmatprep.subr.bf16.mxu0 %v3776
    %4407 = vmatpush2.bf16.msra.mxu0 %v3775
    %4408 = vmatprep.subr.bf16.mxu0 %v3772
    %4409 = vmatpush2.bf16.msra.mxu0 %v3771
    %4410 = vmatprep.subr.bf16.mxu0 %v3768
    %4411 = vmatpush2.bf16.msra.mxu0 %v3767
    %4412 = vmatprep.subr.bf16.mxu0 %v3764
    %4413 = vmatpush2.bf16.msra.mxu0 %v3763
    %4414 = vmatprep.mubr.bf16.mxu0 %v2613
    %4415 = vmatmul.mubr.bf16.gmra.mxu0 %v2612
    %v4416 = vpop.f32.mrf.mxu0
    %v4417 = vadd.f32 %v4376, %v4416
    %v4418 = vpop.f32.mrf.mxu0
    %v4419 = vadd.f32 %v4378, %v4418
    %v4420 = vpop.f32.mrf.mxu0
    %v4421 = vpop.f32.mrf.mxu0
    %4422 = vdwg.mxu0
    %4423 = vmatprep.subr.bf16.mxu0 %v3824
    %4424 = vmatpush1.bf16.msra.mxu0 %v3823
    %4425 = vmatprep.subr.bf16.mxu0 %v3820
    %4426 = vmatpush1.bf16.msra.mxu0 %v3819
    %4427 = vmatprep.subr.bf16.mxu0 %v3816
    %4428 = vmatpush1.bf16.msra.mxu0 %v3815
    %4429 = vmatprep.subr.bf16.mxu0 %v3812
    %4430 = vmatpush1.bf16.msra.mxu0 %v3811
    %4431 = vmatprep.subr.bf16.mxu0 %v3808
    %4432 = vmatpush1.bf16.msra.mxu0 %v3807
    %4433 = vmatprep.subr.bf16.mxu0 %v3804
    %4434 = vmatpush1.bf16.msra.mxu0 %v3803
    %4435 = vmatprep.subr.bf16.mxu0 %v3800
    %4436 = vmatpush1.bf16.msra.mxu0 %v3799
    %4437 = vmatprep.subr.bf16.mxu0 %v3796
    %4438 = vmatpush1.bf16.msra.mxu0 %v3795
    %4439 = vmatprep.subr.bf16.mxu0 %v3856
    %4440 = vmatpush2.bf16.msra.mxu0 %v3855
    %4441 = vmatprep.subr.bf16.mxu0 %v3852
    %4442 = vmatpush2.bf16.msra.mxu0 %v3851
    %4443 = vmatprep.subr.bf16.mxu0 %v3848
    %4444 = vmatpush2.bf16.msra.mxu0 %v3847
    %4445 = vmatprep.subr.bf16.mxu0 %v3844
    %4446 = vmatpush2.bf16.msra.mxu0 %v3843
    %4447 = vmatprep.subr.bf16.mxu0 %v3840
    %4448 = vmatpush2.bf16.msra.mxu0 %v3839
    %4449 = vmatprep.subr.bf16.mxu0 %v3836
    %4450 = vmatpush2.bf16.msra.mxu0 %v3835
    %4451 = vmatprep.subr.bf16.mxu0 %v3832
    %4452 = vmatpush2.bf16.msra.mxu0 %v3831
    %4453 = vmatprep.subr.bf16.mxu0 %v3828
    %4454 = vmatpush2.bf16.msra.mxu0 %v3827
    %4455 = vmatprep.mubr.bf16.mxu0 %v2615
    %4456 = vmatmul.mubr.bf16.gmra.mxu0 %v2614
    %v4457 = vpop.f32.mrf.mxu0
    %v4458 = vadd.f32 %v4417, %v4457
    %v4459 = vpop.f32.mrf.mxu0
    %v4460 = vadd.f32 %v4419, %v4459
    %v4461 = vpop.f32.mrf.mxu0
    %v4462 = vpop.f32.mrf.mxu0
    %4463 = vdwg.mxu0
    %4464 = vmatprep.subr.bf16.mxu0 %v3888
    %4465 = vmatpush1.bf16.msra.mxu0 %v3887
    %4466 = vmatprep.subr.bf16.mxu0 %v3884
    %4467 = vmatpush1.bf16.msra.mxu0 %v3883
    %4468 = vmatprep.subr.bf16.mxu0 %v3880
    %4469 = vmatpush1.bf16.msra.mxu0 %v3879
    %4470 = vmatprep.subr.bf16.mxu0 %v3876
    %4471 = vmatpush1.bf16.msra.mxu0 %v3875
    %4472 = vmatprep.subr.bf16.mxu0 %v3872
    %4473 = vmatpush1.bf16.msra.mxu0 %v3871
    %4474 = vmatprep.subr.bf16.mxu0 %v3868
    %4475 = vmatpush1.bf16.msra.mxu0 %v3867
    %4476 = vmatprep.subr.bf16.mxu0 %v3864
    %4477 = vmatpush1.bf16.msra.mxu0 %v3863
    %4478 = vmatprep.subr.bf16.mxu0 %v3860
    %4479 = vmatpush1.bf16.msra.mxu0 %v3859
    %4480 = vmatprep.subr.bf16.mxu0 %v3920
    %4481 = vmatpush2.bf16.msra.mxu0 %v3919
    %4482 = vmatprep.subr.bf16.mxu0 %v3916
    %4483 = vmatpush2.bf16.msra.mxu0 %v3915
    %4484 = vmatprep.subr.bf16.mxu0 %v3912
    %4485 = vmatpush2.bf16.msra.mxu0 %v3911
    %4486 = vmatprep.subr.bf16.mxu0 %v3908
    %4487 = vmatpush2.bf16.msra.mxu0 %v3907
    %4488 = vmatprep.subr.bf16.mxu0 %v3904
    %4489 = vmatpush2.bf16.msra.mxu0 %v3903
    %4490 = vmatprep.subr.bf16.mxu0 %v3900
    %4491 = vmatpush2.bf16.msra.mxu0 %v3899
    %4492 = vmatprep.subr.bf16.mxu0 %v3896
    %4493 = vmatpush2.bf16.msra.mxu0 %v3895
    %4494 = vmatprep.subr.bf16.mxu0 %v3892
    %4495 = vmatpush2.bf16.msra.mxu0 %v3891
    %4496 = vmatprep.mubr.bf16.mxu0 %v2617
    %4497 = vmatmul.mubr.bf16.gmra.mxu0 %v2616
    %v4498 = vpop.f32.mrf.mxu0
    %v4499 = vadd.f32 %v4458, %v4498
    %v4500 = vpop.f32.mrf.mxu0
    %v4501 = vadd.f32 %v4460, %v4500
    %v4502 = vpop.f32.mrf.mxu0
    %v4503 = vpop.f32.mrf.mxu0
    %4504 = vdwg.mxu0
    %v4505 = vmax.f32 %v4335, 0.0
    %v4506 = vmax.f32 %v4337, 0.0
    %v4507 = vmax.f32 %v4499, 0.0
    %v4508 = vmax.f32 %v4501, 0.0
    %v4509 = vpack.c.bf16 %v4505, %v4505
    %v4510 = vpack.c.bf16 %v4506, %v4506
    %v4511 = vpack.c.bf16 %v4507, %v4507
    %v4512 = vpack.c.bf16 %v4508, %v4508
    %v4513 = vld [vmem:[#allocation8] sm:$0xff]
    %v4514 = vld [vmem:[#allocation8 + $0x8] sm:$0xff]
    %v4515 = vld [vmem:[#allocation8 + $0x10] sm:$0xff]
    %v4516 = vld [vmem:[#allocation8 + $0x18] sm:$0xff]
    %v4517 = vld [vmem:[#allocation8 + $0x20] sm:$0xff]
    %v4518 = vld [vmem:[#allocation8 + $0x28] sm:$0xff]
    %v4519 = vld [vmem:[#allocation8 + $0x30] sm:$0xff]
    %v4520 = vld [vmem:[#allocation8 + $0x38] sm:$0xff]
    %v4521 = vld [vmem:[#allocation8 + $0x40] sm:$0xff]
    %v4522 = vld [vmem:[#allocation8 + $0x48] sm:$0xff]
    %v4523 = vld [vmem:[#allocation8 + $0x50] sm:$0xff]
    %v4524 = vld [vmem:[#allocation8 + $0x58] sm:$0xff]
    %v4525 = vld [vmem:[#allocation8 + $0x60] sm:$0xff]
    %v4526 = vld [vmem:[#allocation8 + $0x68] sm:$0xff]
    %v4527 = vld [vmem:[#allocation8 + $0x70] sm:$0xff]
    %v4528 = vld [vmem:[#allocation8 + $0x78] sm:$0xff]
    %v4529 = vld [vmem:[#allocation8 + $0x80] sm:$0xff]
    %v4530 = vld [vmem:[#allocation8 + $0x88] sm:$0xff]
    %v4531 = vld [vmem:[#allocation8 + $0x90] sm:$0xff]
    %v4532 = vld [vmem:[#allocation8 + $0x98] sm:$0xff]
    %v4533 = vld [vmem:[#allocation8 + $0xa0] sm:$0xff]
    %v4534 = vld [vmem:[#allocation8 + $0xa8] sm:$0xff]
    %v4535 = vld [vmem:[#allocation8 + $0xb0] sm:$0xff]
    %v4536 = vld [vmem:[#allocation8 + $0xb8] sm:$0xff]
    %v4537 = vld [vmem:[#allocation8 + $0xc0] sm:$0xff]
    %v4538 = vld [vmem:[#allocation8 + $0xc8] sm:$0xff]
    %v4539 = vld [vmem:[#allocation8 + $0xd0] sm:$0xff]
    %v4540 = vld [vmem:[#allocation8 + $0xd8] sm:$0xff]
    %v4541 = vld [vmem:[#allocation8 + $0xe0] sm:$0xff]
    %v4542 = vld [vmem:[#allocation8 + $0xe8] sm:$0xff]
    %v4543 = vld [vmem:[#allocation8 + $0xf0] sm:$0xff]
    %v4544 = vld [vmem:[#allocation8 + $0xf8] sm:$0xff]
    %v4545 = vld [vmem:[#allocation8 + $0x100] sm:$0xff]
    %v4546 = vld [vmem:[#allocation8 + $0x108] sm:$0xff]
    %v4547 = vld [vmem:[#allocation8 + $0x110] sm:$0xff]
    %v4548 = vld [vmem:[#allocation8 + $0x118] sm:$0xff]
    %v4549 = vld [vmem:[#allocation8 + $0x120] sm:$0xff]
    %v4550 = vld [vmem:[#allocation8 + $0x128] sm:$0xff]
    %v4551 = vld [vmem:[#allocation8 + $0x130] sm:$0xff]
    %v4552 = vld [vmem:[#allocation8 + $0x138] sm:$0xff]
    %v4553 = vld [vmem:[#allocation8 + $0x140] sm:$0xff]
    %v4554 = vld [vmem:[#allocation8 + $0x148] sm:$0xff]
    %v4555 = vld [vmem:[#allocation8 + $0x150] sm:$0xff]
    %v4556 = vld [vmem:[#allocation8 + $0x158] sm:$0xff]
    %v4557 = vld [vmem:[#allocation8 + $0x160] sm:$0xff]
    %v4558 = vld [vmem:[#allocation8 + $0x168] sm:$0xff]
    %v4559 = vld [vmem:[#allocation8 + $0x170] sm:$0xff]
    %v4560 = vld [vmem:[#allocation8 + $0x178] sm:$0xff]
    %v4561 = vld [vmem:[#allocation8 + $0x180] sm:$0xff]
    %v4562 = vld [vmem:[#allocation8 + $0x188] sm:$0xff]
    %v4563 = vld [vmem:[#allocation8 + $0x190] sm:$0xff]
    %v4564 = vld [vmem:[#allocation8 + $0x198] sm:$0xff]
    %v4565 = vld [vmem:[#allocation8 + $0x1a0] sm:$0xff]
    %v4566 = vld [vmem:[#allocation8 + $0x1a8] sm:$0xff]
    %v4567 = vld [vmem:[#allocation8 + $0x1b0] sm:$0xff]
    %v4568 = vld [vmem:[#allocation8 + $0x1b8] sm:$0xff]
    %v4569 = vld [vmem:[#allocation8 + $0x1c0] sm:$0xff]
    %v4570 = vld [vmem:[#allocation8 + $0x1c8] sm:$0xff]
    %v4571 = vld [vmem:[#allocation8 + $0x1d0] sm:$0xff]
    %v4572 = vld [vmem:[#allocation8 + $0x1d8] sm:$0xff]
    %v4573 = vld [vmem:[#allocation8 + $0x1e0] sm:$0xff]
    %v4574 = vld [vmem:[#allocation8 + $0x1e8] sm:$0xff]
    %v4575 = vld [vmem:[#allocation8 + $0x1f0] sm:$0xff]
    %v4576 = vld [vmem:[#allocation8 + $0x1f8] sm:$0xff]
    %s4577 = scalar_lea.vmem [#allocation14], 2
    %v4578 = vld [vmem:[%s4577] ss:$8 sm:$0x3]
    %v4580 = vlaneseq
    %v4581 = vshrl.u32 %v4580, 7
    %v4582 = vsub.s32 0, %v4581
    %v4583 = vrot.slane %v4578, %v4582
    %v4584 = vlaneseq
    %v4585 = vshrl.u32 %v4584, 7
    %v4586 = vsub.s32 1, %v4585
    %v4587 = vrot.slane %v4578, %v4586
    %v4654 = vunpack.c.l.b16 %v4513
    %v4655 = vunpack.c.h.b16 %v4513
    %v4656 = vunpack.c.l.b16 %v4514
    %v4657 = vunpack.c.h.b16 %v4514
    %v4658 = vunpack.c.l.b16 %v4515
    %v4659 = vunpack.c.h.b16 %v4515
    %v4660 = vunpack.c.l.b16 %v4516
    %v4661 = vunpack.c.h.b16 %v4516
    %v4662 = vunpack.c.l.b16 %v4517
    %v4663 = vunpack.c.h.b16 %v4517
    %v4664 = vunpack.c.l.b16 %v4518
    %v4665 = vunpack.c.h.b16 %v4518
    %v4666 = vunpack.c.l.b16 %v4519
    %v4667 = vunpack.c.h.b16 %v4519
    %v4668 = vunpack.c.l.b16 %v4520
    %v4669 = vunpack.c.h.b16 %v4520
    %v4670 = vunpack.c.l.b16 %v4521
    %v4671 = vunpack.c.h.b16 %v4521
    %v4672 = vunpack.c.l.b16 %v4522
    %v4673 = vunpack.c.h.b16 %v4522
    %v4674 = vunpack.c.l.b16 %v4523
    %v4675 = vunpack.c.h.b16 %v4523
    %v4676 = vunpack.c.l.b16 %v4524
    %v4677 = vunpack.c.h.b16 %v4524
    %v4678 = vunpack.c.l.b16 %v4525
    %v4679 = vunpack.c.h.b16 %v4525
    %v4680 = vunpack.c.l.b16 %v4526
    %v4681 = vunpack.c.h.b16 %v4526
    %v4682 = vunpack.c.l.b16 %v4527
    %v4683 = vunpack.c.h.b16 %v4527
    %v4684 = vunpack.c.l.b16 %v4528
    %v4685 = vunpack.c.h.b16 %v4528
    %v4686 = vunpack.c.l.b16 %v4529
    %v4687 = vunpack.c.h.b16 %v4529
    %v4688 = vunpack.c.l.b16 %v4530
    %v4689 = vunpack.c.h.b16 %v4530
    %v4690 = vunpack.c.l.b16 %v4531
    %v4691 = vunpack.c.h.b16 %v4531
    %v4692 = vunpack.c.l.b16 %v4532
    %v4693 = vunpack.c.h.b16 %v4532
    %v4694 = vunpack.c.l.b16 %v4533
    %v4695 = vunpack.c.h.b16 %v4533
    %v4696 = vunpack.c.l.b16 %v4534
    %v4697 = vunpack.c.h.b16 %v4534
    %v4698 = vunpack.c.l.b16 %v4535
    %v4699 = vunpack.c.h.b16 %v4535
    %v4700 = vunpack.c.l.b16 %v4536
    %v4701 = vunpack.c.h.b16 %v4536
    %v4702 = vunpack.c.l.b16 %v4537
    %v4703 = vunpack.c.h.b16 %v4537
    %v4704 = vunpack.c.l.b16 %v4538
    %v4705 = vunpack.c.h.b16 %v4538
    %v4706 = vunpack.c.l.b16 %v4539
    %v4707 = vunpack.c.h.b16 %v4539
    %v4708 = vunpack.c.l.b16 %v4540
    %v4709 = vunpack.c.h.b16 %v4540
    %v4710 = vunpack.c.l.b16 %v4541
    %v4711 = vunpack.c.h.b16 %v4541
    %v4712 = vunpack.c.l.b16 %v4542
    %v4713 = vunpack.c.h.b16 %v4542
    %v4714 = vunpack.c.l.b16 %v4543
    %v4715 = vunpack.c.h.b16 %v4543
    %v4716 = vunpack.c.l.b16 %v4544
    %v4717 = vunpack.c.h.b16 %v4544
    %v4718 = vunpack.c.l.b16 %v4545
    %v4719 = vunpack.c.h.b16 %v4545
    %v4720 = vunpack.c.l.b16 %v4546
    %v4721 = vunpack.c.h.b16 %v4546
    %v4722 = vunpack.c.l.b16 %v4547
    %v4723 = vunpack.c.h.b16 %v4547
    %v4724 = vunpack.c.l.b16 %v4548
    %v4725 = vunpack.c.h.b16 %v4548
    %v4726 = vunpack.c.l.b16 %v4549
    %v4727 = vunpack.c.h.b16 %v4549
    %v4728 = vunpack.c.l.b16 %v4550
    %v4729 = vunpack.c.h.b16 %v4550
    %v4730 = vunpack.c.l.b16 %v4551
    %v4731 = vunpack.c.h.b16 %v4551
    %v4732 = vunpack.c.l.b16 %v4552
    %v4733 = vunpack.c.h.b16 %v4552
    %v4734 = vunpack.c.l.b16 %v4553
    %v4735 = vunpack.c.h.b16 %v4553
    %v4736 = vunpack.c.l.b16 %v4554
    %v4737 = vunpack.c.h.b16 %v4554
    %v4738 = vunpack.c.l.b16 %v4555
    %v4739 = vunpack.c.h.b16 %v4555
    %v4740 = vunpack.c.l.b16 %v4556
    %v4741 = vunpack.c.h.b16 %v4556
    %v4742 = vunpack.c.l.b16 %v4557
    %v4743 = vunpack.c.h.b16 %v4557
    %v4744 = vunpack.c.l.b16 %v4558
    %v4745 = vunpack.c.h.b16 %v4558
    %v4746 = vunpack.c.l.b16 %v4559
    %v4747 = vunpack.c.h.b16 %v4559
    %v4748 = vunpack.c.l.b16 %v4560
    %v4749 = vunpack.c.h.b16 %v4560
    %v4750 = vunpack.c.l.b16 %v4561
    %v4751 = vunpack.c.h.b16 %v4561
    %v4752 = vunpack.c.l.b16 %v4562
    %v4753 = vunpack.c.h.b16 %v4562
    %v4754 = vunpack.c.l.b16 %v4563
    %v4755 = vunpack.c.h.b16 %v4563
    %v4756 = vunpack.c.l.b16 %v4564
    %v4757 = vunpack.c.h.b16 %v4564
    %v4758 = vunpack.c.l.b16 %v4565
    %v4759 = vunpack.c.h.b16 %v4565
    %v4760 = vunpack.c.l.b16 %v4566
    %v4761 = vunpack.c.h.b16 %v4566
    %v4762 = vunpack.c.l.b16 %v4567
    %v4763 = vunpack.c.h.b16 %v4567
    %v4764 = vunpack.c.l.b16 %v4568
    %v4765 = vunpack.c.h.b16 %v4568
    %v4766 = vunpack.c.l.b16 %v4569
    %v4767 = vunpack.c.h.b16 %v4569
    %v4768 = vunpack.c.l.b16 %v4570
    %v4769 = vunpack.c.h.b16 %v4570
    %v4770 = vunpack.c.l.b16 %v4571
    %v4771 = vunpack.c.h.b16 %v4571
    %v4772 = vunpack.c.l.b16 %v4572
    %v4773 = vunpack.c.h.b16 %v4572
    %v4774 = vunpack.c.l.b16 %v4573
    %v4775 = vunpack.c.h.b16 %v4573
    %v4776 = vunpack.c.l.b16 %v4574
    %v4777 = vunpack.c.h.b16 %v4574
    %v4778 = vunpack.c.l.b16 %v4575
    %v4779 = vunpack.c.h.b16 %v4575
    %v4780 = vunpack.c.l.b16 %v4576
    %v4781 = vunpack.c.h.b16 %v4576
    %v4782 = vpack.c.b16 %v4656, %v4654
    %v4783 = vpack.c.b16 %v4657, %v4655
    %v4784 = vpack.c.b16 %v4660, %v4658
    %v4785 = vpack.c.b16 %v4661, %v4659
    %v4786 = vpack.c.b16 %v4664, %v4662
    %v4787 = vpack.c.b16 %v4665, %v4663
    %v4788 = vpack.c.b16 %v4668, %v4666
    %v4789 = vpack.c.b16 %v4669, %v4667
    %v4790 = vpack.c.b16 %v4672, %v4670
    %v4791 = vpack.c.b16 %v4673, %v4671
    %v4792 = vpack.c.b16 %v4676, %v4674
    %v4793 = vpack.c.b16 %v4677, %v4675
    %v4794 = vpack.c.b16 %v4680, %v4678
    %v4795 = vpack.c.b16 %v4681, %v4679
    %v4796 = vpack.c.b16 %v4684, %v4682
    %v4797 = vpack.c.b16 %v4685, %v4683
    %v4798 = vpack.c.b16 %v4688, %v4686
    %v4799 = vpack.c.b16 %v4689, %v4687
    %v4800 = vpack.c.b16 %v4692, %v4690
    %v4801 = vpack.c.b16 %v4693, %v4691
    %v4802 = vpack.c.b16 %v4696, %v4694
    %v4803 = vpack.c.b16 %v4697, %v4695
    %v4804 = vpack.c.b16 %v4700, %v4698
    %v4805 = vpack.c.b16 %v4701, %v4699
    %v4806 = vpack.c.b16 %v4704, %v4702
    %v4807 = vpack.c.b16 %v4705, %v4703
    %v4808 = vpack.c.b16 %v4708, %v4706
    %v4809 = vpack.c.b16 %v4709, %v4707
    %v4810 = vpack.c.b16 %v4712, %v4710
    %v4811 = vpack.c.b16 %v4713, %v4711
    %v4812 = vpack.c.b16 %v4716, %v4714
    %v4813 = vpack.c.b16 %v4717, %v4715
    %v4814 = vpack.c.b16 %v4720, %v4718
    %v4815 = vpack.c.b16 %v4721, %v4719
    %v4816 = vpack.c.b16 %v4724, %v4722
    %v4817 = vpack.c.b16 %v4725, %v4723
    %v4818 = vpack.c.b16 %v4728, %v4726
    %v4819 = vpack.c.b16 %v4729, %v4727
    %v4820 = vpack.c.b16 %v4732, %v4730
    %v4821 = vpack.c.b16 %v4733, %v4731
    %v4822 = vpack.c.b16 %v4736, %v4734
    %v4823 = vpack.c.b16 %v4737, %v4735
    %v4824 = vpack.c.b16 %v4740, %v4738
    %v4825 = vpack.c.b16 %v4741, %v4739
    %v4826 = vpack.c.b16 %v4744, %v4742
    %v4827 = vpack.c.b16 %v4745, %v4743
    %v4828 = vpack.c.b16 %v4748, %v4746
    %v4829 = vpack.c.b16 %v4749, %v4747
    %v4830 = vpack.c.b16 %v4752, %v4750
    %v4831 = vpack.c.b16 %v4753, %v4751
    %v4832 = vpack.c.b16 %v4756, %v4754
    %v4833 = vpack.c.b16 %v4757, %v4755
    %v4834 = vpack.c.b16 %v4760, %v4758
    %v4835 = vpack.c.b16 %v4761, %v4759
    %v4836 = vpack.c.b16 %v4764, %v4762
    %v4837 = vpack.c.b16 %v4765, %v4763
    %v4838 = vpack.c.b16 %v4768, %v4766
    %v4839 = vpack.c.b16 %v4769, %v4767
    %v4840 = vpack.c.b16 %v4772, %v4770
    %v4841 = vpack.c.b16 %v4773, %v4771
    %v4842 = vpack.c.b16 %v4776, %v4774
    %v4843 = vpack.c.b16 %v4777, %v4775
    %v4844 = vpack.c.b16 %v4780, %v4778
    %v4845 = vpack.c.b16 %v4781, %v4779
    %4910 = vmatprep.subr.bf16.mxu0 %v4797
    %4911 = vmatpush1.bf16.msra.mxu0 %v4796
    %4912 = vmatprep.subr.bf16.mxu0 %v4795
    %4913 = vmatpush1.bf16.msra.mxu0 %v4794
    %4914 = vmatprep.subr.bf16.mxu0 %v4793
    %4915 = vmatpush1.bf16.msra.mxu0 %v4792
    %4916 = vmatprep.subr.bf16.mxu0 %v4791
    %4917 = vmatpush1.bf16.msra.mxu0 %v4790
    %4918 = vmatprep.subr.bf16.mxu0 %v4789
    %4919 = vmatpush1.bf16.msra.mxu0 %v4788
    %4920 = vmatprep.subr.bf16.mxu0 %v4787
    %4921 = vmatpush1.bf16.msra.mxu0 %v4786
    %4922 = vmatprep.subr.bf16.mxu0 %v4785
    %4923 = vmatpush1.bf16.msra.mxu0 %v4784
    %4924 = vmatprep.subr.bf16.mxu0 %v4783
    %4925 = vmatpush1.bf16.msra.mxu0 %v4782
    %4926 = vmatprep.subr.bf16.mxu0 %v4813
    %4927 = vmatpush2.bf16.msra.mxu0 %v4812
    %4928 = vmatprep.subr.bf16.mxu0 %v4811
    %4929 = vmatpush2.bf16.msra.mxu0 %v4810
    %4930 = vmatprep.subr.bf16.mxu0 %v4809
    %4931 = vmatpush2.bf16.msra.mxu0 %v4808
    %4932 = vmatprep.subr.bf16.mxu0 %v4807
    %4933 = vmatpush2.bf16.msra.mxu0 %v4806
    %4934 = vmatprep.subr.bf16.mxu0 %v4805
    %4935 = vmatpush2.bf16.msra.mxu0 %v4804
    %4936 = vmatprep.subr.bf16.mxu0 %v4803
    %4937 = vmatpush2.bf16.msra.mxu0 %v4802
    %4938 = vmatprep.subr.bf16.mxu0 %v4801
    %4939 = vmatpush2.bf16.msra.mxu0 %v4800
    %4940 = vmatprep.subr.bf16.mxu0 %v4799
    %4941 = vmatpush2.bf16.msra.mxu0 %v4798
    %4942 = vmatprep.mubr.bf16.mxu0 %v4510
    %4943 = vmatmul.mubr.bf16.gmra.mxu0 %v4509
    %v4944 = vpop.f32.mrf.mxu0
    %v4945 = vadd.f32 %v4583, %v4944
    %v4946 = vpop.f32.mrf.mxu0
    %v4947 = vadd.f32 %v4587, %v4946
    %v4948 = vpop.f32.mrf.mxu0
    %v4949 = vpop.f32.mrf.mxu0
    %4950 = vdwg.mxu0
    %4951 = vmatprep.subr.bf16.mxu0 %v4829
    %4952 = vmatpush1.bf16.msra.mxu0 %v4828
    %4953 = vmatprep.subr.bf16.mxu0 %v4827
    %4954 = vmatpush1.bf16.msra.mxu0 %v4826
    %4955 = vmatprep.subr.bf16.mxu0 %v4825
    %4956 = vmatpush1.bf16.msra.mxu0 %v4824
    %4957 = vmatprep.subr.bf16.mxu0 %v4823
    %4958 = vmatpush1.bf16.msra.mxu0 %v4822
    %4959 = vmatprep.subr.bf16.mxu0 %v4821
    %4960 = vmatpush1.bf16.msra.mxu0 %v4820
    %4961 = vmatprep.subr.bf16.mxu0 %v4819
    %4962 = vmatpush1.bf16.msra.mxu0 %v4818
    %4963 = vmatprep.subr.bf16.mxu0 %v4817
    %4964 = vmatpush1.bf16.msra.mxu0 %v4816
    %4965 = vmatprep.subr.bf16.mxu0 %v4815
    %4966 = vmatpush1.bf16.msra.mxu0 %v4814
    %4967 = vmatprep.subr.bf16.mxu0 %v4845
    %4968 = vmatpush2.bf16.msra.mxu0 %v4844
    %4969 = vmatprep.subr.bf16.mxu0 %v4843
    %4970 = vmatpush2.bf16.msra.mxu0 %v4842
    %4971 = vmatprep.subr.bf16.mxu0 %v4841
    %4972 = vmatpush2.bf16.msra.mxu0 %v4840
    %4973 = vmatprep.subr.bf16.mxu0 %v4839
    %4974 = vmatpush2.bf16.msra.mxu0 %v4838
    %4975 = vmatprep.subr.bf16.mxu0 %v4837
    %4976 = vmatpush2.bf16.msra.mxu0 %v4836
    %4977 = vmatprep.subr.bf16.mxu0 %v4835
    %4978 = vmatpush2.bf16.msra.mxu0 %v4834
    %4979 = vmatprep.subr.bf16.mxu0 %v4833
    %4980 = vmatpush2.bf16.msra.mxu0 %v4832
    %4981 = vmatprep.subr.bf16.mxu0 %v4831
    %4982 = vmatpush2.bf16.msra.mxu0 %v4830
    %4983 = vmatprep.mubr.bf16.mxu0 %v4512
    %4984 = vmatmul.mubr.bf16.gmra.mxu0 %v4511
    %v4985 = vpop.f32.mrf.mxu0
    %v4986 = vadd.f32 %v4945, %v4985
    %v4987 = vpop.f32.mrf.mxu0
    %v4988 = vadd.f32 %v4947, %v4987
    %v4989 = vpop.f32.mrf.mxu0
    %v4990 = vpop.f32.mrf.mxu0
    %4991 = vdwg.mxu0
    %v4992 = vmax.f32 %v4986, 0.0
    %v4993 = vmax.f32 %v4988, 0.0
    %v4994 = vpack.c.bf16 %v4992, %v4992
    %v4995 = vpack.c.bf16 %v4993, %v4993
    %v4996 = vld [vmem:[#allocation10] sm:$0xf]
    %v4997 = vld [vmem:[#allocation10 + $0x4] sm:$0xf]
    %v4998 = vld [vmem:[#allocation10 + $0x8] sm:$0xf]
    %v4999 = vld [vmem:[#allocation10 + $0xc] sm:$0xf]
    %v5000 = vld [vmem:[#allocation10 + $0x10] sm:$0xf]
    %v5001 = vld [vmem:[#allocation10 + $0x14] sm:$0xf]
    %v5002 = vld [vmem:[#allocation10 + $0x18] sm:$0xf]
    %v5003 = vld [vmem:[#allocation10 + $0x1c] sm:$0xf]
    %v5004 = vld [vmem:[#allocation10 + $0x20] sm:$0xf]
    %v5005 = vld [vmem:[#allocation10 + $0x24] sm:$0xf]
    %v5006 = vld [vmem:[#allocation10 + $0x28] sm:$0xf]
    %v5007 = vld [vmem:[#allocation10 + $0x2c] sm:$0xf]
    %v5008 = vld [vmem:[#allocation10 + $0x30] sm:$0xf]
    %v5009 = vld [vmem:[#allocation10 + $0x34] sm:$0xf]
    %v5010 = vld [vmem:[#allocation10 + $0x38] sm:$0xf]
    %v5011 = vld [vmem:[#allocation10 + $0x3c] sm:$0xf]
    %v5012 = vld [vmem:[#allocation10 + $0x40] sm:$0xf]
    %v5013 = vld [vmem:[#allocation10 + $0x44] sm:$0xf]
    %v5014 = vld [vmem:[#allocation10 + $0x48] sm:$0xf]
    %v5015 = vld [vmem:[#allocation10 + $0x4c] sm:$0xf]
    %v5016 = vld [vmem:[#allocation10 + $0x50] sm:$0xf]
    %v5017 = vld [vmem:[#allocation10 + $0x54] sm:$0xf]
    %v5018 = vld [vmem:[#allocation10 + $0x58] sm:$0xf]
    %v5019 = vld [vmem:[#allocation10 + $0x5c] sm:$0xf]
    %v5020 = vld [vmem:[#allocation10 + $0x60] sm:$0xf]
    %v5021 = vld [vmem:[#allocation10 + $0x64] sm:$0xf]
    %v5022 = vld [vmem:[#allocation10 + $0x68] sm:$0xf]
    %v5023 = vld [vmem:[#allocation10 + $0x6c] sm:$0xf]
    %v5024 = vld [vmem:[#allocation10 + $0x70] sm:$0xf]
    %v5025 = vld [vmem:[#allocation10 + $0x74] sm:$0xf]
    %v5026 = vld [vmem:[#allocation10 + $0x78] sm:$0xf]
    %v5027 = vld [vmem:[#allocation10 + $0x7c] sm:$0xf]
    %v5028 = vld [vmem:[#allocation14 + $0x3] ss:$0 sm:$0xff]
    %v5061 = vunpack.c.l.b16 %v4996
    %v5062 = vunpack.c.l.b16 %v4997
    %v5063 = vunpack.c.l.b16 %v4998
    %v5064 = vunpack.c.l.b16 %v4999
    %v5065 = vunpack.c.l.b16 %v5000
    %v5066 = vunpack.c.l.b16 %v5001
    %v5067 = vunpack.c.l.b16 %v5002
    %v5068 = vunpack.c.l.b16 %v5003
    %v5069 = vunpack.c.l.b16 %v5004
    %v5070 = vunpack.c.l.b16 %v5005
    %v5071 = vunpack.c.l.b16 %v5006
    %v5072 = vunpack.c.l.b16 %v5007
    %v5073 = vunpack.c.l.b16 %v5008
    %v5074 = vunpack.c.l.b16 %v5009
    %v5075 = vunpack.c.l.b16 %v5010
    %v5076 = vunpack.c.l.b16 %v5011
    %v5077 = vunpack.c.l.b16 %v5012
    %v5078 = vunpack.c.l.b16 %v5013
    %v5079 = vunpack.c.l.b16 %v5014
    %v5080 = vunpack.c.l.b16 %v5015
    %v5081 = vunpack.c.l.b16 %v5016
    %v5082 = vunpack.c.l.b16 %v5017
    %v5083 = vunpack.c.l.b16 %v5018
    %v5084 = vunpack.c.l.b16 %v5019
    %v5085 = vunpack.c.l.b16 %v5020
    %v5086 = vunpack.c.l.b16 %v5021
    %v5087 = vunpack.c.l.b16 %v5022
    %v5088 = vunpack.c.l.b16 %v5023
    %v5089 = vunpack.c.l.b16 %v5024
    %v5090 = vunpack.c.l.b16 %v5025
    %v5091 = vunpack.c.l.b16 %v5026
    %v5092 = vunpack.c.l.b16 %v5027
    %v5093 = vpack.c.b16 %v5062, %v5061
    %v5094 = vpack.c.b16 %v5064, %v5063
    %v5095 = vpack.c.b16 %v5066, %v5065
    %v5096 = vpack.c.b16 %v5068, %v5067
    %v5097 = vpack.c.b16 %v5070, %v5069
    %v5098 = vpack.c.b16 %v5072, %v5071
    %v5099 = vpack.c.b16 %v5074, %v5073
    %v5100 = vpack.c.b16 %v5076, %v5075
    %v5101 = vpack.c.b16 %v5078, %v5077
    %v5102 = vpack.c.b16 %v5080, %v5079
    %v5103 = vpack.c.b16 %v5082, %v5081
    %v5104 = vpack.c.b16 %v5084, %v5083
    %v5105 = vpack.c.b16 %v5086, %v5085
    %v5106 = vpack.c.b16 %v5088, %v5087
    %v5107 = vpack.c.b16 %v5090, %v5089
    %v5108 = vpack.c.b16 %v5092, %v5091
    %5125 = vmatprep.subr.bf16.mxu0 0
    %5126 = vmatpush1.bf16.msra.mxu0 %v5100
    %5127 = vmatprep.subr.bf16.mxu0 0
    %5128 = vmatpush1.bf16.msra.mxu0 %v5099
    %5129 = vmatprep.subr.bf16.mxu0 0
    %5130 = vmatpush1.bf16.msra.mxu0 %v5098
    %5131 = vmatprep.subr.bf16.mxu0 0
    %5132 = vmatpush1.bf16.msra.mxu0 %v5097
    %5133 = vmatprep.subr.bf16.mxu0 0
    %5134 = vmatpush1.bf16.msra.mxu0 %v5096
    %5135 = vmatprep.subr.bf16.mxu0 0
    %5136 = vmatpush1.bf16.msra.mxu0 %v5095
    %5137 = vmatprep.subr.bf16.mxu0 0
    %5138 = vmatpush1.bf16.msra.mxu0 %v5094
    %5139 = vmatprep.subr.bf16.mxu0 0
    %5140 = vmatpush1.bf16.msra.mxu0 %v5093
    %5141 = vmatprep.subr.bf16.mxu0 0
    %5142 = vmatpush2.bf16.msra.mxu0 %v5108
    %5143 = vmatprep.subr.bf16.mxu0 0
    %5144 = vmatpush2.bf16.msra.mxu0 %v5107
    %5145 = vmatprep.subr.bf16.mxu0 0
    %5146 = vmatpush2.bf16.msra.mxu0 %v5106
    %5147 = vmatprep.subr.bf16.mxu0 0
    %5148 = vmatpush2.bf16.msra.mxu0 %v5105
    %5149 = vmatprep.subr.bf16.mxu0 0
    %5150 = vmatpush2.bf16.msra.mxu0 %v5104
    %5151 = vmatprep.subr.bf16.mxu0 0
    %5152 = vmatpush2.bf16.msra.mxu0 %v5103
    %5153 = vmatprep.subr.bf16.mxu0 0
    %5154 = vmatpush2.bf16.msra.mxu0 %v5102
    %5155 = vmatprep.subr.bf16.mxu0 0
    %5156 = vmatpush2.bf16.msra.mxu0 %v5101
    %5157 = vmatprep.mubr.bf16.mxu0 %v4995
    %5158 = vmatmul.mubr.bf16.gmra.mxu0 %v4994
    %v5159 = vpop.f32.mrf.mxu0
    %v5160 = vadd.f32 %v5028, %v5159
    %v5161 = vpop.f32.mrf.mxu0
    %v5162 = vpop.f32.mrf.mxu0
    %v5163 = vpop.f32.mrf.mxu0
    %5164 = vdwg.mxu0
    %v5165 = vmax.f32 %v5160, 0.0
    %v5166 = vpack.c.bf16 %v5165, %v5165
    %v5167 = vld [vmem:[#allocation11] sm:$0xf]
    %v5168 = vld [vmem:[#allocation11 + $0x4] sm:$0xf]
    %v5169 = vld [vmem:[#allocation11 + $0x8] sm:$0xf]
    %v5170 = vld [vmem:[#allocation11 + $0xc] sm:$0xf]
    %v5171 = vld [vmem:[#allocation11 + $0x10] sm:$0xf]
    %v5172 = vld [vmem:[#allocation11 + $0x14] sm:$0xf]
    %v5173 = vld [vmem:[#allocation11 + $0x18] sm:$0xf]
    %v5174 = vld [vmem:[#allocation11 + $0x1c] sm:$0xf]
    %v5175 = vld [vmem:[#allocation11 + $0x20] sm:$0xf]
    %v5176 = vld [vmem:[#allocation11 + $0x24] sm:$0xf]
    %v5177 = vld [vmem:[#allocation11 + $0x28] sm:$0xf]
    %v5178 = vld [vmem:[#allocation11 + $0x2c] sm:$0xf]
    %v5179 = vld [vmem:[#allocation11 + $0x30] sm:$0xf]
    %v5180 = vld [vmem:[#allocation11 + $0x34] sm:$0xf]
    %v5181 = vld [vmem:[#allocation11 + $0x38] sm:$0xf]
    %v5182 = vld [vmem:[#allocation11 + $0x3c] sm:$0xf]
    %v5183 = vld [vmem:[#allocation14 + $0x4] ss:$0 sm:$0xff]
    %v5200 = vunpack.c.l.b16 %v5167
    %v5201 = vunpack.c.l.b16 %v5168
    %v5202 = vunpack.c.l.b16 %v5169
    %v5203 = vunpack.c.l.b16 %v5170
    %v5204 = vunpack.c.l.b16 %v5171
    %v5205 = vunpack.c.l.b16 %v5172
    %v5206 = vunpack.c.l.b16 %v5173
    %v5207 = vunpack.c.l.b16 %v5174
    %v5208 = vunpack.c.l.b16 %v5175
    %v5209 = vunpack.c.l.b16 %v5176
    %v5210 = vunpack.c.l.b16 %v5177
    %v5211 = vunpack.c.l.b16 %v5178
    %v5212 = vunpack.c.l.b16 %v5179
    %v5213 = vunpack.c.l.b16 %v5180
    %v5214 = vunpack.c.l.b16 %v5181
    %v5215 = vunpack.c.l.b16 %v5182
    %v5216 = vpack.c.b16 %v5201, %v5200
    %v5217 = vpack.c.b16 %v5203, %v5202
    %v5218 = vpack.c.b16 %v5205, %v5204
    %v5219 = vpack.c.b16 %v5207, %v5206
    %v5220 = vpack.c.b16 %v5209, %v5208
    %v5221 = vpack.c.b16 %v5211, %v5210
    %v5222 = vpack.c.b16 %v5213, %v5212
    %v5223 = vpack.c.b16 %v5215, %v5214
    %5232 = vmatprep.subr.bf16.mxu0 0
    %5233 = vmatpush1.bf16.msra.mxu0 %v5223
    %5234 = vmatprep.subr.bf16.mxu0 0
    %5235 = vmatpush1.bf16.msra.mxu0 %v5222
    %5236 = vmatprep.subr.bf16.mxu0 0
    %5237 = vmatpush1.bf16.msra.mxu0 %v5221
    %5238 = vmatprep.subr.bf16.mxu0 0
    %5239 = vmatpush1.bf16.msra.mxu0 %v5220
    %5240 = vmatprep.subr.bf16.mxu0 0
    %5241 = vmatpush1.bf16.msra.mxu0 %v5219
    %5242 = vmatprep.subr.bf16.mxu0 0
    %5243 = vmatpush1.bf16.msra.mxu0 %v5218
    %5244 = vmatprep.subr.bf16.mxu0 0
    %5245 = vmatpush1.bf16.msra.mxu0 %v5217
    %5246 = vmatprep.subr.bf16.mxu0 0
    %5247 = vmatpush1.bf16.msra.mxu0 %v5216
    %5248 = vmatprep.subr.bf16.mxu0 0
    %5249 = vmatpush2.bf16.msra.mxu0 0
    %5250 = vmatprep.subr.bf16.mxu0 0
    %5251 = vmatpush2.bf16.msra.mxu0 0
    %5252 = vmatprep.subr.bf16.mxu0 0
    %5253 = vmatpush2.bf16.msra.mxu0 0
    %5254 = vmatprep.subr.bf16.mxu0 0
    %5255 = vmatpush2.bf16.msra.mxu0 0
    %5256 = vmatprep.subr.bf16.mxu0 0
    %5257 = vmatpush2.bf16.msra.mxu0 0
    %5258 = vmatprep.subr.bf16.mxu0 0
    %5259 = vmatpush2.bf16.msra.mxu0 0
    %5260 = vmatprep.subr.bf16.mxu0 0
    %5261 = vmatpush2.bf16.msra.mxu0 0
    %5262 = vmatprep.subr.bf16.mxu0 0
    %5263 = vmatpush2.bf16.msra.mxu0 0
    %5264 = vmatprep.mubr.bf16.mxu0 0
    %5265 = vmatmul.mubr.bf16.gmra.mxu0 %v5166
    %v5266 = vpop.f32.mrf.mxu0
    %v5267 = vadd.f32 %v5183, %v5266
    %v5268 = vpop.f32.mrf.mxu0
    %v5269 = vpop.f32.mrf.mxu0
    %v5270 = vpop.f32.mrf.mxu0
    %5271 = vdwg.mxu0
    %v5272 = vmax.f32 %v5267, 0.0
    %v5273 = vpack.c.bf16 %v5272, %v5272
    %v5274 = vld [vmem:[#allocation13] sm:$0xf]
    %v5275 = vld [vmem:[#allocation13 + $0x4] sm:$0xf]
    %v5276 = vld [vmem:[#allocation13 + $0x8] sm:$0xf]
    %v5277 = vld [vmem:[#allocation13 + $0xc] sm:$0xf]
    %v5278 = vld [vmem:[#allocation13 + $0x10] sm:$0xf]
    %v5279 = vld [vmem:[#allocation13 + $0x14] sm:$0xf]
    %v5280 = vld [vmem:[#allocation13 + $0x18] sm:$0xf]
    %v5281 = vld [vmem:[#allocation13 + $0x1c] sm:$0xf]
    %v5282 = vld [vmem:[#allocation13 + $0x20] sm:$0xf]
    %v5283 = vld [vmem:[#allocation13 + $0x24] sm:$0xf]
    %v5284 = vld [vmem:[#allocation13 + $0x28] sm:$0xf]
    %v5285 = vld [vmem:[#allocation13 + $0x2c] sm:$0xf]
    %v5286 = vld [vmem:[#allocation13 + $0x30] sm:$0xf]
    %v5287 = vld [vmem:[#allocation13 + $0x34] sm:$0xf]
    %v5288 = vld [vmem:[#allocation13 + $0x38] sm:$0xf]
    %v5289 = vld [vmem:[#allocation13 + $0x3c] sm:$0xf]
    %v5290 = vld [vmem:[#allocation14 + $0x5] ss:$0 sm:$0xff]
    %v5307 = vunpack.c.l.b16 %v5274
    %v5308 = vunpack.c.l.b16 %v5275
    %v5309 = vunpack.c.l.b16 %v5276
    %v5310 = vunpack.c.l.b16 %v5277
    %v5311 = vunpack.c.l.b16 %v5278
    %v5312 = vunpack.c.l.b16 %v5279
    %v5313 = vunpack.c.l.b16 %v5280
    %v5314 = vunpack.c.l.b16 %v5281
    %v5315 = vunpack.c.l.b16 %v5282
    %v5316 = vunpack.c.l.b16 %v5283
    %v5317 = vunpack.c.l.b16 %v5284
    %v5318 = vunpack.c.l.b16 %v5285
    %v5319 = vunpack.c.l.b16 %v5286
    %v5320 = vunpack.c.l.b16 %v5287
    %v5321 = vunpack.c.l.b16 %v5288
    %v5322 = vunpack.c.l.b16 %v5289
    %v5323 = vpack.c.b16 %v5308, %v5307
    %v5324 = vpack.c.b16 %v5310, %v5309
    %v5325 = vpack.c.b16 %v5312, %v5311
    %v5326 = vpack.c.b16 %v5314, %v5313
    %v5327 = vpack.c.b16 %v5316, %v5315
    %v5328 = vpack.c.b16 %v5318, %v5317
    %v5329 = vpack.c.b16 %v5320, %v5319
    %v5330 = vpack.c.b16 %v5322, %v5321
    %5339 = vmatprep.subr.bf16.mxu0 0
    %5340 = vmatpush1.bf16.msra.mxu0 %v5330
    %5341 = vmatprep.subr.bf16.mxu0 0
    %5342 = vmatpush1.bf16.msra.mxu0 %v5329
    %5343 = vmatprep.subr.bf16.mxu0 0
    %5344 = vmatpush1.bf16.msra.mxu0 %v5328
    %5345 = vmatprep.subr.bf16.mxu0 0
    %5346 = vmatpush1.bf16.msra.mxu0 %v5327
    %5347 = vmatprep.subr.bf16.mxu0 0
    %5348 = vmatpush1.bf16.msra.mxu0 %v5326
    %5349 = vmatprep.subr.bf16.mxu0 0
    %5350 = vmatpush1.bf16.msra.mxu0 %v5325
    %5351 = vmatprep.subr.bf16.mxu0 0
    %5352 = vmatpush1.bf16.msra.mxu0 %v5324
    %5353 = vmatprep.subr.bf16.mxu0 0
    %5354 = vmatpush1.bf16.msra.mxu0 %v5323
    %5355 = vmatprep.subr.bf16.mxu0 0
    %5356 = vmatpush2.bf16.msra.mxu0 0
    %5357 = vmatprep.subr.bf16.mxu0 0
    %5358 = vmatpush2.bf16.msra.mxu0 0
    %5359 = vmatprep.subr.bf16.mxu0 0
    %5360 = vmatpush2.bf16.msra.mxu0 0
    %5361 = vmatprep.subr.bf16.mxu0 0
    %5362 = vmatpush2.bf16.msra.mxu0 0
    %5363 = vmatprep.subr.bf16.mxu0 0
    %5364 = vmatpush2.bf16.msra.mxu0 0
    %5365 = vmatprep.subr.bf16.mxu0 0
    %5366 = vmatpush2.bf16.msra.mxu0 0
    %5367 = vmatprep.subr.bf16.mxu0 0
    %5368 = vmatpush2.bf16.msra.mxu0 0
    %5369 = vmatprep.subr.bf16.mxu0 0
    %5370 = vmatpush2.bf16.msra.mxu0 0
    %5371 = vmatprep.mubr.bf16.mxu0 0
    %5372 = vmatmul.mubr.bf16.gmra.mxu0 %v5273
    %v5373 = vpop.f32.mrf.mxu0
    %v5374 = vadd.f32 %v5290, %v5373
    %v5375 = vpop.f32.mrf.mxu0
    %v5376 = vpop.f32.mrf.mxu0
    %v5377 = vpop.f32.mrf.mxu0
    %5378 = vdwg.mxu0
    %5379 = vst [vmem:[#allocation16] sm:$0xff] %v5374
    // Predicated region
    $region66: #{tpu_custom_call.1} parent=1 // pred_check
      _
    $region67: #{tpu_custom_call.1} parent=1 // pred_check_branch
      %5381 = sbr.rel (0) target = $region69
    $region68: #{tpu_custom_call.1} parent=1 // pred_region
      %s5383 = ssub.s32 128, 128
      %5384 = vsyncadd [#allocation4], %s5383
      %s5386 = sshll.u32 [#allocation16], 4
      %s5387 = int_to_ptr.vmem [resolvable:$true] %s5386
      %5389 = dma.vmem_to_hbm [thread:$0]  %s5387, 128, %s8, [#allocation4]
    $region69: #{tpu_custom_call.1} parent=1 // pred_fallthru
      _
    // Predicated region
    $region70: #{tpu_custom_call.1} parent=1 // pred_check
      _
    $region71: #{tpu_custom_call.1} parent=1 // pred_check_branch
      %5391 = sbr.rel (0) target = $region73
    $region72: #{tpu_custom_call.1} parent=1 // pred_region
      %5392 = dma.done [#allocation4], 128
    $region73: #{tpu_custom_call.1} parent=1 // pred_fallthru
      _
    %5393 = vsyncpa [#allocation3], 1
    %5394 = vsyncpa [#allocation6], 1
    %5395 = vsyncpa [#allocation9], 1
    %5396 = vsyncpa [#allocation12], 1
    %5397 = vsyncpa [#allocation15], 1
    %5398 = vsyncpa [#allocation4], 1

</llo_original>
